<compile_context>
chip_gen: v7x
topology: tpu7x:2x2x1
jax: 0.10.0
libtpu: 0.0.40
codegen_flags: <defaults>
</compile_context>

<pallas_src>
import jax
import jax.numpy as jnp
from jax import lax
from jax.experimental import pallas as pl
from jax.experimental.pallas import tpu as pltpu

HIDDEN = 128  # hidden_size of the module


def lstm_linear_kernel(cur_ref,      # SMEM (B,)       f32  current_reading per query
                       wlx_ref,      # SMEM (1,)       f32  linear weight for current reading
                       blin_ref,     # SMEM (1,)       f32  linear bias
                       hist_ref,     # VMEM (1,seq,1)  f32  history column for this query
                       w_ih_ref,     # VMEM (1,4H)     f32  gate-scaled W_ih^T
                       b_ref,        # VMEM (1,4H)     f32  gate-scaled (b_ih + b_hh)
                       whh_hi_ref,   # VMEM (H,4H)     bf16 gate-scaled W_hh^T, high part
                       whh_lo_ref,   # VMEM (H,4H)     bf16 gate-scaled W_hh^T, residual
                       w_lin_h_ref,  # VMEM (1,H)      f32  linear weight, hidden part
                       out_ref):     # VMEM (1,1,1)    f32  prediction for this query
    H = HIDDEN
    q = pl.program_id(0)
    seq_len = hist_ref.shape[1]

    # Hoisted off the serial chain: per-timestep input contribution + bias
    # (already multiplied by the per-gate sigmoid pre-scale in the wrapper).
    hist = hist_ref[0]                                   # (seq, 1)
    pre = hist * w_ih_ref[...] + b_ref[...]              # (seq, 4H)

    h = jnp.zeros((1, H), jnp.float32)
    c = jnp.zeros((1, H), jnp.float32)

    # Fully unrolled recurrence (seq_len is a static Python int).
    for t in range(seq_len):
        # 3-pass bf16 matmul (BF16x3): h split into bf16 value + bf16 residual,
        # weights were pre-split in the wrapper.  Refs read inside the dots
        # (no long-lived multi-vreg weight value spanning the unrolled steps).
        hb = h.astype(jnp.bfloat16)
        hr = (h - hb.astype(jnp.float32)).astype(jnp.bfloat16)
        gates = (
            jnp.dot(hb, whh_hi_ref[...], preferred_element_type=jnp.float32)
            + jnp.dot(hr, whh_hi_ref[...], preferred_element_type=jnp.float32)
            + jnp.dot(hb, whh_lo_ref[...], preferred_element_type=jnp.float32)
            + pre[t:t + 1, :]
        )                                                # (1, 4H), pre-scaled

        # One EUP tanh over all four gates; the sigmoid post-scale (0.5*t+0.5)
        # for i/f/o is folded into the c / h updates below.
        tg4 = jnp.tanh(gates)                            # (1, 4H)
        ti = tg4[:, 0 * H:1 * H]
        tf = tg4[:, 1 * H:2 * H]
        tg = tg4[:, 2 * H:3 * H]
        to = tg4[:, 3 * H:4 * H]
        c = 0.5 * ((tf + 1.0) * c + (ti + 1.0) * tg)     # = f*c + i*g
        h = (0.5 * to + 0.5) * jnp.tanh(c)               # = o*tanh(c)

    # Linear over concat([h_last, current_reading]) with out_size == 1.
    # Hidden part as VPU mul + lane reduce (no MXU weight load for 128 MACs).
    pred = jnp.sum(h * w_lin_h_ref[...], axis=-1, keepdims=True)   # (1, 1)
    out_ref[0] = pred + cur_ref[q] * wlx_ref[0] + blin_ref[0]


def _prepare_params(params):
    """Reshape / gate-scale / bf16-split the module parameters for the kernel.

    In a real deployment this runs once per parameter set (amortized), so the
    wrapper-side multiplies are not on the per-query path.
    """
    W_ih, W_hh, b_ih, b_hh, W_lin, b_lin = params
    H = HIDDEN

    # Per-gate pre-scale so sigmoid(z) = 0.5*tanh(0.5*z) + 0.5 becomes a single
    # tanh over all four gates: scale the i/f/o columns by 0.5 (exact pow2).
    gate_scale = jnp.concatenate([
        jnp.full((H,), 0.5, jnp.float32), jnp.full((H,), 0.5, jnp.float32),
        jnp.full((H,), 1.0, jnp.float32), jnp.full((H,), 0.5, jnp.float32)])

    whh_t = jnp.transpose(W_hh).astype(jnp.float32) * gate_scale[None, :]   # (H, 4H)
    whh_hi = whh_t.astype(jnp.bfloat16)                                     # bf16 hi
    whh_lo = (whh_t - whh_hi.astype(jnp.float32)).astype(jnp.bfloat16)      # bf16 residual

    w_ih_k = jnp.transpose(W_ih).astype(jnp.float32) * gate_scale[None, :]  # (1, 4H)
    b_k = ((b_ih + b_hh).astype(jnp.float32) * gate_scale).reshape(1, 4 * H)
    w_lin_h = W_lin[:, :H].reshape(1, H).astype(jnp.float32)                # (1, H)
    w_lin_x = W_lin[:, H].reshape(1).astype(jnp.float32)                    # (1,)
    b_lin_k = b_lin.reshape(1).astype(jnp.float32)                          # (1,)
    return w_ih_k, b_k, whh_hi, whh_lo, w_lin_h, w_lin_x, b_lin_k


def forward_pallas_batched(currents, histories, params):
    """B independent queries: currents (B,), histories (B, seq) -> (B,)."""
    B, seq = histories.shape
    H = HIDDEN
    w_ih_k, b_k, whh_hi, whh_lo, w_lin_h, w_lin_x, b_lin_k = _prepare_params(params)

    hist = histories.reshape(B, seq, 1).astype(jnp.float32)
    cur = currents.reshape(B).astype(jnp.float32)

    smem = pl.BlockSpec(memory_space=pltpu.MemorySpace.SMEM)
    const = lambda b: (0, 0)  # weights: same block every grid step -> VMEM-resident

    out = pl.pallas_call(
        lstm_linear_kernel,
        out_shape=jax.ShapeDtypeStruct((B, 1, 1), jnp.float32),
        grid=(B,),
        in_specs=[
            smem,                                            # currents
            smem,                                            # w_lin_x
            smem,                                            # b_lin
            pl.BlockSpec((1, seq, 1), lambda b: (b, 0, 0)),  # history (per query)
            pl.BlockSpec((1, 4 * H), const),                 # W_ih^T (scaled)
            pl.BlockSpec((1, 4 * H), const),                 # bias   (scaled)
            pl.BlockSpec((H, 4 * H), const),                 # W_hh^T hi (bf16)
            pl.BlockSpec((H, 4 * H), const),                 # W_hh^T lo (bf16)
            pl.BlockSpec((1, H), const),                     # W_lin hidden part
        ],
        out_specs=pl.BlockSpec((1, 1, 1), lambda b: (b, 0, 0)),
        compiler_params=pltpu.CompilerParams(
            dimension_semantics=("parallel",)),
    )(cur, w_lin_x, b_lin_k, hist, w_ih_k, b_k, whh_hi, whh_lo, w_lin_h)
    return out.reshape(B)


def forward_pallas(current_reading, history, params):
    """Module-equivalent forward: scalar current_reading, (seq,) history -> (1,)."""
    seq = history.shape[0]
    pred = forward_pallas_batched(jnp.reshape(current_reading, (1,)),
                                  jnp.reshape(history, (1, seq)), params)
    return pred.reshape(1)


def forward_reference(current_reading, history, params):
    """Pure-JAX f32 reference mirroring the PyTorch forward (HIGHEST precision)."""
    W_ih, W_hh, b_ih, b_hh, W_lin, b_lin = params
    H = HIDDEN

    def step(carry, x):
        h, c = carry
        gates = (W_ih[:, 0] * x
                 + jnp.dot(W_hh, h, precision=jax.lax.Precision.HIGHEST)
                 + b_ih + b_hh)
        i = jax.nn.sigmoid(gates[0 * H:1 * H])
        f = jax.nn.sigmoid(gates[1 * H:2 * H])
        g = jnp.tanh(gates[2 * H:3 * H])
        o = jax.nn.sigmoid(gates[3 * H:4 * H])
        c = f * c + i * g
        h = o * jnp.tanh(c)
        return (h, c), None

    (h, _), _ = lax.scan(step, (jnp.zeros(H), jnp.zeros(H)), history)
    lin_in = jnp.concatenate([h, jnp.reshape(current_reading, (1,))])
    return jnp.dot(W_lin, lin_in, precision=jax.lax.Precision.HIGHEST) + b_lin


if __name__ == "__main__":
    H = HIDDEN
    seq_len = 8

    key = jax.random.PRNGKey(0)
    ks = jax.random.split(key, 10)

    # Deterministic parameter init mimicking PyTorch defaults (uniform(-k, k)).
    k_lstm = 1.0 / jnp.sqrt(jnp.float32(H))
    W_ih = jax.random.uniform(ks[0], (4 * H, 1), jnp.float32, -k_lstm, k_lstm)
    W_hh = jax.random.uniform(ks[1], (4 * H, H), jnp.float32, -k_lstm, k_lstm)
    b_ih = jax.random.uniform(ks[2], (4 * H,), jnp.float32, -k_lstm, k_lstm)
    b_hh = jax.random.uniform(ks[3], (4 * H,), jnp.float32, -k_lstm, k_lstm)
    k_lin = 1.0 / jnp.sqrt(jnp.float32(H + 1))
    W_lin = jax.random.uniform(ks[4], (1, H + 1), jnp.float32, -k_lin, k_lin)
    b_lin = jax.random.uniform(ks[5], (1,), jnp.float32, -k_lin, k_lin)
    params = (W_ih, W_hh, b_ih, b_hh, W_lin, b_lin)

    # --- Module-equivalent single-sample forward ---------------------------
    history = jax.random.normal(ks[6], (seq_len,), jnp.float32)
    current = jax.random.normal(ks[7], (), jnp.float32)

    fwd = jax.jit(forward_pallas)
    pred = jax.block_until_ready(fwd(current, history, params))
    ref = forward_reference(current, history, params)
    assert pred.shape == (1,)
    # BF16x3 matmuls keep the 8-step recurrence within a few 1e-6 of f32.
    assert jnp.allclose(pred, ref, rtol=1e-4, atol=5e-5), (pred, ref)

    # --- Multi-query path (weights stay VMEM-resident across the grid) -----
    B = 4
    hist_b = jax.random.normal(ks[8], (B, seq_len), jnp.float32)
    cur_b = jax.random.normal(ks[9], (B,), jnp.float32)

    fwd_b = jax.jit(forward_pallas_batched)
    pred_b = jax.block_until_ready(fwd_b(cur_b, hist_b, params))
    ref_b = jnp.stack([forward_reference(cur_b[i], hist_b[i], params)[0]
                       for i in range(B)])
    assert pred_b.shape == (B,)
    assert jnp.allclose(pred_b, ref_b, rtol=1e-4, atol=5e-5), (pred_b, ref_b)

    print("KERNEL_OK")
</pallas_src>

<mosaic_0001>
module attributes {stable_mosaic.version = 11 : i64} {
  func.func @lstm_linear_kernel(%arg0: i32, %arg1: memref<1xf32, #tpu.memory_space<smem>>, %arg2: memref<1xf32, #tpu.memory_space<smem>>, %arg3: memref<1xf32, #tpu.memory_space<smem>>, %arg4: memref<1x8x1xf32, #tpu.memory_space<vmem>>, %arg5: memref<1x512xf32, #tpu.memory_space<vmem>>, %arg6: memref<1x512xf32, #tpu.memory_space<vmem>>, %arg7: memref<128x512xbf16, #tpu.memory_space<vmem>>, %arg8: memref<128x512xbf16, #tpu.memory_space<vmem>>, %arg9: memref<1x128xf32, #tpu.memory_space<vmem>>, %arg10: memref<1x1x1xf32, #tpu.memory_space<vmem>>) attributes {dimension_semantics = [#tpu.dimension_semantics<parallel>], iteration_bounds = array<i64: 1>, scalar_prefetch = 0 : i64, scratch_operands = 0 : i64, tpu.core_type = #tpu.core_type<tc>, window_params = [{transform_indices = @transform_0, window_bounds = array<i64: 1>}, {transform_indices = @transform_1, window_bounds = array<i64: 1>}, {transform_indices = @transform_2, window_bounds = array<i64: 1>}, {transform_indices = @transform_3, window_bounds = array<i64: 1, 8, 1>}, {pipeline_mode = #tpu.pipeline_mode<synchronous>, transform_indices = @transform_4, window_bounds = array<i64: 1, 512>}, {pipeline_mode = #tpu.pipeline_mode<synchronous>, transform_indices = @transform_5, window_bounds = array<i64: 1, 512>}, {pipeline_mode = #tpu.pipeline_mode<synchronous>, transform_indices = @transform_6, window_bounds = array<i64: 128, 512>}, {pipeline_mode = #tpu.pipeline_mode<synchronous>, transform_indices = @transform_7, window_bounds = array<i64: 128, 512>}, {pipeline_mode = #tpu.pipeline_mode<synchronous>, transform_indices = @transform_8, window_bounds = array<i64: 1, 128>}, {transform_indices = @transform_9, window_bounds = array<i64: 1, 1, 1>}]} {
    %c0 = arith.constant 0 : index
    %c0_0 = arith.constant 0 : index
    %c0_1 = arith.constant 0 : index
    %0 = vector.load %arg4[%c0, %c0_0, %c0_1] : memref<1x8x1xf32, #tpu.memory_space<vmem>>, vector<1x8x1xf32>
    %1 = vector.shape_cast %0 : vector<1x8x1xf32> to vector<8x1xf32>
    %c0_2 = arith.constant 0 : index
    %c0_3 = arith.constant 0 : index
    %2 = vector.load %arg5[%c0_2, %c0_3] : memref<1x512xf32, #tpu.memory_space<vmem>>, vector<1x512xf32>
    %3 = vector.broadcast %1 : vector<8x1xf32> to vector<8x512xf32>
    %4 = vector.broadcast %2 : vector<1x512xf32> to vector<8x512xf32>
    %5 = arith.mulf %3, %4 : vector<8x512xf32>
    %c0_4 = arith.constant 0 : index
    %c0_5 = arith.constant 0 : index
    %6 = vector.load %arg6[%c0_4, %c0_5] : memref<1x512xf32, #tpu.memory_space<vmem>>, vector<1x512xf32>
    %7 = vector.broadcast %6 : vector<1x512xf32> to vector<8x512xf32>
    %8 = arith.addf %5, %7 : vector<8x512xf32>
    %cst = arith.constant 0.000000e+00 : f32
    %9 = vector.broadcast %cst : f32 to vector<1x128xf32>
    %cst_6 = arith.constant 0.000000e+00 : f32
    %10 = vector.broadcast %cst_6 : f32 to vector<1x128xf32>
    %11 = arith.truncf %9 : vector<1x128xf32> to vector<1x128xbf16>
    %12 = arith.extf %11 : vector<1x128xbf16> to vector<1x128xf32>
    %13 = arith.subf %9, %12 : vector<1x128xf32>
    %14 = arith.truncf %13 : vector<1x128xf32> to vector<1x128xbf16>
    %c0_7 = arith.constant 0 : index
    %c0_8 = arith.constant 0 : index
    %15 = vector.load %arg7[%c0_7, %c0_8] : memref<128x512xbf16, #tpu.memory_space<vmem>>, vector<128x512xbf16>
    %cst_9 = arith.constant dense<0.000000e+00> : vector<1x512xf32>
    %16 = tpu.matmul %11, %15, %cst_9 {dimension_numbers = #tpu.dot_dimension_numbers<[1], [0], [0], [1], [0, 0, 1, 1], [], []>} : vector<1x128xbf16>, vector<128x512xbf16>, vector<1x512xf32> -> vector<1x512xf32>
    %c0_10 = arith.constant 0 : index
    %c0_11 = arith.constant 0 : index
    %17 = vector.load %arg7[%c0_10, %c0_11] : memref<128x512xbf16, #tpu.memory_space<vmem>>, vector<128x512xbf16>
    %cst_12 = arith.constant dense<0.000000e+00> : vector<1x512xf32>
    %18 = tpu.matmul %14, %17, %cst_12 {dimension_numbers = #tpu.dot_dimension_numbers<[1], [0], [0], [1], [0, 0, 1, 1], [], []>} : vector<1x128xbf16>, vector<128x512xbf16>, vector<1x512xf32> -> vector<1x512xf32>
    %19 = arith.addf %16, %18 : vector<1x512xf32>
    %c0_13 = arith.constant 0 : index
    %c0_14 = arith.constant 0 : index
    %20 = vector.load %arg8[%c0_13, %c0_14] : memref<128x512xbf16, #tpu.memory_space<vmem>>, vector<128x512xbf16>
    %cst_15 = arith.constant dense<0.000000e+00> : vector<1x512xf32>
    %21 = tpu.matmul %11, %20, %cst_15 {dimension_numbers = #tpu.dot_dimension_numbers<[1], [0], [0], [1], [0, 0, 1, 1], [], []>} : vector<1x128xbf16>, vector<128x512xbf16>, vector<1x512xf32> -> vector<1x512xf32>
    %22 = arith.addf %19, %21 : vector<1x512xf32>
    %23 = vector.extract_strided_slice %8 {offsets = [0, 0], sizes = [1, 512], strides = [1, 1]} : vector<8x512xf32> to vector<1x512xf32>
    %24 = arith.addf %22, %23 : vector<1x512xf32>
    %25 = math.tanh %24 : vector<1x512xf32>
    %26 = vector.extract_strided_slice %25 {offsets = [0, 0], sizes = [1, 128], strides = [1, 1]} : vector<1x512xf32> to vector<1x128xf32>
    %27 = vector.extract_strided_slice %25 {offsets = [0, 128], sizes = [1, 128], strides = [1, 1]} : vector<1x512xf32> to vector<1x128xf32>
    %28 = vector.extract_strided_slice %25 {offsets = [0, 256], sizes = [1, 128], strides = [1, 1]} : vector<1x512xf32> to vector<1x128xf32>
    %29 = vector.extract_strided_slice %25 {offsets = [0, 384], sizes = [1, 128], strides = [1, 1]} : vector<1x512xf32> to vector<1x128xf32>
    %cst_16 = arith.constant 1.000000e+00 : f32
    %30 = vector.broadcast %cst_16 : f32 to vector<1x128xf32>
    %31 = arith.addf %27, %30 : vector<1x128xf32>
    %32 = arith.mulf %31, %10 : vector<1x128xf32>
    %cst_17 = arith.constant 1.000000e+00 : f32
    %33 = vector.broadcast %cst_17 : f32 to vector<1x128xf32>
    %34 = arith.addf %26, %33 : vector<1x128xf32>
    %35 = arith.mulf %34, %28 : vector<1x128xf32>
    %36 = arith.addf %32, %35 : vector<1x128xf32>
    %cst_18 = arith.constant 5.000000e-01 : f32
    %37 = vector.broadcast %cst_18 : f32 to vector<1x128xf32>
    %38 = arith.mulf %37, %36 : vector<1x128xf32>
    %cst_19 = arith.constant 5.000000e-01 : f32
    %39 = vector.broadcast %cst_19 : f32 to vector<1x128xf32>
    %40 = arith.mulf %39, %29 : vector<1x128xf32>
    %cst_20 = arith.constant 5.000000e-01 : f32
    %41 = vector.broadcast %cst_20 : f32 to vector<1x128xf32>
    %42 = arith.addf %40, %41 : vector<1x128xf32>
    %43 = math.tanh %38 : vector<1x128xf32>
    %44 = arith.mulf %42, %43 : vector<1x128xf32>
    %45 = arith.truncf %44 : vector<1x128xf32> to vector<1x128xbf16>
    %46 = arith.extf %45 : vector<1x128xbf16> to vector<1x128xf32>
    %47 = arith.subf %44, %46 : vector<1x128xf32>
    %48 = arith.truncf %47 : vector<1x128xf32> to vector<1x128xbf16>
    %c0_21 = arith.constant 0 : index
    %c0_22 = arith.constant 0 : index
    %49 = vector.load %arg7[%c0_21, %c0_22] : memref<128x512xbf16, #tpu.memory_space<vmem>>, vector<128x512xbf16>
    %cst_23 = arith.constant dense<0.000000e+00> : vector<1x512xf32>
    %50 = tpu.matmul %45, %49, %cst_23 {dimension_numbers = #tpu.dot_dimension_numbers<[1], [0], [0], [1], [0, 0, 1, 1], [], []>} : vector<1x128xbf16>, vector<128x512xbf16>, vector<1x512xf32> -> vector<1x512xf32>
    %c0_24 = arith.constant 0 : index
    %c0_25 = arith.constant 0 : index
    %51 = vector.load %arg7[%c0_24, %c0_25] : memref<128x512xbf16, #tpu.memory_space<vmem>>, vector<128x512xbf16>
    %cst_26 = arith.constant dense<0.000000e+00> : vector<1x512xf32>
    %52 = tpu.matmul %48, %51, %cst_26 {dimension_numbers = #tpu.dot_dimension_numbers<[1], [0], [0], [1], [0, 0, 1, 1], [], []>} : vector<1x128xbf16>, vector<128x512xbf16>, vector<1x512xf32> -> vector<1x512xf32>
    %53 = arith.addf %50, %52 : vector<1x512xf32>
    %c0_27 = arith.constant 0 : index
    %c0_28 = arith.constant 0 : index
    %54 = vector.load %arg8[%c0_27, %c0_28] : memref<128x512xbf16, #tpu.memory_space<vmem>>, vector<128x512xbf16>
    %cst_29 = arith.constant dense<0.000000e+00> : vector<1x512xf32>
    %55 = tpu.matmul %45, %54, %cst_29 {dimension_numbers = #tpu.dot_dimension_numbers<[1], [0], [0], [1], [0, 0, 1, 1], [], []>} : vector<1x128xbf16>, vector<128x512xbf16>, vector<1x512xf32> -> vector<1x512xf32>
    %56 = arith.addf %53, %55 : vector<1x512xf32>
    %57 = vector.extract_strided_slice %8 {offsets = [1, 0], sizes = [1, 512], strides = [1, 1]} : vector<8x512xf32> to vector<1x512xf32>
    %58 = arith.addf %56, %57 : vector<1x512xf32>
    %59 = math.tanh %58 : vector<1x512xf32>
    %60 = vector.extract_strided_slice %59 {offsets = [0, 0], sizes = [1, 128], strides = [1, 1]} : vector<1x512xf32> to vector<1x128xf32>
    %61 = vector.extract_strided_slice %59 {offsets = [0, 128], sizes = [1, 128], strides = [1, 1]} : vector<1x512xf32> to vector<1x128xf32>
    %62 = vector.extract_strided_slice %59 {offsets = [0, 256], sizes = [1, 128], strides = [1, 1]} : vector<1x512xf32> to vector<1x128xf32>
    %63 = vector.extract_strided_slice %59 {offsets = [0, 384], sizes = [1, 128], strides = [1, 1]} : vector<1x512xf32> to vector<1x128xf32>
    %cst_30 = arith.constant 1.000000e+00 : f32
    %64 = vector.broadcast %cst_30 : f32 to vector<1x128xf32>
    %65 = arith.addf %61, %64 : vector<1x128xf32>
    %66 = arith.mulf %65, %38 : vector<1x128xf32>
    %cst_31 = arith.constant 1.000000e+00 : f32
    %67 = vector.broadcast %cst_31 : f32 to vector<1x128xf32>
    %68 = arith.addf %60, %67 : vector<1x128xf32>
    %69 = arith.mulf %68, %62 : vector<1x128xf32>
    %70 = arith.addf %66, %69 : vector<1x128xf32>
    %cst_32 = arith.constant 5.000000e-01 : f32
    %71 = vector.broadcast %cst_32 : f32 to vector<1x128xf32>
    %72 = arith.mulf %71, %70 : vector<1x128xf32>
    %cst_33 = arith.constant 5.000000e-01 : f32
    %73 = vector.broadcast %cst_33 : f32 to vector<1x128xf32>
    %74 = arith.mulf %73, %63 : vector<1x128xf32>
    %cst_34 = arith.constant 5.000000e-01 : f32
    %75 = vector.broadcast %cst_34 : f32 to vector<1x128xf32>
    %76 = arith.addf %74, %75 : vector<1x128xf32>
    %77 = math.tanh %72 : vector<1x128xf32>
    %78 = arith.mulf %76, %77 : vector<1x128xf32>
    %79 = arith.truncf %78 : vector<1x128xf32> to vector<1x128xbf16>
    %80 = arith.extf %79 : vector<1x128xbf16> to vector<1x128xf32>
    %81 = arith.subf %78, %80 : vector<1x128xf32>
    %82 = arith.truncf %81 : vector<1x128xf32> to vector<1x128xbf16>
    %c0_35 = arith.constant 0 : index
    %c0_36 = arith.constant 0 : index
    %83 = vector.load %arg7[%c0_35, %c0_36] : memref<128x512xbf16, #tpu.memory_space<vmem>>, vector<128x512xbf16>
    %cst_37 = arith.constant dense<0.000000e+00> : vector<1x512xf32>
    %84 = tpu.matmul %79, %83, %cst_37 {dimension_numbers = #tpu.dot_dimension_numbers<[1], [0], [0], [1], [0, 0, 1, 1], [], []>} : vector<1x128xbf16>, vector<128x512xbf16>, vector<1x512xf32> -> vector<1x512xf32>
    %c0_38 = arith.constant 0 : index
    %c0_39 = arith.constant 0 : index
    %85 = vector.load %arg7[%c0_38, %c0_39] : memref<128x512xbf16, #tpu.memory_space<vmem>>, vector<128x512xbf16>
    %cst_40 = arith.constant dense<0.000000e+00> : vector<1x512xf32>
    %86 = tpu.matmul %82, %85, %cst_40 {dimension_numbers = #tpu.dot_dimension_numbers<[1], [0], [0], [1], [0, 0, 1, 1], [], []>} : vector<1x128xbf16>, vector<128x512xbf16>, vector<1x512xf32> -> vector<1x512xf32>
    %87 = arith.addf %84, %86 : vector<1x512xf32>
    %c0_41 = arith.constant 0 : index
    %c0_42 = arith.constant 0 : index
    %88 = vector.load %arg8[%c0_41, %c0_42] : memref<128x512xbf16, #tpu.memory_space<vmem>>, vector<128x512xbf16>
    %cst_43 = arith.constant dense<0.000000e+00> : vector<1x512xf32>
    %89 = tpu.matmul %79, %88, %cst_43 {dimension_numbers = #tpu.dot_dimension_numbers<[1], [0], [0], [1], [0, 0, 1, 1], [], []>} : vector<1x128xbf16>, vector<128x512xbf16>, vector<1x512xf32> -> vector<1x512xf32>
    %90 = arith.addf %87, %89 : vector<1x512xf32>
    %91 = vector.extract_strided_slice %8 {offsets = [2, 0], sizes = [1, 512], strides = [1, 1]} : vector<8x512xf32> to vector<1x512xf32>
    %92 = arith.addf %90, %91 : vector<1x512xf32>
    %93 = math.tanh %92 : vector<1x512xf32>
    %94 = vector.extract_strided_slice %93 {offsets = [0, 0], sizes = [1, 128], strides = [1, 1]} : vector<1x512xf32> to vector<1x128xf32>
    %95 = vector.extract_strided_slice %93 {offsets = [0, 128], sizes = [1, 128], strides = [1, 1]} : vector<1x512xf32> to vector<1x128xf32>
    %96 = vector.extract_strided_slice %93 {offsets = [0, 256], sizes = [1, 128], strides = [1, 1]} : vector<1x512xf32> to vector<1x128xf32>
    %97 = vector.extract_strided_slice %93 {offsets = [0, 384], sizes = [1, 128], strides = [1, 1]} : vector<1x512xf32> to vector<1x128xf32>
    %cst_44 = arith.constant 1.000000e+00 : f32
    %98 = vector.broadcast %cst_44 : f32 to vector<1x128xf32>
    %99 = arith.addf %95, %98 : vector<1x128xf32>
    %100 = arith.mulf %99, %72 : vector<1x128xf32>
    %cst_45 = arith.constant 1.000000e+00 : f32
    %101 = vector.broadcast %cst_45 : f32 to vector<1x128xf32>
    %102 = arith.addf %94, %101 : vector<1x128xf32>
    %103 = arith.mulf %102, %96 : vector<1x128xf32>
    %104 = arith.addf %100, %103 : vector<1x128xf32>
    %cst_46 = arith.constant 5.000000e-01 : f32
    %105 = vector.broadcast %cst_46 : f32 to vector<1x128xf32>
    %106 = arith.mulf %105, %104 : vector<1x128xf32>
    %cst_47 = arith.constant 5.000000e-01 : f32
    %107 = vector.broadcast %cst_47 : f32 to vector<1x128xf32>
    %108 = arith.mulf %107, %97 : vector<1x128xf32>
    %cst_48 = arith.constant 5.000000e-01 : f32
    %109 = vector.broadcast %cst_48 : f32 to vector<1x128xf32>
    %110 = arith.addf %108, %109 : vector<1x128xf32>
    %111 = math.tanh %106 : vector<1x128xf32>
    %112 = arith.mulf %110, %111 : vector<1x128xf32>
    %113 = arith.truncf %112 : vector<1x128xf32> to vector<1x128xbf16>
    %114 = arith.extf %113 : vector<1x128xbf16> to vector<1x128xf32>
    %115 = arith.subf %112, %114 : vector<1x128xf32>
    %116 = arith.truncf %115 : vector<1x128xf32> to vector<1x128xbf16>
    %c0_49 = arith.constant 0 : index
    %c0_50 = arith.constant 0 : index
    %117 = vector.load %arg7[%c0_49, %c0_50] : memref<128x512xbf16, #tpu.memory_space<vmem>>, vector<128x512xbf16>
    %cst_51 = arith.constant dense<0.000000e+00> : vector<1x512xf32>
    %118 = tpu.matmul %113, %117, %cst_51 {dimension_numbers = #tpu.dot_dimension_numbers<[1], [0], [0], [1], [0, 0, 1, 1], [], []>} : vector<1x128xbf16>, vector<128x512xbf16>, vector<1x512xf32> -> vector<1x512xf32>
    %c0_52 = arith.constant 0 : index
    %c0_53 = arith.constant 0 : index
    %119 = vector.load %arg7[%c0_52, %c0_53] : memref<128x512xbf16, #tpu.memory_space<vmem>>, vector<128x512xbf16>
    %cst_54 = arith.constant dense<0.000000e+00> : vector<1x512xf32>
    %120 = tpu.matmul %116, %119, %cst_54 {dimension_numbers = #tpu.dot_dimension_numbers<[1], [0], [0], [1], [0, 0, 1, 1], [], []>} : vector<1x128xbf16>, vector<128x512xbf16>, vector<1x512xf32> -> vector<1x512xf32>
    %121 = arith.addf %118, %120 : vector<1x512xf32>
    %c0_55 = arith.constant 0 : index
    %c0_56 = arith.constant 0 : index
    %122 = vector.load %arg8[%c0_55, %c0_56] : memref<128x512xbf16, #tpu.memory_space<vmem>>, vector<128x512xbf16>
    %cst_57 = arith.constant dense<0.000000e+00> : vector<1x512xf32>
    %123 = tpu.matmul %113, %122, %cst_57 {dimension_numbers = #tpu.dot_dimension_numbers<[1], [0], [0], [1], [0, 0, 1, 1], [], []>} : vector<1x128xbf16>, vector<128x512xbf16>, vector<1x512xf32> -> vector<1x512xf32>
    %124 = arith.addf %121, %123 : vector<1x512xf32>
    %125 = vector.extract_strided_slice %8 {offsets = [3, 0], sizes = [1, 512], strides = [1, 1]} : vector<8x512xf32> to vector<1x512xf32>
    %126 = arith.addf %124, %125 : vector<1x512xf32>
    %127 = math.tanh %126 : vector<1x512xf32>
    %128 = vector.extract_strided_slice %127 {offsets = [0, 0], sizes = [1, 128], strides = [1, 1]} : vector<1x512xf32> to vector<1x128xf32>
    %129 = vector.extract_strided_slice %127 {offsets = [0, 128], sizes = [1, 128], strides = [1, 1]} : vector<1x512xf32> to vector<1x128xf32>
    %130 = vector.extract_strided_slice %127 {offsets = [0, 256], sizes = [1, 128], strides = [1, 1]} : vector<1x512xf32> to vector<1x128xf32>
    %131 = vector.extract_strided_slice %127 {offsets = [0, 384], sizes = [1, 128], strides = [1, 1]} : vector<1x512xf32> to vector<1x128xf32>
    %cst_58 = arith.constant 1.000000e+00 : f32
    %132 = vector.broadcast %cst_58 : f32 to vector<1x128xf32>
    %133 = arith.addf %129, %132 : vector<1x128xf32>
    %134 = arith.mulf %133, %106 : vector<1x128xf32>
    %cst_59 = arith.constant 1.000000e+00 : f32
    %135 = vector.broadcast %cst_59 : f32 to vector<1x128xf32>
    %136 = arith.addf %128, %135 : vector<1x128xf32>
    %137 = arith.mulf %136, %130 : vector<1x128xf32>
    %138 = arith.addf %134, %137 : vector<1x128xf32>
    %cst_60 = arith.constant 5.000000e-01 : f32
    %139 = vector.broadcast %cst_60 : f32 to vector<1x128xf32>
    %140 = arith.mulf %139, %138 : vector<1x128xf32>
    %cst_61 = arith.constant 5.000000e-01 : f32
    %141 = vector.broadcast %cst_61 : f32 to vector<1x128xf32>
    %142 = arith.mulf %141, %131 : vector<1x128xf32>
    %cst_62 = arith.constant 5.000000e-01 : f32
    %143 = vector.broadcast %cst_62 : f32 to vector<1x128xf32>
    %144 = arith.addf %142, %143 : vector<1x128xf32>
    %145 = math.tanh %140 : vector<1x128xf32>
    %146 = arith.mulf %144, %145 : vector<1x128xf32>
    %147 = arith.truncf %146 : vector<1x128xf32> to vector<1x128xbf16>
    %148 = arith.extf %147 : vector<1x128xbf16> to vector<1x128xf32>
    %149 = arith.subf %146, %148 : vector<1x128xf32>
    %150 = arith.truncf %149 : vector<1x128xf32> to vector<1x128xbf16>
    %c0_63 = arith.constant 0 : index
    %c0_64 = arith.constant 0 : index
    %151 = vector.load %arg7[%c0_63, %c0_64] : memref<128x512xbf16, #tpu.memory_space<vmem>>, vector<128x512xbf16>
    %cst_65 = arith.constant dense<0.000000e+00> : vector<1x512xf32>
    %152 = tpu.matmul %147, %151, %cst_65 {dimension_numbers = #tpu.dot_dimension_numbers<[1], [0], [0], [1], [0, 0, 1, 1], [], []>} : vector<1x128xbf16>, vector<128x512xbf16>, vector<1x512xf32> -> vector<1x512xf32>
    %c0_66 = arith.constant 0 : index
    %c0_67 = arith.constant 0 : index
    %153 = vector.load %arg7[%c0_66, %c0_67] : memref<128x512xbf16, #tpu.memory_space<vmem>>, vector<128x512xbf16>
    %cst_68 = arith.constant dense<0.000000e+00> : vector<1x512xf32>
    %154 = tpu.matmul %150, %153, %cst_68 {dimension_numbers = #tpu.dot_dimension_numbers<[1], [0], [0], [1], [0, 0, 1, 1], [], []>} : vector<1x128xbf16>, vector<128x512xbf16>, vector<1x512xf32> -> vector<1x512xf32>
    %155 = arith.addf %152, %154 : vector<1x512xf32>
    %c0_69 = arith.constant 0 : index
    %c0_70 = arith.constant 0 : index
    %156 = vector.load %arg8[%c0_69, %c0_70] : memref<128x512xbf16, #tpu.memory_space<vmem>>, vector<128x512xbf16>
    %cst_71 = arith.constant dense<0.000000e+00> : vector<1x512xf32>
    %157 = tpu.matmul %147, %156, %cst_71 {dimension_numbers = #tpu.dot_dimension_numbers<[1], [0], [0], [1], [0, 0, 1, 1], [], []>} : vector<1x128xbf16>, vector<128x512xbf16>, vector<1x512xf32> -> vector<1x512xf32>
    %158 = arith.addf %155, %157 : vector<1x512xf32>
    %159 = vector.extract_strided_slice %8 {offsets = [4, 0], sizes = [1, 512], strides = [1, 1]} : vector<8x512xf32> to vector<1x512xf32>
    %160 = arith.addf %158, %159 : vector<1x512xf32>
    %161 = math.tanh %160 : vector<1x512xf32>
    %162 = vector.extract_strided_slice %161 {offsets = [0, 0], sizes = [1, 128], strides = [1, 1]} : vector<1x512xf32> to vector<1x128xf32>
    %163 = vector.extract_strided_slice %161 {offsets = [0, 128], sizes = [1, 128], strides = [1, 1]} : vector<1x512xf32> to vector<1x128xf32>
    %164 = vector.extract_strided_slice %161 {offsets = [0, 256], sizes = [1, 128], strides = [1, 1]} : vector<1x512xf32> to vector<1x128xf32>
    %165 = vector.extract_strided_slice %161 {offsets = [0, 384], sizes = [1, 128], strides = [1, 1]} : vector<1x512xf32> to vector<1x128xf32>
    %cst_72 = arith.constant 1.000000e+00 : f32
    %166 = vector.broadcast %cst_72 : f32 to vector<1x128xf32>
    %167 = arith.addf %163, %166 : vector<1x128xf32>
    %168 = arith.mulf %167, %140 : vector<1x128xf32>
    %cst_73 = arith.constant 1.000000e+00 : f32
    %169 = vector.broadcast %cst_73 : f32 to vector<1x128xf32>
    %170 = arith.addf %162, %169 : vector<1x128xf32>
    %171 = arith.mulf %170, %164 : vector<1x128xf32>
    %172 = arith.addf %168, %171 : vector<1x128xf32>
    %cst_74 = arith.constant 5.000000e-01 : f32
    %173 = vector.broadcast %cst_74 : f32 to vector<1x128xf32>
    %174 = arith.mulf %173, %172 : vector<1x128xf32>
    %cst_75 = arith.constant 5.000000e-01 : f32
    %175 = vector.broadcast %cst_75 : f32 to vector<1x128xf32>
    %176 = arith.mulf %175, %165 : vector<1x128xf32>
    %cst_76 = arith.constant 5.000000e-01 : f32
    %177 = vector.broadcast %cst_76 : f32 to vector<1x128xf32>
    %178 = arith.addf %176, %177 : vector<1x128xf32>
    %179 = math.tanh %174 : vector<1x128xf32>
    %180 = arith.mulf %178, %179 : vector<1x128xf32>
    %181 = arith.truncf %180 : vector<1x128xf32> to vector<1x128xbf16>
    %182 = arith.extf %181 : vector<1x128xbf16> to vector<1x128xf32>
    %183 = arith.subf %180, %182 : vector<1x128xf32>
    %184 = arith.truncf %183 : vector<1x128xf32> to vector<1x128xbf16>
    %c0_77 = arith.constant 0 : index
    %c0_78 = arith.constant 0 : index
    %185 = vector.load %arg7[%c0_77, %c0_78] : memref<128x512xbf16, #tpu.memory_space<vmem>>, vector<128x512xbf16>
    %cst_79 = arith.constant dense<0.000000e+00> : vector<1x512xf32>
    %186 = tpu.matmul %181, %185, %cst_79 {dimension_numbers = #tpu.dot_dimension_numbers<[1], [0], [0], [1], [0, 0, 1, 1], [], []>} : vector<1x128xbf16>, vector<128x512xbf16>, vector<1x512xf32> -> vector<1x512xf32>
    %c0_80 = arith.constant 0 : index
    %c0_81 = arith.constant 0 : index
    %187 = vector.load %arg7[%c0_80, %c0_81] : memref<128x512xbf16, #tpu.memory_space<vmem>>, vector<128x512xbf16>
    %cst_82 = arith.constant dense<0.000000e+00> : vector<1x512xf32>
    %188 = tpu.matmul %184, %187, %cst_82 {dimension_numbers = #tpu.dot_dimension_numbers<[1], [0], [0], [1], [0, 0, 1, 1], [], []>} : vector<1x128xbf16>, vector<128x512xbf16>, vector<1x512xf32> -> vector<1x512xf32>
    %189 = arith.addf %186, %188 : vector<1x512xf32>
    %c0_83 = arith.constant 0 : index
    %c0_84 = arith.constant 0 : index
    %190 = vector.load %arg8[%c0_83, %c0_84] : memref<128x512xbf16, #tpu.memory_space<vmem>>, vector<128x512xbf16>
    %cst_85 = arith.constant dense<0.000000e+00> : vector<1x512xf32>
    %191 = tpu.matmul %181, %190, %cst_85 {dimension_numbers = #tpu.dot_dimension_numbers<[1], [0], [0], [1], [0, 0, 1, 1], [], []>} : vector<1x128xbf16>, vector<128x512xbf16>, vector<1x512xf32> -> vector<1x512xf32>
    %192 = arith.addf %189, %191 : vector<1x512xf32>
    %193 = vector.extract_strided_slice %8 {offsets = [5, 0], sizes = [1, 512], strides = [1, 1]} : vector<8x512xf32> to vector<1x512xf32>
    %194 = arith.addf %192, %193 : vector<1x512xf32>
    %195 = math.tanh %194 : vector<1x512xf32>
    %196 = vector.extract_strided_slice %195 {offsets = [0, 0], sizes = [1, 128], strides = [1, 1]} : vector<1x512xf32> to vector<1x128xf32>
    %197 = vector.extract_strided_slice %195 {offsets = [0, 128], sizes = [1, 128], strides = [1, 1]} : vector<1x512xf32> to vector<1x128xf32>
    %198 = vector.extract_strided_slice %195 {offsets = [0, 256], sizes = [1, 128], strides = [1, 1]} : vector<1x512xf32> to vector<1x128xf32>
    %199 = vector.extract_strided_slice %195 {offsets = [0, 384], sizes = [1, 128], strides = [1, 1]} : vector<1x512xf32> to vector<1x128xf32>
    %cst_86 = arith.constant 1.000000e+00 : f32
    %200 = vector.broadcast %cst_86 : f32 to vector<1x128xf32>
    %201 = arith.addf %197, %200 : vector<1x128xf32>
    %202 = arith.mulf %201, %174 : vector<1x128xf32>
    %cst_87 = arith.constant 1.000000e+00 : f32
    %203 = vector.broadcast %cst_87 : f32 to vector<1x128xf32>
    %204 = arith.addf %196, %203 : vector<1x128xf32>
    %205 = arith.mulf %204, %198 : vector<1x128xf32>
    %206 = arith.addf %202, %205 : vector<1x128xf32>
    %cst_88 = arith.constant 5.000000e-01 : f32
    %207 = vector.broadcast %cst_88 : f32 to vector<1x128xf32>
    %208 = arith.mulf %207, %206 : vector<1x128xf32>
    %cst_89 = arith.constant 5.000000e-01 : f32
    %209 = vector.broadcast %cst_89 : f32 to vector<1x128xf32>
    %210 = arith.mulf %209, %199 : vector<1x128xf32>
    %cst_90 = arith.constant 5.000000e-01 : f32
    %211 = vector.broadcast %cst_90 : f32 to vector<1x128xf32>
    %212 = arith.addf %210, %211 : vector<1x128xf32>
    %213 = math.tanh %208 : vector<1x128xf32>
    %214 = arith.mulf %212, %213 : vector<1x128xf32>
    %215 = arith.truncf %214 : vector<1x128xf32> to vector<1x128xbf16>
    %216 = arith.extf %215 : vector<1x128xbf16> to vector<1x128xf32>
    %217 = arith.subf %214, %216 : vector<1x128xf32>
    %218 = arith.truncf %217 : vector<1x128xf32> to vector<1x128xbf16>
    %c0_91 = arith.constant 0 : index
    %c0_92 = arith.constant 0 : index
    %219 = vector.load %arg7[%c0_91, %c0_92] : memref<128x512xbf16, #tpu.memory_space<vmem>>, vector<128x512xbf16>
    %cst_93 = arith.constant dense<0.000000e+00> : vector<1x512xf32>
    %220 = tpu.matmul %215, %219, %cst_93 {dimension_numbers = #tpu.dot_dimension_numbers<[1], [0], [0], [1], [0, 0, 1, 1], [], []>} : vector<1x128xbf16>, vector<128x512xbf16>, vector<1x512xf32> -> vector<1x512xf32>
    %c0_94 = arith.constant 0 : index
    %c0_95 = arith.constant 0 : index
    %221 = vector.load %arg7[%c0_94, %c0_95] : memref<128x512xbf16, #tpu.memory_space<vmem>>, vector<128x512xbf16>
    %cst_96 = arith.constant dense<0.000000e+00> : vector<1x512xf32>
    %222 = tpu.matmul %218, %221, %cst_96 {dimension_numbers = #tpu.dot_dimension_numbers<[1], [0], [0], [1], [0, 0, 1, 1], [], []>} : vector<1x128xbf16>, vector<128x512xbf16>, vector<1x512xf32> -> vector<1x512xf32>
    %223 = arith.addf %220, %222 : vector<1x512xf32>
    %c0_97 = arith.constant 0 : index
    %c0_98 = arith.constant 0 : index
    %224 = vector.load %arg8[%c0_97, %c0_98] : memref<128x512xbf16, #tpu.memory_space<vmem>>, vector<128x512xbf16>
    %cst_99 = arith.constant dense<0.000000e+00> : vector<1x512xf32>
    %225 = tpu.matmul %215, %224, %cst_99 {dimension_numbers = #tpu.dot_dimension_numbers<[1], [0], [0], [1], [0, 0, 1, 1], [], []>} : vector<1x128xbf16>, vector<128x512xbf16>, vector<1x512xf32> -> vector<1x512xf32>
    %226 = arith.addf %223, %225 : vector<1x512xf32>
    %227 = vector.extract_strided_slice %8 {offsets = [6, 0], sizes = [1, 512], strides = [1, 1]} : vector<8x512xf32> to vector<1x512xf32>
    %228 = arith.addf %226, %227 : vector<1x512xf32>
    %229 = math.tanh %228 : vector<1x512xf32>
    %230 = vector.extract_strided_slice %229 {offsets = [0, 0], sizes = [1, 128], strides = [1, 1]} : vector<1x512xf32> to vector<1x128xf32>
    %231 = vector.extract_strided_slice %229 {offsets = [0, 128], sizes = [1, 128], strides = [1, 1]} : vector<1x512xf32> to vector<1x128xf32>
    %232 = vector.extract_strided_slice %229 {offsets = [0, 256], sizes = [1, 128], strides = [1, 1]} : vector<1x512xf32> to vector<1x128xf32>
    %233 = vector.extract_strided_slice %229 {offsets = [0, 384], sizes = [1, 128], strides = [1, 1]} : vector<1x512xf32> to vector<1x128xf32>
    %cst_100 = arith.constant 1.000000e+00 : f32
    %234 = vector.broadcast %cst_100 : f32 to vector<1x128xf32>
    %235 = arith.addf %231, %234 : vector<1x128xf32>
    %236 = arith.mulf %235, %208 : vector<1x128xf32>
    %cst_101 = arith.constant 1.000000e+00 : f32
    %237 = vector.broadcast %cst_101 : f32 to vector<1x128xf32>
    %238 = arith.addf %230, %237 : vector<1x128xf32>
    %239 = arith.mulf %238, %232 : vector<1x128xf32>
    %240 = arith.addf %236, %239 : vector<1x128xf32>
    %cst_102 = arith.constant 5.000000e-01 : f32
    %241 = vector.broadcast %cst_102 : f32 to vector<1x128xf32>
    %242 = arith.mulf %241, %240 : vector<1x128xf32>
    %cst_103 = arith.constant 5.000000e-01 : f32
    %243 = vector.broadcast %cst_103 : f32 to vector<1x128xf32>
    %244 = arith.mulf %243, %233 : vector<1x128xf32>
    %cst_104 = arith.constant 5.000000e-01 : f32
    %245 = vector.broadcast %cst_104 : f32 to vector<1x128xf32>
    %246 = arith.addf %244, %245 : vector<1x128xf32>
    %247 = math.tanh %242 : vector<1x128xf32>
    %248 = arith.mulf %246, %247 : vector<1x128xf32>
    %249 = arith.truncf %248 : vector<1x128xf32> to vector<1x128xbf16>
    %250 = arith.extf %249 : vector<1x128xbf16> to vector<1x128xf32>
    %251 = arith.subf %248, %250 : vector<1x128xf32>
    %252 = arith.truncf %251 : vector<1x128xf32> to vector<1x128xbf16>
    %c0_105 = arith.constant 0 : index
    %c0_106 = arith.constant 0 : index
    %253 = vector.load %arg7[%c0_105, %c0_106] : memref<128x512xbf16, #tpu.memory_space<vmem>>, vector<128x512xbf16>
    %cst_107 = arith.constant dense<0.000000e+00> : vector<1x512xf32>
    %254 = tpu.matmul %249, %253, %cst_107 {dimension_numbers = #tpu.dot_dimension_numbers<[1], [0], [0], [1], [0, 0, 1, 1], [], []>} : vector<1x128xbf16>, vector<128x512xbf16>, vector<1x512xf32> -> vector<1x512xf32>
    %c0_108 = arith.constant 0 : index
    %c0_109 = arith.constant 0 : index
    %255 = vector.load %arg7[%c0_108, %c0_109] : memref<128x512xbf16, #tpu.memory_space<vmem>>, vector<128x512xbf16>
    %cst_110 = arith.constant dense<0.000000e+00> : vector<1x512xf32>
    %256 = tpu.matmul %252, %255, %cst_110 {dimension_numbers = #tpu.dot_dimension_numbers<[1], [0], [0], [1], [0, 0, 1, 1], [], []>} : vector<1x128xbf16>, vector<128x512xbf16>, vector<1x512xf32> -> vector<1x512xf32>
    %257 = arith.addf %254, %256 : vector<1x512xf32>
    %c0_111 = arith.constant 0 : index
    %c0_112 = arith.constant 0 : index
    %258 = vector.load %arg8[%c0_111, %c0_112] : memref<128x512xbf16, #tpu.memory_space<vmem>>, vector<128x512xbf16>
    %cst_113 = arith.constant dense<0.000000e+00> : vector<1x512xf32>
    %259 = tpu.matmul %249, %258, %cst_113 {dimension_numbers = #tpu.dot_dimension_numbers<[1], [0], [0], [1], [0, 0, 1, 1], [], []>} : vector<1x128xbf16>, vector<128x512xbf16>, vector<1x512xf32> -> vector<1x512xf32>
    %260 = arith.addf %257, %259 : vector<1x512xf32>
    %261 = vector.extract_strided_slice %8 {offsets = [7, 0], sizes = [1, 512], strides = [1, 1]} : vector<8x512xf32> to vector<1x512xf32>
    %262 = arith.addf %260, %261 : vector<1x512xf32>
    %263 = math.tanh %262 : vector<1x512xf32>
    %264 = vector.extract_strided_slice %263 {offsets = [0, 0], sizes = [1, 128], strides = [1, 1]} : vector<1x512xf32> to vector<1x128xf32>
    %265 = vector.extract_strided_slice %263 {offsets = [0, 128], sizes = [1, 128], strides = [1, 1]} : vector<1x512xf32> to vector<1x128xf32>
    %266 = vector.extract_strided_slice %263 {offsets = [0, 256], sizes = [1, 128], strides = [1, 1]} : vector<1x512xf32> to vector<1x128xf32>
    %267 = vector.extract_strided_slice %263 {offsets = [0, 384], sizes = [1, 128], strides = [1, 1]} : vector<1x512xf32> to vector<1x128xf32>
    %cst_114 = arith.constant 1.000000e+00 : f32
    %268 = vector.broadcast %cst_114 : f32 to vector<1x128xf32>
    %269 = arith.addf %265, %268 : vector<1x128xf32>
    %270 = arith.mulf %269, %242 : vector<1x128xf32>
    %cst_115 = arith.constant 1.000000e+00 : f32
    %271 = vector.broadcast %cst_115 : f32 to vector<1x128xf32>
    %272 = arith.addf %264, %271 : vector<1x128xf32>
    %273 = arith.mulf %272, %266 : vector<1x128xf32>
    %274 = arith.addf %270, %273 : vector<1x128xf32>
    %cst_116 = arith.constant 5.000000e-01 : f32
    %275 = vector.broadcast %cst_116 : f32 to vector<1x128xf32>
    %276 = arith.mulf %275, %274 : vector<1x128xf32>
    %cst_117 = arith.constant 5.000000e-01 : f32
    %277 = vector.broadcast %cst_117 : f32 to vector<1x128xf32>
    %278 = arith.mulf %277, %267 : vector<1x128xf32>
    %cst_118 = arith.constant 5.000000e-01 : f32
    %279 = vector.broadcast %cst_118 : f32 to vector<1x128xf32>
    %280 = arith.addf %278, %279 : vector<1x128xf32>
    %281 = math.tanh %276 : vector<1x128xf32>
    %282 = arith.mulf %280, %281 : vector<1x128xf32>
    %c0_119 = arith.constant 0 : index
    %c0_120 = arith.constant 0 : index
    %283 = vector.load %arg9[%c0_119, %c0_120] : memref<1x128xf32, #tpu.memory_space<vmem>>, vector<1x128xf32>
    %284 = arith.mulf %282, %283 : vector<1x128xf32>
    %cst_121 = arith.constant dense<0.000000e+00> : vector<1xf32>
    %285 = vector.multi_reduction <add>, %284, %cst_121 [1] : vector<1x128xf32> to vector<1xf32>
    %286 = vector.shape_cast %285 : vector<1xf32> to vector<1x1xf32>
    %287 = arith.index_cast %arg0 : i32 to index
    %288 = memref.load %arg1[%287] : memref<1xf32, #tpu.memory_space<smem>>
    %c0_122 = arith.constant 0 : index
    %289 = memref.load %arg2[%c0_122] : memref<1xf32, #tpu.memory_space<smem>>
    %290 = arith.mulf %288, %289 : f32
    %291 = vector.broadcast %290 : f32 to vector<1x1xf32>
    %292 = arith.addf %286, %291 : vector<1x1xf32>
    %c0_123 = arith.constant 0 : index
    %293 = memref.load %arg3[%c0_123] : memref<1xf32, #tpu.memory_space<smem>>
    %294 = vector.broadcast %293 : f32 to vector<1x1xf32>
    %295 = arith.addf %292, %294 : vector<1x1xf32>
    %c0_124 = arith.constant 0 : index
    %c0_125 = arith.constant 0 : index
    %c0_126 = arith.constant 0 : index
    %296 = vector.load %arg10[%c0_124, %c0_125, %c0_126] : memref<1x1x1xf32, #tpu.memory_space<vmem>>, vector<1x1x1xf32>
    %297 = vector.shape_cast %296 : vector<1x1x1xf32> to vector<1x1xf32>
    %298 = vector.shape_cast %295 : vector<1x1xf32> to vector<1x1x1xf32>
    tpu.vector_store %arg10[%c0_124, %c0_125, %c0_126], %298 {strides = array<i32>} : memref<1x1x1xf32, #tpu.memory_space<vmem>>, vector<1x1x1xf32>,
    return
  }
  func.func @transform_0(%arg0: i32) -> i32 {
    %c0_i32 = arith.constant 0 : i32
    %c0_i32_0 = arith.constant 0 : i32
    return %c0_i32 : i32
  }
  func.func @transform_1(%arg0: i32) -> i32 {
    %c0_i32 = arith.constant 0 : i32
    %c0_i32_0 = arith.constant 0 : i32
    return %c0_i32 : i32
  }
  func.func @transform_2(%arg0: i32) -> i32 {
    %c0_i32 = arith.constant 0 : i32
    %c0_i32_0 = arith.constant 0 : i32
    return %c0_i32 : i32
  }
  func.func @transform_3(%arg0: i32) -> (i32, i32, i32) {
    %c0_i32 = arith.constant 0 : i32
    %c0_i32_0 = arith.constant 0 : i32
    %c0_i32_1 = arith.constant 0 : i32
    return %arg0, %c0_i32, %c0_i32_0 : i32, i32, i32
  }
  func.func @transform_4(%arg0: i32) -> (i32, i32) {
    %c0_i32 = arith.constant 0 : i32
    %c0_i32_0 = arith.constant 0 : i32
    %c0_i32_1 = arith.constant 0 : i32
    return %c0_i32, %c0_i32_0 : i32, i32
  }
  func.func @transform_5(%arg0: i32) -> (i32, i32) {
    %c0_i32 = arith.constant 0 : i32
    %c0_i32_0 = arith.constant 0 : i32
    %c0_i32_1 = arith.constant 0 : i32
    return %c0_i32, %c0_i32_0 : i32, i32
  }
  func.func @transform_6(%arg0: i32) -> (i32, i32) {
    %c0_i32 = arith.constant 0 : i32
    %c0_i32_0 = arith.constant 0 : i32
    %c0_i32_1 = arith.constant 0 : i32
    return %c0_i32, %c0_i32_0 : i32, i32
  }
  func.func @transform_7(%arg0: i32) -> (i32, i32) {
    %c0_i32 = arith.constant 0 : i32
    %c0_i32_0 = arith.constant 0 : i32
    %c0_i32_1 = arith.constant 0 : i32
    return %c0_i32, %c0_i32_0 : i32, i32
  }
  func.func @transform_8(%arg0: i32) -> (i32, i32) {
    %c0_i32 = arith.constant 0 : i32
    %c0_i32_0 = arith.constant 0 : i32
    %c0_i32_1 = arith.constant 0 : i32
    return %c0_i32, %c0_i32_0 : i32, i32
  }
  func.func @transform_9(%arg0: i32) -> (i32, i32, i32) {
    %c0_i32 = arith.constant 0 : i32
    %c0_i32_0 = arith.constant 0 : i32
    %c0_i32_1 = arith.constant 0 : i32
    return %arg0, %c0_i32, %c0_i32_0 : i32, i32, i32
  }
}

</mosaic_0001>

<llo_original>
// kernel: forward_pallas.1
$region0: #{forward_pallas.1}
  #allocation0 [shape = 'u32[]', space=smem, size = 0x4, offset = 0x4, fixed_abs, tag = 'smem constant byte address 0x4 - core index']
  #allocation1 [shape = 'u32[144,128]{1,0:T(1,128)}', space=vmem, size = 0x12000, scoped, tag = 'internal scratch']
  #allocation2 [shape = 'f32[1]{0:T(128)S(6)}', space=smem, size = 0x200, scoped, tag = 'scoped memory for forward_pallas.1']
  #allocation3 [shape = 'f32[1]{0:T(128)S(6)}', space=smem, size = 0x200, scoped, tag = 'scoped memory for forward_pallas.1']
  #allocation4 [shape = 'f32[1]{0:T(128)S(6)}', space=smem, size = 0x200, scoped, tag = 'scoped memory for forward_pallas.1']
  %s0 = inlined_call_operand.<no memory space> [shape: f32[1], index: 0, kind: input, shape index: {}]
  %s1 = inlined_call_operand.<no memory space> [shape: f32[1], index: 1, kind: input, shape index: {}]
  %s2 = inlined_call_operand.<no memory space> [shape: f32[1], index: 2, kind: input, shape index: {}]
  %s3 = inlined_call_operand.vmem [shape: f32[1,8,1], index: 3, kind: input, shape index: {}]
  %s4 = inlined_call_operand.vmem [shape: f32[1,512], index: 4, kind: input, shape index: {}]
  %s5 = inlined_call_operand.vmem [shape: f32[1,512], index: 5, kind: input, shape index: {}]
  %s6 = inlined_call_operand.vmem [shape: bf16[128,512], index: 6, kind: input, shape index: {}]
  %s7 = inlined_call_operand.vmem [shape: bf16[128,512], index: 7, kind: input, shape index: {}]
  %s8 = inlined_call_operand.vmem [shape: f32[1,128], index: 8, kind: input, shape index: {}]
  %s9 = inlined_call_operand.hbm [shape: f32[1,1,1], index: 9, kind: output, shape index: {}]
  %s10 = sld [smem:[#allocation0]]
  $region46: #{forward_pallas.1} parent=0
    _
  %s12 = ssub.s32 1, %s10
  %s13 = scalar_select 0, %s12, %s10
  %14 = sst [smem:[#allocation2]] %s0
  %15 = sst [smem:[#allocation3]] %s1
  %16 = sst [smem:[#allocation4]] %s2
  $region1: #{forward_pallas.1} parent=0
    #allocation5 [shape = 'u8[512]{0}', space=vmem, size = 0x400, scoped, tag = 'output window, operand 0, single buffered']
    #allocation6 [shape = 's32[1]{0}', space=sflag, size = 0x4, scoped, tag = 'scoped memory for forward_pallas.1']
    %17 = vsyncpa [#allocation6], 0
    // Predicated region
    $region2: #{forward_pallas.1} parent=1 // pred_check
      _
    $region3: #{forward_pallas.1} parent=1 // pred_check_branch
      %19 = sbr.rel (0) target = $region5
    $region4: #{forward_pallas.1} parent=1 // pred_region
      _
    $region5: #{forward_pallas.1} parent=1 // pred_fallthru
      _
    // Predicated region
    $region6: #{forward_pallas.1} parent=1 // pred_check
      _
    $region7: #{forward_pallas.1} parent=1 // pred_check_branch
      %21 = sbr.rel (0) target = $region9
    $region8: #{forward_pallas.1} parent=1 // pred_region
      _
    $region9: #{forward_pallas.1} parent=1 // pred_fallthru
      _
    // Predicated region
    $region10: #{forward_pallas.1} parent=1 // pred_check
      _
    $region11: #{forward_pallas.1} parent=1 // pred_check_branch
      %23 = sbr.rel (0) target = $region13
    $region12: #{forward_pallas.1} parent=1 // pred_region
      _
    $region13: #{forward_pallas.1} parent=1 // pred_fallthru
      _
    // Predicated region
    $region14: #{forward_pallas.1} parent=1 // pred_check
      _
    $region15: #{forward_pallas.1} parent=1 // pred_check_branch
      %25 = sbr.rel (0) target = $region17
    $region16: #{forward_pallas.1} parent=1 // pred_region
      _
    $region17: #{forward_pallas.1} parent=1 // pred_fallthru
      _
    // Predicated region
    $region18: #{forward_pallas.1} parent=1 // pred_check
      _
    $region19: #{forward_pallas.1} parent=1 // pred_check_branch
      %27 = sbr.rel (0) target = $region21
    $region20: #{forward_pallas.1} parent=1 // pred_region
      _
    $region21: #{forward_pallas.1} parent=1 // pred_fallthru
      _
    // Predicated region
    $region22: #{forward_pallas.1} parent=1 // pred_check
      _
    $region23: #{forward_pallas.1} parent=1 // pred_check_branch
      %29 = sbr.rel (0) target = $region25
    $region24: #{forward_pallas.1} parent=1 // pred_region
      _
    $region25: #{forward_pallas.1} parent=1 // pred_fallthru
      _
    // Predicated region
    $region26: #{forward_pallas.1} parent=1 // pred_check
      _
    $region27: #{forward_pallas.1} parent=1 // pred_check_branch
      %31 = sbr.rel (0) target = $region29
    $region28: #{forward_pallas.1} parent=1 // pred_region
      _
    $region29: #{forward_pallas.1} parent=1 // pred_fallthru
      _
    // Predicated region
    $region30: #{forward_pallas.1} parent=1 // pred_check
      _
    $region31: #{forward_pallas.1} parent=1 // pred_check_branch
      %33 = sbr.rel (0) target = $region33
    $region32: #{forward_pallas.1} parent=1 // pred_region
      _
    $region33: #{forward_pallas.1} parent=1 // pred_fallthru
      _
    // Predicated region
    $region34: #{forward_pallas.1} parent=1 // pred_check
      _
    $region35: #{forward_pallas.1} parent=1 // pred_check_branch
      %35 = sbr.rel (0) target = $region37
    $region36: #{forward_pallas.1} parent=1 // pred_region
      _
    $region37: #{forward_pallas.1} parent=1 // pred_fallthru
      _
    %v37 = vld [vmem:[%s3] sm:$0xff]
    %v38 = vld [vmem:[%s4] sm:$0xf]
    %40 = vset.pattern.permute.xlu0 0
    %41 = vperm.xlu0 %40, %v37
    %v42 = vpop.permute.xlu0 %41
    %v45 = vlaneseq
    %v46 = vshrl.u32 %v45, 7
    %v47 = vsub.s32 0, %v46
    %v48 = vrot.slane %v38, %v47
    %v49 = vlaneseq
    %v50 = vshrl.u32 %v49, 7
    %v51 = vsub.s32 1, %v50
    %v52 = vrot.slane %v38, %v51
    %v53 = vlaneseq
    %v54 = vshrl.u32 %v53, 7
    %v55 = vsub.s32 2, %v54
    %v56 = vrot.slane %v38, %v55
    %v57 = vlaneseq
    %v58 = vshrl.u32 %v57, 7
    %v59 = vsub.s32 3, %v58
    %v60 = vrot.slane %v38, %v59
    %v65 = vmul.f32 %v42, %v48
    %v66 = vmul.f32 %v42, %v52
    %v67 = vmul.f32 %v42, %v56
    %v68 = vmul.f32 %v42, %v60
    %v69 = vld [vmem:[%s5] sm:$0xf]
    %v71 = vlaneseq
    %v72 = vshrl.u32 %v71, 7
    %v73 = vsub.s32 0, %v72
    %v74 = vrot.slane %v69, %v73
    %v75 = vlaneseq
    %v76 = vshrl.u32 %v75, 7
    %v77 = vsub.s32 1, %v76
    %v78 = vrot.slane %v69, %v77
    %v79 = vlaneseq
    %v80 = vshrl.u32 %v79, 7
    %v81 = vsub.s32 2, %v80
    %v82 = vrot.slane %v69, %v81
    %v83 = vlaneseq
    %v84 = vshrl.u32 %v83, 7
    %v85 = vsub.s32 3, %v84
    %v86 = vrot.slane %v69, %v85
    %v91 = vadd.f32 %v65, %v74
    %v92 = vadd.f32 %v66, %v78
    %v93 = vadd.f32 %v67, %v82
    %v94 = vadd.f32 %v68, %v86
    %v95 = vld [vmem:[%s6] sm:$0xff]
    %v96 = vld [vmem:[%s6 + $0x8] sm:$0xff]
    %v97 = vld [vmem:[%s6 + $0x10] sm:$0xff]
    %v98 = vld [vmem:[%s6 + $0x18] sm:$0xff]
    %v99 = vld [vmem:[%s6 + $0x20] sm:$0xff]
    %v100 = vld [vmem:[%s6 + $0x28] sm:$0xff]
    %v101 = vld [vmem:[%s6 + $0x30] sm:$0xff]
    %v102 = vld [vmem:[%s6 + $0x38] sm:$0xff]
    %v103 = vld [vmem:[%s6 + $0x40] sm:$0xff]
    %v104 = vld [vmem:[%s6 + $0x48] sm:$0xff]
    %v105 = vld [vmem:[%s6 + $0x50] sm:$0xff]
    %v106 = vld [vmem:[%s6 + $0x58] sm:$0xff]
    %v107 = vld [vmem:[%s6 + $0x60] sm:$0xff]
    %v108 = vld [vmem:[%s6 + $0x68] sm:$0xff]
    %v109 = vld [vmem:[%s6 + $0x70] sm:$0xff]
    %v110 = vld [vmem:[%s6 + $0x78] sm:$0xff]
    %v111 = vld [vmem:[%s6 + $0x80] sm:$0xff]
    %v112 = vld [vmem:[%s6 + $0x88] sm:$0xff]
    %v113 = vld [vmem:[%s6 + $0x90] sm:$0xff]
    %v114 = vld [vmem:[%s6 + $0x98] sm:$0xff]
    %v115 = vld [vmem:[%s6 + $0xa0] sm:$0xff]
    %v116 = vld [vmem:[%s6 + $0xa8] sm:$0xff]
    %v117 = vld [vmem:[%s6 + $0xb0] sm:$0xff]
    %v118 = vld [vmem:[%s6 + $0xb8] sm:$0xff]
    %v119 = vld [vmem:[%s6 + $0xc0] sm:$0xff]
    %v120 = vld [vmem:[%s6 + $0xc8] sm:$0xff]
    %v121 = vld [vmem:[%s6 + $0xd0] sm:$0xff]
    %v122 = vld [vmem:[%s6 + $0xd8] sm:$0xff]
    %v123 = vld [vmem:[%s6 + $0xe0] sm:$0xff]
    %v124 = vld [vmem:[%s6 + $0xe8] sm:$0xff]
    %v125 = vld [vmem:[%s6 + $0xf0] sm:$0xff]
    %v126 = vld [vmem:[%s6 + $0xf8] sm:$0xff]
    %v159 = vunpack.c.l.b16 %v95
    %v160 = vunpack.c.h.b16 %v95
    %v161 = vunpack.c.l.b16 %v96
    %v162 = vunpack.c.h.b16 %v96
    %v163 = vunpack.c.l.b16 %v97
    %v164 = vunpack.c.h.b16 %v97
    %v165 = vunpack.c.l.b16 %v98
    %v166 = vunpack.c.h.b16 %v98
    %v167 = vunpack.c.l.b16 %v99
    %v168 = vunpack.c.h.b16 %v99
    %v169 = vunpack.c.l.b16 %v100
    %v170 = vunpack.c.h.b16 %v100
    %v171 = vunpack.c.l.b16 %v101
    %v172 = vunpack.c.h.b16 %v101
    %v173 = vunpack.c.l.b16 %v102
    %v174 = vunpack.c.h.b16 %v102
    %v175 = vunpack.c.l.b16 %v103
    %v176 = vunpack.c.h.b16 %v103
    %v177 = vunpack.c.l.b16 %v104
    %v178 = vunpack.c.h.b16 %v104
    %v179 = vunpack.c.l.b16 %v105
    %v180 = vunpack.c.h.b16 %v105
    %v181 = vunpack.c.l.b16 %v106
    %v182 = vunpack.c.h.b16 %v106
    %v183 = vunpack.c.l.b16 %v107
    %v184 = vunpack.c.h.b16 %v107
    %v185 = vunpack.c.l.b16 %v108
    %v186 = vunpack.c.h.b16 %v108
    %v187 = vunpack.c.l.b16 %v109
    %v188 = vunpack.c.h.b16 %v109
    %v189 = vunpack.c.l.b16 %v110
    %v190 = vunpack.c.h.b16 %v110
    %v191 = vunpack.c.l.b16 %v111
    %v192 = vunpack.c.h.b16 %v111
    %v193 = vunpack.c.l.b16 %v112
    %v194 = vunpack.c.h.b16 %v112
    %v195 = vunpack.c.l.b16 %v113
    %v196 = vunpack.c.h.b16 %v113
    %v197 = vunpack.c.l.b16 %v114
    %v198 = vunpack.c.h.b16 %v114
    %v199 = vunpack.c.l.b16 %v115
    %v200 = vunpack.c.h.b16 %v115
    %v201 = vunpack.c.l.b16 %v116
    %v202 = vunpack.c.h.b16 %v116
    %v203 = vunpack.c.l.b16 %v117
    %v204 = vunpack.c.h.b16 %v117
    %v205 = vunpack.c.l.b16 %v118
    %v206 = vunpack.c.h.b16 %v118
    %v207 = vunpack.c.l.b16 %v119
    %v208 = vunpack.c.h.b16 %v119
    %v209 = vunpack.c.l.b16 %v120
    %v210 = vunpack.c.h.b16 %v120
    %v211 = vunpack.c.l.b16 %v121
    %v212 = vunpack.c.h.b16 %v121
    %v213 = vunpack.c.l.b16 %v122
    %v214 = vunpack.c.h.b16 %v122
    %v215 = vunpack.c.l.b16 %v123
    %v216 = vunpack.c.h.b16 %v123
    %v217 = vunpack.c.l.b16 %v124
    %v218 = vunpack.c.h.b16 %v124
    %v219 = vunpack.c.l.b16 %v125
    %v220 = vunpack.c.h.b16 %v125
    %v221 = vunpack.c.l.b16 %v126
    %v222 = vunpack.c.h.b16 %v126
    %v223 = vpack.c.b16 %v163, %v159
    %v224 = vpack.c.b16 %v164, %v160
    %v225 = vpack.c.b16 %v165, %v161
    %v226 = vpack.c.b16 %v166, %v162
    %v227 = vpack.c.b16 %v171, %v167
    %v228 = vpack.c.b16 %v172, %v168
    %v229 = vpack.c.b16 %v173, %v169
    %v230 = vpack.c.b16 %v174, %v170
    %v231 = vpack.c.b16 %v179, %v175
    %v232 = vpack.c.b16 %v180, %v176
    %v233 = vpack.c.b16 %v181, %v177
    %v234 = vpack.c.b16 %v182, %v178
    %v235 = vpack.c.b16 %v187, %v183
    %v236 = vpack.c.b16 %v188, %v184
    %v237 = vpack.c.b16 %v189, %v185
    %v238 = vpack.c.b16 %v190, %v186
    %v239 = vpack.c.b16 %v195, %v191
    %v240 = vpack.c.b16 %v196, %v192
    %v241 = vpack.c.b16 %v197, %v193
    %v242 = vpack.c.b16 %v198, %v194
    %v243 = vpack.c.b16 %v203, %v199
    %v244 = vpack.c.b16 %v204, %v200
    %v245 = vpack.c.b16 %v205, %v201
    %v246 = vpack.c.b16 %v206, %v202
    %v247 = vpack.c.b16 %v211, %v207
    %v248 = vpack.c.b16 %v212, %v208
    %v249 = vpack.c.b16 %v213, %v209
    %v250 = vpack.c.b16 %v214, %v210
    %v251 = vpack.c.b16 %v219, %v215
    %v252 = vpack.c.b16 %v220, %v216
    %v253 = vpack.c.b16 %v221, %v217
    %v254 = vpack.c.b16 %v222, %v218
    %287 = vmatprep.subr.bf16.mxu0 %v224
    %288 = vmatpush1.bf16.msra.mxu0 %v223
    %289 = vmatprep.subr.bf16.mxu0 %v228
    %290 = vmatpush1.bf16.msra.mxu0 %v227
    %291 = vmatprep.subr.bf16.mxu0 %v232
    %292 = vmatpush1.bf16.msra.mxu0 %v231
    %293 = vmatprep.subr.bf16.mxu0 %v236
    %294 = vmatpush1.bf16.msra.mxu0 %v235
    %295 = vmatprep.subr.bf16.mxu0 %v240
    %296 = vmatpush1.bf16.msra.mxu0 %v239
    %297 = vmatprep.subr.bf16.mxu0 %v244
    %298 = vmatpush1.bf16.msra.mxu0 %v243
    %299 = vmatprep.subr.bf16.mxu0 %v248
    %300 = vmatpush1.bf16.msra.mxu0 %v247
    %301 = vmatprep.subr.bf16.mxu0 %v252
    %302 = vmatpush1.bf16.msra.mxu0 %v251
    %303 = vmatprep.subr.bf16.mxu0 0
    %304 = vmatpush1.bf16.msra.mxu0 0
    %305 = vmatprep.subr.bf16.mxu0 0
    %306 = vmatpush1.bf16.msra.mxu0 0
    %307 = vmatprep.subr.bf16.mxu0 0
    %308 = vmatpush1.bf16.msra.mxu0 0
    %309 = vmatprep.subr.bf16.mxu0 0
    %310 = vmatpush1.bf16.msra.mxu0 0
    %311 = vmatprep.subr.bf16.mxu0 0
    %312 = vmatpush1.bf16.msra.mxu0 0
    %313 = vmatprep.subr.bf16.mxu0 0
    %314 = vmatpush1.bf16.msra.mxu0 0
    %315 = vmatprep.subr.bf16.mxu0 0
    %316 = vmatpush1.bf16.msra.mxu0 0
    %317 = vmatprep.subr.bf16.mxu0 0
    %318 = vmatpush1.bf16.msra.mxu0 0
    %319 = vmatprep.mubr.bf16.mxu0 0
    %320 = vmatmul.mubr.bf16.gmra.mrb[0].mxu0 0
    %v321 = vpop.f32.mrb[0].mxu0
    %v322 = vadd.f32 0.0, %v321
    %v323 = vpop.f32.mrb[0].mxu0
    %v324 = vadd.f32 0.0, %v323
    %v325 = vpop.f32.mrb[0].mxu0
    %v326 = vpop.f32.mrb[0].mxu0
    %327 = vdwg.mxu0
    %328 = vmatprep.subr.bf16.mxu0 %v226
    %329 = vmatpush1.bf16.msra.mxu0 %v225
    %330 = vmatprep.subr.bf16.mxu0 %v230
    %331 = vmatpush1.bf16.msra.mxu0 %v229
    %332 = vmatprep.subr.bf16.mxu0 %v234
    %333 = vmatpush1.bf16.msra.mxu0 %v233
    %334 = vmatprep.subr.bf16.mxu0 %v238
    %335 = vmatpush1.bf16.msra.mxu0 %v237
    %336 = vmatprep.subr.bf16.mxu0 %v242
    %337 = vmatpush1.bf16.msra.mxu0 %v241
    %338 = vmatprep.subr.bf16.mxu0 %v246
    %339 = vmatpush1.bf16.msra.mxu0 %v245
    %340 = vmatprep.subr.bf16.mxu0 %v250
    %341 = vmatpush1.bf16.msra.mxu0 %v249
    %342 = vmatprep.subr.bf16.mxu0 %v254
    %343 = vmatpush1.bf16.msra.mxu0 %v253
    %344 = vmatprep.subr.bf16.mxu0 0
    %345 = vmatpush1.bf16.msra.mxu0 0
    %346 = vmatprep.subr.bf16.mxu0 0
    %347 = vmatpush1.bf16.msra.mxu0 0
    %348 = vmatprep.subr.bf16.mxu0 0
    %349 = vmatpush1.bf16.msra.mxu0 0
    %350 = vmatprep.subr.bf16.mxu0 0
    %351 = vmatpush1.bf16.msra.mxu0 0
    %352 = vmatprep.subr.bf16.mxu0 0
    %353 = vmatpush1.bf16.msra.mxu0 0
    %354 = vmatprep.subr.bf16.mxu0 0
    %355 = vmatpush1.bf16.msra.mxu0 0
    %356 = vmatprep.subr.bf16.mxu0 0
    %357 = vmatpush1.bf16.msra.mxu0 0
    %358 = vmatprep.subr.bf16.mxu0 0
    %359 = vmatpush1.bf16.msra.mxu0 0
    %360 = vmatprep.mubr.bf16.mxu0 0
    %361 = vmatmul.mubr.bf16.gmra.mrb[0].mxu0 0
    %v362 = vpop.f32.mrb[0].mxu0
    %v363 = vadd.f32 0.0, %v362
    %v364 = vpop.f32.mrb[0].mxu0
    %v365 = vadd.f32 0.0, %v364
    %v366 = vpop.f32.mrb[0].mxu0
    %v367 = vpop.f32.mrb[0].mxu0
    %368 = vdwg.mxu0
    %369 = vmatprep.subr.bf16.mxu0 %v224
    %370 = vmatpush1.bf16.msra.mxu0 %v223
    %371 = vmatprep.subr.bf16.mxu0 %v228
    %372 = vmatpush1.bf16.msra.mxu0 %v227
    %373 = vmatprep.subr.bf16.mxu0 %v232
    %374 = vmatpush1.bf16.msra.mxu0 %v231
    %375 = vmatprep.subr.bf16.mxu0 %v236
    %376 = vmatpush1.bf16.msra.mxu0 %v235
    %377 = vmatprep.subr.bf16.mxu0 %v240
    %378 = vmatpush1.bf16.msra.mxu0 %v239
    %379 = vmatprep.subr.bf16.mxu0 %v244
    %380 = vmatpush1.bf16.msra.mxu0 %v243
    %381 = vmatprep.subr.bf16.mxu0 %v248
    %382 = vmatpush1.bf16.msra.mxu0 %v247
    %383 = vmatprep.subr.bf16.mxu0 %v252
    %384 = vmatpush1.bf16.msra.mxu0 %v251
    %385 = vmatprep.subr.bf16.mxu0 0
    %386 = vmatpush1.bf16.msra.mxu0 0
    %387 = vmatprep.subr.bf16.mxu0 0
    %388 = vmatpush1.bf16.msra.mxu0 0
    %389 = vmatprep.subr.bf16.mxu0 0
    %390 = vmatpush1.bf16.msra.mxu0 0
    %391 = vmatprep.subr.bf16.mxu0 0
    %392 = vmatpush1.bf16.msra.mxu0 0
    %393 = vmatprep.subr.bf16.mxu0 0
    %394 = vmatpush1.bf16.msra.mxu0 0
    %395 = vmatprep.subr.bf16.mxu0 0
    %396 = vmatpush1.bf16.msra.mxu0 0
    %397 = vmatprep.subr.bf16.mxu0 0
    %398 = vmatpush1.bf16.msra.mxu0 0
    %399 = vmatprep.subr.bf16.mxu0 0
    %400 = vmatpush1.bf16.msra.mxu0 0
    %401 = vmatprep.mubr.bf16.mxu0 0
    %402 = vmatmul.mubr.bf16.gmra.mrb[0].mxu0 0
    %v403 = vpop.f32.mrb[0].mxu0
    %v404 = vadd.f32 %v322, %v403
    %v405 = vpop.f32.mrb[0].mxu0
    %v406 = vadd.f32 %v324, %v405
    %v407 = vpop.f32.mrb[0].mxu0
    %v408 = vpop.f32.mrb[0].mxu0
    %409 = vdwg.mxu0
    %410 = vmatprep.subr.bf16.mxu0 %v226
    %411 = vmatpush1.bf16.msra.mxu0 %v225
    %412 = vmatprep.subr.bf16.mxu0 %v230
    %413 = vmatpush1.bf16.msra.mxu0 %v229
    %414 = vmatprep.subr.bf16.mxu0 %v234
    %415 = vmatpush1.bf16.msra.mxu0 %v233
    %416 = vmatprep.subr.bf16.mxu0 %v238
    %417 = vmatpush1.bf16.msra.mxu0 %v237
    %418 = vmatprep.subr.bf16.mxu0 %v242
    %419 = vmatpush1.bf16.msra.mxu0 %v241
    %420 = vmatprep.subr.bf16.mxu0 %v246
    %421 = vmatpush1.bf16.msra.mxu0 %v245
    %422 = vmatprep.subr.bf16.mxu0 %v250
    %423 = vmatpush1.bf16.msra.mxu0 %v249
    %424 = vmatprep.subr.bf16.mxu0 %v254
    %425 = vmatpush1.bf16.msra.mxu0 %v253
    %426 = vmatprep.subr.bf16.mxu0 0
    %427 = vmatpush1.bf16.msra.mxu0 0
    %428 = vmatprep.subr.bf16.mxu0 0
    %429 = vmatpush1.bf16.msra.mxu0 0
    %430 = vmatprep.subr.bf16.mxu0 0
    %431 = vmatpush1.bf16.msra.mxu0 0
    %432 = vmatprep.subr.bf16.mxu0 0
    %433 = vmatpush1.bf16.msra.mxu0 0
    %434 = vmatprep.subr.bf16.mxu0 0
    %435 = vmatpush1.bf16.msra.mxu0 0
    %436 = vmatprep.subr.bf16.mxu0 0
    %437 = vmatpush1.bf16.msra.mxu0 0
    %438 = vmatprep.subr.bf16.mxu0 0
    %439 = vmatpush1.bf16.msra.mxu0 0
    %440 = vmatprep.subr.bf16.mxu0 0
    %441 = vmatpush1.bf16.msra.mxu0 0
    %442 = vmatprep.mubr.bf16.mxu0 0
    %443 = vmatmul.mubr.bf16.gmra.mrb[0].mxu0 0
    %v444 = vpop.f32.mrb[0].mxu0
    %v445 = vadd.f32 %v363, %v444
    %v446 = vpop.f32.mrb[0].mxu0
    %v447 = vadd.f32 %v365, %v446
    %v448 = vpop.f32.mrb[0].mxu0
    %v449 = vpop.f32.mrb[0].mxu0
    %450 = vdwg.mxu0
    %v451 = vld [vmem:[%s7] sm:$0xff]
    %v452 = vld [vmem:[%s7 + $0x8] sm:$0xff]
    %v453 = vld [vmem:[%s7 + $0x10] sm:$0xff]
    %v454 = vld [vmem:[%s7 + $0x18] sm:$0xff]
    %v455 = vld [vmem:[%s7 + $0x20] sm:$0xff]
    %v456 = vld [vmem:[%s7 + $0x28] sm:$0xff]
    %v457 = vld [vmem:[%s7 + $0x30] sm:$0xff]
    %v458 = vld [vmem:[%s7 + $0x38] sm:$0xff]
    %v459 = vld [vmem:[%s7 + $0x40] sm:$0xff]
    %v460 = vld [vmem:[%s7 + $0x48] sm:$0xff]
    %v461 = vld [vmem:[%s7 + $0x50] sm:$0xff]
    %v462 = vld [vmem:[%s7 + $0x58] sm:$0xff]
    %v463 = vld [vmem:[%s7 + $0x60] sm:$0xff]
    %v464 = vld [vmem:[%s7 + $0x68] sm:$0xff]
    %v465 = vld [vmem:[%s7 + $0x70] sm:$0xff]
    %v466 = vld [vmem:[%s7 + $0x78] sm:$0xff]
    %v467 = vld [vmem:[%s7 + $0x80] sm:$0xff]
    %v468 = vld [vmem:[%s7 + $0x88] sm:$0xff]
    %v469 = vld [vmem:[%s7 + $0x90] sm:$0xff]
    %v470 = vld [vmem:[%s7 + $0x98] sm:$0xff]
    %v471 = vld [vmem:[%s7 + $0xa0] sm:$0xff]
    %v472 = vld [vmem:[%s7 + $0xa8] sm:$0xff]
    %v473 = vld [vmem:[%s7 + $0xb0] sm:$0xff]
    %v474 = vld [vmem:[%s7 + $0xb8] sm:$0xff]
    %v475 = vld [vmem:[%s7 + $0xc0] sm:$0xff]
    %v476 = vld [vmem:[%s7 + $0xc8] sm:$0xff]
    %v477 = vld [vmem:[%s7 + $0xd0] sm:$0xff]
    %v478 = vld [vmem:[%s7 + $0xd8] sm:$0xff]
    %v479 = vld [vmem:[%s7 + $0xe0] sm:$0xff]
    %v480 = vld [vmem:[%s7 + $0xe8] sm:$0xff]
    %v481 = vld [vmem:[%s7 + $0xf0] sm:$0xff]
    %v482 = vld [vmem:[%s7 + $0xf8] sm:$0xff]
    %v515 = vunpack.c.l.b16 %v451
    %v516 = vunpack.c.h.b16 %v451
    %v517 = vunpack.c.l.b16 %v452
    %v518 = vunpack.c.h.b16 %v452
    %v519 = vunpack.c.l.b16 %v453
    %v520 = vunpack.c.h.b16 %v453
    %v521 = vunpack.c.l.b16 %v454
    %v522 = vunpack.c.h.b16 %v454
    %v523 = vunpack.c.l.b16 %v455
    %v524 = vunpack.c.h.b16 %v455
    %v525 = vunpack.c.l.b16 %v456
    %v526 = vunpack.c.h.b16 %v456
    %v527 = vunpack.c.l.b16 %v457
    %v528 = vunpack.c.h.b16 %v457
    %v529 = vunpack.c.l.b16 %v458
    %v530 = vunpack.c.h.b16 %v458
    %v531 = vunpack.c.l.b16 %v459
    %v532 = vunpack.c.h.b16 %v459
    %v533 = vunpack.c.l.b16 %v460
    %v534 = vunpack.c.h.b16 %v460
    %v535 = vunpack.c.l.b16 %v461
    %v536 = vunpack.c.h.b16 %v461
    %v537 = vunpack.c.l.b16 %v462
    %v538 = vunpack.c.h.b16 %v462
    %v539 = vunpack.c.l.b16 %v463
    %v540 = vunpack.c.h.b16 %v463
    %v541 = vunpack.c.l.b16 %v464
    %v542 = vunpack.c.h.b16 %v464
    %v543 = vunpack.c.l.b16 %v465
    %v544 = vunpack.c.h.b16 %v465
    %v545 = vunpack.c.l.b16 %v466
    %v546 = vunpack.c.h.b16 %v466
    %v547 = vunpack.c.l.b16 %v467
    %v548 = vunpack.c.h.b16 %v467
    %v549 = vunpack.c.l.b16 %v468
    %v550 = vunpack.c.h.b16 %v468
    %v551 = vunpack.c.l.b16 %v469
    %v552 = vunpack.c.h.b16 %v469
    %v553 = vunpack.c.l.b16 %v470
    %v554 = vunpack.c.h.b16 %v470
    %v555 = vunpack.c.l.b16 %v471
    %v556 = vunpack.c.h.b16 %v471
    %v557 = vunpack.c.l.b16 %v472
    %v558 = vunpack.c.h.b16 %v472
    %v559 = vunpack.c.l.b16 %v473
    %v560 = vunpack.c.h.b16 %v473
    %v561 = vunpack.c.l.b16 %v474
    %v562 = vunpack.c.h.b16 %v474
    %v563 = vunpack.c.l.b16 %v475
    %v564 = vunpack.c.h.b16 %v475
    %v565 = vunpack.c.l.b16 %v476
    %v566 = vunpack.c.h.b16 %v476
    %v567 = vunpack.c.l.b16 %v477
    %v568 = vunpack.c.h.b16 %v477
    %v569 = vunpack.c.l.b16 %v478
    %v570 = vunpack.c.h.b16 %v478
    %v571 = vunpack.c.l.b16 %v479
    %v572 = vunpack.c.h.b16 %v479
    %v573 = vunpack.c.l.b16 %v480
    %v574 = vunpack.c.h.b16 %v480
    %v575 = vunpack.c.l.b16 %v481
    %v576 = vunpack.c.h.b16 %v481
    %v577 = vunpack.c.l.b16 %v482
    %v578 = vunpack.c.h.b16 %v482
    %v579 = vpack.c.b16 %v519, %v515
    %v580 = vpack.c.b16 %v520, %v516
    %v581 = vpack.c.b16 %v521, %v517
    %v582 = vpack.c.b16 %v522, %v518
    %v583 = vpack.c.b16 %v527, %v523
    %v584 = vpack.c.b16 %v528, %v524
    %v585 = vpack.c.b16 %v529, %v525
    %v586 = vpack.c.b16 %v530, %v526
    %v587 = vpack.c.b16 %v535, %v531
    %v588 = vpack.c.b16 %v536, %v532
    %v589 = vpack.c.b16 %v537, %v533
    %v590 = vpack.c.b16 %v538, %v534
    %v591 = vpack.c.b16 %v543, %v539
    %v592 = vpack.c.b16 %v544, %v540
    %v593 = vpack.c.b16 %v545, %v541
    %v594 = vpack.c.b16 %v546, %v542
    %v595 = vpack.c.b16 %v551, %v547
    %v596 = vpack.c.b16 %v552, %v548
    %v597 = vpack.c.b16 %v553, %v549
    %v598 = vpack.c.b16 %v554, %v550
    %v599 = vpack.c.b16 %v559, %v555
    %v600 = vpack.c.b16 %v560, %v556
    %v601 = vpack.c.b16 %v561, %v557
    %v602 = vpack.c.b16 %v562, %v558
    %v603 = vpack.c.b16 %v567, %v563
    %v604 = vpack.c.b16 %v568, %v564
    %v605 = vpack.c.b16 %v569, %v565
    %v606 = vpack.c.b16 %v570, %v566
    %v607 = vpack.c.b16 %v575, %v571
    %v608 = vpack.c.b16 %v576, %v572
    %v609 = vpack.c.b16 %v577, %v573
    %v610 = vpack.c.b16 %v578, %v574
    %643 = vmatprep.subr.bf16.mxu0 %v580
    %644 = vmatpush1.bf16.msra.mxu0 %v579
    %645 = vmatprep.subr.bf16.mxu0 %v584
    %646 = vmatpush1.bf16.msra.mxu0 %v583
    %647 = vmatprep.subr.bf16.mxu0 %v588
    %648 = vmatpush1.bf16.msra.mxu0 %v587
    %649 = vmatprep.subr.bf16.mxu0 %v592
    %650 = vmatpush1.bf16.msra.mxu0 %v591
    %651 = vmatprep.subr.bf16.mxu0 %v596
    %652 = vmatpush1.bf16.msra.mxu0 %v595
    %653 = vmatprep.subr.bf16.mxu0 %v600
    %654 = vmatpush1.bf16.msra.mxu0 %v599
    %655 = vmatprep.subr.bf16.mxu0 %v604
    %656 = vmatpush1.bf16.msra.mxu0 %v603
    %657 = vmatprep.subr.bf16.mxu0 %v608
    %658 = vmatpush1.bf16.msra.mxu0 %v607
    %659 = vmatprep.subr.bf16.mxu0 0
    %660 = vmatpush1.bf16.msra.mxu0 0
    %661 = vmatprep.subr.bf16.mxu0 0
    %662 = vmatpush1.bf16.msra.mxu0 0
    %663 = vmatprep.subr.bf16.mxu0 0
    %664 = vmatpush1.bf16.msra.mxu0 0
    %665 = vmatprep.subr.bf16.mxu0 0
    %666 = vmatpush1.bf16.msra.mxu0 0
    %667 = vmatprep.subr.bf16.mxu0 0
    %668 = vmatpush1.bf16.msra.mxu0 0
    %669 = vmatprep.subr.bf16.mxu0 0
    %670 = vmatpush1.bf16.msra.mxu0 0
    %671 = vmatprep.subr.bf16.mxu0 0
    %672 = vmatpush1.bf16.msra.mxu0 0
    %673 = vmatprep.subr.bf16.mxu0 0
    %674 = vmatpush1.bf16.msra.mxu0 0
    %675 = vmatprep.mubr.bf16.mxu0 0
    %676 = vmatmul.mubr.bf16.gmra.mrb[0].mxu0 0
    %v677 = vpop.f32.mrb[0].mxu0
    %v678 = vadd.f32 0.0, %v677
    %v679 = vpop.f32.mrb[0].mxu0
    %v680 = vadd.f32 0.0, %v679
    %v681 = vpop.f32.mrb[0].mxu0
    %v682 = vpop.f32.mrb[0].mxu0
    %683 = vdwg.mxu0
    %684 = vmatprep.subr.bf16.mxu0 %v582
    %685 = vmatpush1.bf16.msra.mxu0 %v581
    %686 = vmatprep.subr.bf16.mxu0 %v586
    %687 = vmatpush1.bf16.msra.mxu0 %v585
    %688 = vmatprep.subr.bf16.mxu0 %v590
    %689 = vmatpush1.bf16.msra.mxu0 %v589
    %690 = vmatprep.subr.bf16.mxu0 %v594
    %691 = vmatpush1.bf16.msra.mxu0 %v593
    %692 = vmatprep.subr.bf16.mxu0 %v598
    %693 = vmatpush1.bf16.msra.mxu0 %v597
    %694 = vmatprep.subr.bf16.mxu0 %v602
    %695 = vmatpush1.bf16.msra.mxu0 %v601
    %696 = vmatprep.subr.bf16.mxu0 %v606
    %697 = vmatpush1.bf16.msra.mxu0 %v605
    %698 = vmatprep.subr.bf16.mxu0 %v610
    %699 = vmatpush1.bf16.msra.mxu0 %v609
    %700 = vmatprep.subr.bf16.mxu0 0
    %701 = vmatpush1.bf16.msra.mxu0 0
    %702 = vmatprep.subr.bf16.mxu0 0
    %703 = vmatpush1.bf16.msra.mxu0 0
    %704 = vmatprep.subr.bf16.mxu0 0
    %705 = vmatpush1.bf16.msra.mxu0 0
    %706 = vmatprep.subr.bf16.mxu0 0
    %707 = vmatpush1.bf16.msra.mxu0 0
    %708 = vmatprep.subr.bf16.mxu0 0
    %709 = vmatpush1.bf16.msra.mxu0 0
    %710 = vmatprep.subr.bf16.mxu0 0
    %711 = vmatpush1.bf16.msra.mxu0 0
    %712 = vmatprep.subr.bf16.mxu0 0
    %713 = vmatpush1.bf16.msra.mxu0 0
    %714 = vmatprep.subr.bf16.mxu0 0
    %715 = vmatpush1.bf16.msra.mxu0 0
    %716 = vmatprep.mubr.bf16.mxu0 0
    %717 = vmatmul.mubr.bf16.gmra.mrb[0].mxu0 0
    %v718 = vpop.f32.mrb[0].mxu0
    %v719 = vadd.f32 0.0, %v718
    %v720 = vpop.f32.mrb[0].mxu0
    %v721 = vadd.f32 0.0, %v720
    %v722 = vpop.f32.mrb[0].mxu0
    %v723 = vpop.f32.mrb[0].mxu0
    %724 = vdwg.mxu0
    %v725 = vadd.f32 %v404, %v678
    %v726 = vadd.f32 %v406, %v680
    %v727 = vadd.f32 %v445, %v719
    %v728 = vadd.f32 %v447, %v721
    %v729 = vadd.f32 %v725, %v91
    %v730 = vadd.f32 %v726, %v92
    %v731 = vadd.f32 %v727, %v93
    %v732 = vadd.f32 %v728, %v94
    %v733 = vtanh.pop %v729
    %v734 = vtanh.pop %v730
    %v735 = vtanh.pop %v731
    %v736 = vtanh.pop %v732
    %v737 = vadd.f32 %v734, 1.0
    %v738 = vmul.f32 %v737, 0.0
    %v739 = vadd.f32 %v733, 1.0
    %v740 = vmul.f32 %v739, %v735
    %v741 = vadd.f32 %v738, %v740
    %v742 = vmul.f32 %v741, 0.5
    %v743 = vmul.f32 %v736, 0.5
    %v744 = vadd.f32 %v743, 0.5
    %v745 = vtanh.pop %v742
    %v746 = vmul.f32 %v744, %v745
    %v747 = vpack.c.bf16 %v746, %v746
    %v748 = vunpack.c.l.bf16 %v747
    %v749 = vsub.f32 %v746, %v748
    %v750 = vpack.c.bf16 %v749, %v749
    %751 = vmatprep.subr.bf16.mxu0 %v224
    %752 = vmatpush1.bf16.msra.mxu0 %v223
    %753 = vmatprep.subr.bf16.mxu0 %v228
    %754 = vmatpush1.bf16.msra.mxu0 %v227
    %755 = vmatprep.subr.bf16.mxu0 %v232
    %756 = vmatpush1.bf16.msra.mxu0 %v231
    %757 = vmatprep.subr.bf16.mxu0 %v236
    %758 = vmatpush1.bf16.msra.mxu0 %v235
    %759 = vmatprep.subr.bf16.mxu0 %v240
    %760 = vmatpush1.bf16.msra.mxu0 %v239
    %761 = vmatprep.subr.bf16.mxu0 %v244
    %762 = vmatpush1.bf16.msra.mxu0 %v243
    %763 = vmatprep.subr.bf16.mxu0 %v248
    %764 = vmatpush1.bf16.msra.mxu0 %v247
    %765 = vmatprep.subr.bf16.mxu0 %v252
    %766 = vmatpush1.bf16.msra.mxu0 %v251
    %767 = vmatprep.subr.bf16.mxu0 0
    %768 = vmatpush1.bf16.msra.mxu0 0
    %769 = vmatprep.subr.bf16.mxu0 0
    %770 = vmatpush1.bf16.msra.mxu0 0
    %771 = vmatprep.subr.bf16.mxu0 0
    %772 = vmatpush1.bf16.msra.mxu0 0
    %773 = vmatprep.subr.bf16.mxu0 0
    %774 = vmatpush1.bf16.msra.mxu0 0
    %775 = vmatprep.subr.bf16.mxu0 0
    %776 = vmatpush1.bf16.msra.mxu0 0
    %777 = vmatprep.subr.bf16.mxu0 0
    %778 = vmatpush1.bf16.msra.mxu0 0
    %779 = vmatprep.subr.bf16.mxu0 0
    %780 = vmatpush1.bf16.msra.mxu0 0
    %781 = vmatprep.subr.bf16.mxu0 0
    %782 = vmatpush1.bf16.msra.mxu0 0
    %783 = vmatprep.mubr.bf16.mxu0 0
    %784 = vmatmul.mubr.bf16.gmra.mrb[0].mxu0 %v750
    %v785 = vpop.f32.mrb[0].mxu0
    %v786 = vadd.f32 0.0, %v785
    %v787 = vpop.f32.mrb[0].mxu0
    %v788 = vadd.f32 0.0, %v787
    %v789 = vpop.f32.mrb[0].mxu0
    %v790 = vpop.f32.mrb[0].mxu0
    %791 = vdwg.mxu0
    %792 = vmatprep.subr.bf16.mxu0 %v226
    %793 = vmatpush1.bf16.msra.mxu0 %v225
    %794 = vmatprep.subr.bf16.mxu0 %v230
    %795 = vmatpush1.bf16.msra.mxu0 %v229
    %796 = vmatprep.subr.bf16.mxu0 %v234
    %797 = vmatpush1.bf16.msra.mxu0 %v233
    %798 = vmatprep.subr.bf16.mxu0 %v238
    %799 = vmatpush1.bf16.msra.mxu0 %v237
    %800 = vmatprep.subr.bf16.mxu0 %v242
    %801 = vmatpush1.bf16.msra.mxu0 %v241
    %802 = vmatprep.subr.bf16.mxu0 %v246
    %803 = vmatpush1.bf16.msra.mxu0 %v245
    %804 = vmatprep.subr.bf16.mxu0 %v250
    %805 = vmatpush1.bf16.msra.mxu0 %v249
    %806 = vmatprep.subr.bf16.mxu0 %v254
    %807 = vmatpush1.bf16.msra.mxu0 %v253
    %808 = vmatprep.subr.bf16.mxu0 0
    %809 = vmatpush1.bf16.msra.mxu0 0
    %810 = vmatprep.subr.bf16.mxu0 0
    %811 = vmatpush1.bf16.msra.mxu0 0
    %812 = vmatprep.subr.bf16.mxu0 0
    %813 = vmatpush1.bf16.msra.mxu0 0
    %814 = vmatprep.subr.bf16.mxu0 0
    %815 = vmatpush1.bf16.msra.mxu0 0
    %816 = vmatprep.subr.bf16.mxu0 0
    %817 = vmatpush1.bf16.msra.mxu0 0
    %818 = vmatprep.subr.bf16.mxu0 0
    %819 = vmatpush1.bf16.msra.mxu0 0
    %820 = vmatprep.subr.bf16.mxu0 0
    %821 = vmatpush1.bf16.msra.mxu0 0
    %822 = vmatprep.subr.bf16.mxu0 0
    %823 = vmatpush1.bf16.msra.mxu0 0
    %824 = vmatprep.mubr.bf16.mxu0 0
    %825 = vmatmul.mubr.bf16.gmra.mrb[0].mxu0 %v750
    %v826 = vpop.f32.mrb[0].mxu0
    %v827 = vadd.f32 0.0, %v826
    %v828 = vpop.f32.mrb[0].mxu0
    %v829 = vadd.f32 0.0, %v828
    %v830 = vpop.f32.mrb[0].mxu0
    %v831 = vpop.f32.mrb[0].mxu0
    %832 = vdwg.mxu0
    %833 = vmatprep.subr.bf16.mxu0 %v224
    %834 = vmatpush1.bf16.msra.mxu0 %v223
    %835 = vmatprep.subr.bf16.mxu0 %v228
    %836 = vmatpush1.bf16.msra.mxu0 %v227
    %837 = vmatprep.subr.bf16.mxu0 %v232
    %838 = vmatpush1.bf16.msra.mxu0 %v231
    %839 = vmatprep.subr.bf16.mxu0 %v236
    %840 = vmatpush1.bf16.msra.mxu0 %v235
    %841 = vmatprep.subr.bf16.mxu0 %v240
    %842 = vmatpush1.bf16.msra.mxu0 %v239
    %843 = vmatprep.subr.bf16.mxu0 %v244
    %844 = vmatpush1.bf16.msra.mxu0 %v243
    %845 = vmatprep.subr.bf16.mxu0 %v248
    %846 = vmatpush1.bf16.msra.mxu0 %v247
    %847 = vmatprep.subr.bf16.mxu0 %v252
    %848 = vmatpush1.bf16.msra.mxu0 %v251
    %849 = vmatprep.subr.bf16.mxu0 0
    %850 = vmatpush1.bf16.msra.mxu0 0
    %851 = vmatprep.subr.bf16.mxu0 0
    %852 = vmatpush1.bf16.msra.mxu0 0
    %853 = vmatprep.subr.bf16.mxu0 0
    %854 = vmatpush1.bf16.msra.mxu0 0
    %855 = vmatprep.subr.bf16.mxu0 0
    %856 = vmatpush1.bf16.msra.mxu0 0
    %857 = vmatprep.subr.bf16.mxu0 0
    %858 = vmatpush1.bf16.msra.mxu0 0
    %859 = vmatprep.subr.bf16.mxu0 0
    %860 = vmatpush1.bf16.msra.mxu0 0
    %861 = vmatprep.subr.bf16.mxu0 0
    %862 = vmatpush1.bf16.msra.mxu0 0
    %863 = vmatprep.subr.bf16.mxu0 0
    %864 = vmatpush1.bf16.msra.mxu0 0
    %865 = vmatprep.mubr.bf16.mxu0 0
    %866 = vmatmul.mubr.bf16.gmra.mrb[0].mxu0 %v747
    %v867 = vpop.f32.mrb[0].mxu0
    %v868 = vadd.f32 %v786, %v867
    %v869 = vpop.f32.mrb[0].mxu0
    %v870 = vadd.f32 %v788, %v869
    %v871 = vpop.f32.mrb[0].mxu0
    %v872 = vpop.f32.mrb[0].mxu0
    %873 = vdwg.mxu0
    %874 = vmatprep.subr.bf16.mxu0 %v226
    %875 = vmatpush1.bf16.msra.mxu0 %v225
    %876 = vmatprep.subr.bf16.mxu0 %v230
    %877 = vmatpush1.bf16.msra.mxu0 %v229
    %878 = vmatprep.subr.bf16.mxu0 %v234
    %879 = vmatpush1.bf16.msra.mxu0 %v233
    %880 = vmatprep.subr.bf16.mxu0 %v238
    %881 = vmatpush1.bf16.msra.mxu0 %v237
    %882 = vmatprep.subr.bf16.mxu0 %v242
    %883 = vmatpush1.bf16.msra.mxu0 %v241
    %884 = vmatprep.subr.bf16.mxu0 %v246
    %885 = vmatpush1.bf16.msra.mxu0 %v245
    %886 = vmatprep.subr.bf16.mxu0 %v250
    %887 = vmatpush1.bf16.msra.mxu0 %v249
    %888 = vmatprep.subr.bf16.mxu0 %v254
    %889 = vmatpush1.bf16.msra.mxu0 %v253
    %890 = vmatprep.subr.bf16.mxu0 0
    %891 = vmatpush1.bf16.msra.mxu0 0
    %892 = vmatprep.subr.bf16.mxu0 0
    %893 = vmatpush1.bf16.msra.mxu0 0
    %894 = vmatprep.subr.bf16.mxu0 0
    %895 = vmatpush1.bf16.msra.mxu0 0
    %896 = vmatprep.subr.bf16.mxu0 0
    %897 = vmatpush1.bf16.msra.mxu0 0
    %898 = vmatprep.subr.bf16.mxu0 0
    %899 = vmatpush1.bf16.msra.mxu0 0
    %900 = vmatprep.subr.bf16.mxu0 0
    %901 = vmatpush1.bf16.msra.mxu0 0
    %902 = vmatprep.subr.bf16.mxu0 0
    %903 = vmatpush1.bf16.msra.mxu0 0
    %904 = vmatprep.subr.bf16.mxu0 0
    %905 = vmatpush1.bf16.msra.mxu0 0
    %906 = vmatprep.mubr.bf16.mxu0 0
    %907 = vmatmul.mubr.bf16.gmra.mrb[0].mxu0 %v747
    %v908 = vpop.f32.mrb[0].mxu0
    %v909 = vadd.f32 %v827, %v908
    %v910 = vpop.f32.mrb[0].mxu0
    %v911 = vadd.f32 %v829, %v910
    %v912 = vpop.f32.mrb[0].mxu0
    %v913 = vpop.f32.mrb[0].mxu0
    %914 = vdwg.mxu0
    %915 = vmatprep.subr.bf16.mxu0 %v580
    %916 = vmatpush1.bf16.msra.mxu0 %v579
    %917 = vmatprep.subr.bf16.mxu0 %v584
    %918 = vmatpush1.bf16.msra.mxu0 %v583
    %919 = vmatprep.subr.bf16.mxu0 %v588
    %920 = vmatpush1.bf16.msra.mxu0 %v587
    %921 = vmatprep.subr.bf16.mxu0 %v592
    %922 = vmatpush1.bf16.msra.mxu0 %v591
    %923 = vmatprep.subr.bf16.mxu0 %v596
    %924 = vmatpush1.bf16.msra.mxu0 %v595
    %925 = vmatprep.subr.bf16.mxu0 %v600
    %926 = vmatpush1.bf16.msra.mxu0 %v599
    %927 = vmatprep.subr.bf16.mxu0 %v604
    %928 = vmatpush1.bf16.msra.mxu0 %v603
    %929 = vmatprep.subr.bf16.mxu0 %v608
    %930 = vmatpush1.bf16.msra.mxu0 %v607
    %931 = vmatprep.subr.bf16.mxu0 0
    %932 = vmatpush1.bf16.msra.mxu0 0
    %933 = vmatprep.subr.bf16.mxu0 0
    %934 = vmatpush1.bf16.msra.mxu0 0
    %935 = vmatprep.subr.bf16.mxu0 0
    %936 = vmatpush1.bf16.msra.mxu0 0
    %937 = vmatprep.subr.bf16.mxu0 0
    %938 = vmatpush1.bf16.msra.mxu0 0
    %939 = vmatprep.subr.bf16.mxu0 0
    %940 = vmatpush1.bf16.msra.mxu0 0
    %941 = vmatprep.subr.bf16.mxu0 0
    %942 = vmatpush1.bf16.msra.mxu0 0
    %943 = vmatprep.subr.bf16.mxu0 0
    %944 = vmatpush1.bf16.msra.mxu0 0
    %945 = vmatprep.subr.bf16.mxu0 0
    %946 = vmatpush1.bf16.msra.mxu0 0
    %947 = vmatprep.mubr.bf16.mxu0 0
    %948 = vmatmul.mubr.bf16.gmra.mrb[0].mxu0 %v747
    %v949 = vpop.f32.mrb[0].mxu0
    %v950 = vadd.f32 0.0, %v949
    %v951 = vpop.f32.mrb[0].mxu0
    %v952 = vadd.f32 0.0, %v951
    %v953 = vpop.f32.mrb[0].mxu0
    %v954 = vpop.f32.mrb[0].mxu0
    %955 = vdwg.mxu0
    %956 = vmatprep.subr.bf16.mxu0 %v582
    %957 = vmatpush1.bf16.msra.mxu0 %v581
    %958 = vmatprep.subr.bf16.mxu0 %v586
    %959 = vmatpush1.bf16.msra.mxu0 %v585
    %960 = vmatprep.subr.bf16.mxu0 %v590
    %961 = vmatpush1.bf16.msra.mxu0 %v589
    %962 = vmatprep.subr.bf16.mxu0 %v594
    %963 = vmatpush1.bf16.msra.mxu0 %v593
    %964 = vmatprep.subr.bf16.mxu0 %v598
    %965 = vmatpush1.bf16.msra.mxu0 %v597
    %966 = vmatprep.subr.bf16.mxu0 %v602
    %967 = vmatpush1.bf16.msra.mxu0 %v601
    %968 = vmatprep.subr.bf16.mxu0 %v606
    %969 = vmatpush1.bf16.msra.mxu0 %v605
    %970 = vmatprep.subr.bf16.mxu0 %v610
    %971 = vmatpush1.bf16.msra.mxu0 %v609
    %972 = vmatprep.subr.bf16.mxu0 0
    %973 = vmatpush1.bf16.msra.mxu0 0
    %974 = vmatprep.subr.bf16.mxu0 0
    %975 = vmatpush1.bf16.msra.mxu0 0
    %976 = vmatprep.subr.bf16.mxu0 0
    %977 = vmatpush1.bf16.msra.mxu0 0
    %978 = vmatprep.subr.bf16.mxu0 0
    %979 = vmatpush1.bf16.msra.mxu0 0
    %980 = vmatprep.subr.bf16.mxu0 0
    %981 = vmatpush1.bf16.msra.mxu0 0
    %982 = vmatprep.subr.bf16.mxu0 0
    %983 = vmatpush1.bf16.msra.mxu0 0
    %984 = vmatprep.subr.bf16.mxu0 0
    %985 = vmatpush1.bf16.msra.mxu0 0
    %986 = vmatprep.subr.bf16.mxu0 0
    %987 = vmatpush1.bf16.msra.mxu0 0
    %988 = vmatprep.mubr.bf16.mxu0 0
    %989 = vmatmul.mubr.bf16.gmra.mrb[0].mxu0 %v747
    %v990 = vpop.f32.mrb[0].mxu0
    %v991 = vadd.f32 0.0, %v990
    %v992 = vpop.f32.mrb[0].mxu0
    %v993 = vadd.f32 0.0, %v992
    %v994 = vpop.f32.mrb[0].mxu0
    %v995 = vpop.f32.mrb[0].mxu0
    %996 = vdwg.mxu0
    %v997 = vadd.f32 %v868, %v950
    %v998 = vadd.f32 %v870, %v952
    %v999 = vadd.f32 %v909, %v991
    %v1000 = vadd.f32 %v911, %v993
    %v1005 = vrot.slane %v91, 1
    %v1006 = vrot.slane %v92, 1
    %v1007 = vrot.slane %v93, 1
    %v1008 = vrot.slane %v94, 1
    %v1013 = vadd.f32 %v997, %v1005
    %v1014 = vadd.f32 %v998, %v1006
    %v1015 = vadd.f32 %v999, %v1007
    %v1016 = vadd.f32 %v1000, %v1008
    %v1017 = vtanh.pop %v1013
    %v1018 = vtanh.pop %v1014
    %v1019 = vtanh.pop %v1015
    %v1020 = vtanh.pop %v1016
    %v1021 = vadd.f32 %v1018, 1.0
    %v1022 = vmul.f32 %v1021, %v742
    %v1023 = vadd.f32 %v1017, 1.0
    %v1024 = vmul.f32 %v1023, %v1019
    %v1025 = vadd.f32 %v1022, %v1024
    %v1026 = vmul.f32 %v1025, 0.5
    %v1027 = vmul.f32 %v1020, 0.5
    %v1028 = vadd.f32 %v1027, 0.5
    %v1029 = vtanh.pop %v1026
    %v1030 = vmul.f32 %v1028, %v1029
    %v1031 = vpack.c.bf16 %v1030, %v1030
    %v1032 = vunpack.c.l.bf16 %v1031
    %v1033 = vsub.f32 %v1030, %v1032
    %v1034 = vpack.c.bf16 %v1033, %v1033
    %1035 = vmatprep.subr.bf16.mxu0 %v224
    %1036 = vmatpush1.bf16.msra.mxu0 %v223
    %1037 = vmatprep.subr.bf16.mxu0 %v228
    %1038 = vmatpush1.bf16.msra.mxu0 %v227
    %1039 = vmatprep.subr.bf16.mxu0 %v232
    %1040 = vmatpush1.bf16.msra.mxu0 %v231
    %1041 = vmatprep.subr.bf16.mxu0 %v236
    %1042 = vmatpush1.bf16.msra.mxu0 %v235
    %1043 = vmatprep.subr.bf16.mxu0 %v240
    %1044 = vmatpush1.bf16.msra.mxu0 %v239
    %1045 = vmatprep.subr.bf16.mxu0 %v244
    %1046 = vmatpush1.bf16.msra.mxu0 %v243
    %1047 = vmatprep.subr.bf16.mxu0 %v248
    %1048 = vmatpush1.bf16.msra.mxu0 %v247
    %1049 = vmatprep.subr.bf16.mxu0 %v252
    %1050 = vmatpush1.bf16.msra.mxu0 %v251
    %1051 = vmatprep.subr.bf16.mxu0 0
    %1052 = vmatpush1.bf16.msra.mxu0 0
    %1053 = vmatprep.subr.bf16.mxu0 0
    %1054 = vmatpush1.bf16.msra.mxu0 0
    %1055 = vmatprep.subr.bf16.mxu0 0
    %1056 = vmatpush1.bf16.msra.mxu0 0
    %1057 = vmatprep.subr.bf16.mxu0 0
    %1058 = vmatpush1.bf16.msra.mxu0 0
    %1059 = vmatprep.subr.bf16.mxu0 0
    %1060 = vmatpush1.bf16.msra.mxu0 0
    %1061 = vmatprep.subr.bf16.mxu0 0
    %1062 = vmatpush1.bf16.msra.mxu0 0
    %1063 = vmatprep.subr.bf16.mxu0 0
    %1064 = vmatpush1.bf16.msra.mxu0 0
    %1065 = vmatprep.subr.bf16.mxu0 0
    %1066 = vmatpush1.bf16.msra.mxu0 0
    %1067 = vmatprep.mubr.bf16.mxu0 0
    %1068 = vmatmul.mubr.bf16.gmra.mrb[0].mxu0 %v1034
    %v1069 = vpop.f32.mrb[0].mxu0
    %v1070 = vadd.f32 0.0, %v1069
    %v1071 = vpop.f32.mrb[0].mxu0
    %v1072 = vadd.f32 0.0, %v1071
    %v1073 = vpop.f32.mrb[0].mxu0
    %v1074 = vpop.f32.mrb[0].mxu0
    %1075 = vdwg.mxu0
    %1076 = vmatprep.subr.bf16.mxu0 %v226
    %1077 = vmatpush1.bf16.msra.mxu0 %v225
    %1078 = vmatprep.subr.bf16.mxu0 %v230
    %1079 = vmatpush1.bf16.msra.mxu0 %v229
    %1080 = vmatprep.subr.bf16.mxu0 %v234
    %1081 = vmatpush1.bf16.msra.mxu0 %v233
    %1082 = vmatprep.subr.bf16.mxu0 %v238
    %1083 = vmatpush1.bf16.msra.mxu0 %v237
    %1084 = vmatprep.subr.bf16.mxu0 %v242
    %1085 = vmatpush1.bf16.msra.mxu0 %v241
    %1086 = vmatprep.subr.bf16.mxu0 %v246
    %1087 = vmatpush1.bf16.msra.mxu0 %v245
    %1088 = vmatprep.subr.bf16.mxu0 %v250
    %1089 = vmatpush1.bf16.msra.mxu0 %v249
    %1090 = vmatprep.subr.bf16.mxu0 %v254
    %1091 = vmatpush1.bf16.msra.mxu0 %v253
    %1092 = vmatprep.subr.bf16.mxu0 0
    %1093 = vmatpush1.bf16.msra.mxu0 0
    %1094 = vmatprep.subr.bf16.mxu0 0
    %1095 = vmatpush1.bf16.msra.mxu0 0
    %1096 = vmatprep.subr.bf16.mxu0 0
    %1097 = vmatpush1.bf16.msra.mxu0 0
    %1098 = vmatprep.subr.bf16.mxu0 0
    %1099 = vmatpush1.bf16.msra.mxu0 0
    %1100 = vmatprep.subr.bf16.mxu0 0
    %1101 = vmatpush1.bf16.msra.mxu0 0
    %1102 = vmatprep.subr.bf16.mxu0 0
    %1103 = vmatpush1.bf16.msra.mxu0 0
    %1104 = vmatprep.subr.bf16.mxu0 0
    %1105 = vmatpush1.bf16.msra.mxu0 0
    %1106 = vmatprep.subr.bf16.mxu0 0
    %1107 = vmatpush1.bf16.msra.mxu0 0
    %1108 = vmatprep.mubr.bf16.mxu0 0
    %1109 = vmatmul.mubr.bf16.gmra.mrb[0].mxu0 %v1034
    %v1110 = vpop.f32.mrb[0].mxu0
    %v1111 = vadd.f32 0.0, %v1110
    %v1112 = vpop.f32.mrb[0].mxu0
    %v1113 = vadd.f32 0.0, %v1112
    %v1114 = vpop.f32.mrb[0].mxu0
    %v1115 = vpop.f32.mrb[0].mxu0
    %1116 = vdwg.mxu0
    %1117 = vmatprep.subr.bf16.mxu0 %v224
    %1118 = vmatpush1.bf16.msra.mxu0 %v223
    %1119 = vmatprep.subr.bf16.mxu0 %v228
    %1120 = vmatpush1.bf16.msra.mxu0 %v227
    %1121 = vmatprep.subr.bf16.mxu0 %v232
    %1122 = vmatpush1.bf16.msra.mxu0 %v231
    %1123 = vmatprep.subr.bf16.mxu0 %v236
    %1124 = vmatpush1.bf16.msra.mxu0 %v235
    %1125 = vmatprep.subr.bf16.mxu0 %v240
    %1126 = vmatpush1.bf16.msra.mxu0 %v239
    %1127 = vmatprep.subr.bf16.mxu0 %v244
    %1128 = vmatpush1.bf16.msra.mxu0 %v243
    %1129 = vmatprep.subr.bf16.mxu0 %v248
    %1130 = vmatpush1.bf16.msra.mxu0 %v247
    %1131 = vmatprep.subr.bf16.mxu0 %v252
    %1132 = vmatpush1.bf16.msra.mxu0 %v251
    %1133 = vmatprep.subr.bf16.mxu0 0
    %1134 = vmatpush1.bf16.msra.mxu0 0
    %1135 = vmatprep.subr.bf16.mxu0 0
    %1136 = vmatpush1.bf16.msra.mxu0 0
    %1137 = vmatprep.subr.bf16.mxu0 0
    %1138 = vmatpush1.bf16.msra.mxu0 0
    %1139 = vmatprep.subr.bf16.mxu0 0
    %1140 = vmatpush1.bf16.msra.mxu0 0
    %1141 = vmatprep.subr.bf16.mxu0 0
    %1142 = vmatpush1.bf16.msra.mxu0 0
    %1143 = vmatprep.subr.bf16.mxu0 0
    %1144 = vmatpush1.bf16.msra.mxu0 0
    %1145 = vmatprep.subr.bf16.mxu0 0
    %1146 = vmatpush1.bf16.msra.mxu0 0
    %1147 = vmatprep.subr.bf16.mxu0 0
    %1148 = vmatpush1.bf16.msra.mxu0 0
    %1149 = vmatprep.mubr.bf16.mxu0 0
    %1150 = vmatmul.mubr.bf16.gmra.mrb[0].mxu0 %v1031
    %v1151 = vpop.f32.mrb[0].mxu0
    %v1152 = vadd.f32 %v1070, %v1151
    %v1153 = vpop.f32.mrb[0].mxu0
    %v1154 = vadd.f32 %v1072, %v1153
    %v1155 = vpop.f32.mrb[0].mxu0
    %v1156 = vpop.f32.mrb[0].mxu0
    %1157 = vdwg.mxu0
    %1158 = vmatprep.subr.bf16.mxu0 %v226
    %1159 = vmatpush1.bf16.msra.mxu0 %v225
    %1160 = vmatprep.subr.bf16.mxu0 %v230
    %1161 = vmatpush1.bf16.msra.mxu0 %v229
    %1162 = vmatprep.subr.bf16.mxu0 %v234
    %1163 = vmatpush1.bf16.msra.mxu0 %v233
    %1164 = vmatprep.subr.bf16.mxu0 %v238
    %1165 = vmatpush1.bf16.msra.mxu0 %v237
    %1166 = vmatprep.subr.bf16.mxu0 %v242
    %1167 = vmatpush1.bf16.msra.mxu0 %v241
    %1168 = vmatprep.subr.bf16.mxu0 %v246
    %1169 = vmatpush1.bf16.msra.mxu0 %v245
    %1170 = vmatprep.subr.bf16.mxu0 %v250
    %1171 = vmatpush1.bf16.msra.mxu0 %v249
    %1172 = vmatprep.subr.bf16.mxu0 %v254
    %1173 = vmatpush1.bf16.msra.mxu0 %v253
    %1174 = vmatprep.subr.bf16.mxu0 0
    %1175 = vmatpush1.bf16.msra.mxu0 0
    %1176 = vmatprep.subr.bf16.mxu0 0
    %1177 = vmatpush1.bf16.msra.mxu0 0
    %1178 = vmatprep.subr.bf16.mxu0 0
    %1179 = vmatpush1.bf16.msra.mxu0 0
    %1180 = vmatprep.subr.bf16.mxu0 0
    %1181 = vmatpush1.bf16.msra.mxu0 0
    %1182 = vmatprep.subr.bf16.mxu0 0
    %1183 = vmatpush1.bf16.msra.mxu0 0
    %1184 = vmatprep.subr.bf16.mxu0 0
    %1185 = vmatpush1.bf16.msra.mxu0 0
    %1186 = vmatprep.subr.bf16.mxu0 0
    %1187 = vmatpush1.bf16.msra.mxu0 0
    %1188 = vmatprep.subr.bf16.mxu0 0
    %1189 = vmatpush1.bf16.msra.mxu0 0
    %1190 = vmatprep.mubr.bf16.mxu0 0
    %1191 = vmatmul.mubr.bf16.gmra.mrb[0].mxu0 %v1031
    %v1192 = vpop.f32.mrb[0].mxu0
    %v1193 = vadd.f32 %v1111, %v1192
    %v1194 = vpop.f32.mrb[0].mxu0
    %v1195 = vadd.f32 %v1113, %v1194
    %v1196 = vpop.f32.mrb[0].mxu0
    %v1197 = vpop.f32.mrb[0].mxu0
    %1198 = vdwg.mxu0
    %1199 = vmatprep.subr.bf16.mxu0 %v580
    %1200 = vmatpush1.bf16.msra.mxu0 %v579
    %1201 = vmatprep.subr.bf16.mxu0 %v584
    %1202 = vmatpush1.bf16.msra.mxu0 %v583
    %1203 = vmatprep.subr.bf16.mxu0 %v588
    %1204 = vmatpush1.bf16.msra.mxu0 %v587
    %1205 = vmatprep.subr.bf16.mxu0 %v592
    %1206 = vmatpush1.bf16.msra.mxu0 %v591
    %1207 = vmatprep.subr.bf16.mxu0 %v596
    %1208 = vmatpush1.bf16.msra.mxu0 %v595
    %1209 = vmatprep.subr.bf16.mxu0 %v600
    %1210 = vmatpush1.bf16.msra.mxu0 %v599
    %1211 = vmatprep.subr.bf16.mxu0 %v604
    %1212 = vmatpush1.bf16.msra.mxu0 %v603
    %1213 = vmatprep.subr.bf16.mxu0 %v608
    %1214 = vmatpush1.bf16.msra.mxu0 %v607
    %1215 = vmatprep.subr.bf16.mxu0 0
    %1216 = vmatpush1.bf16.msra.mxu0 0
    %1217 = vmatprep.subr.bf16.mxu0 0
    %1218 = vmatpush1.bf16.msra.mxu0 0
    %1219 = vmatprep.subr.bf16.mxu0 0
    %1220 = vmatpush1.bf16.msra.mxu0 0
    %1221 = vmatprep.subr.bf16.mxu0 0
    %1222 = vmatpush1.bf16.msra.mxu0 0
    %1223 = vmatprep.subr.bf16.mxu0 0
    %1224 = vmatpush1.bf16.msra.mxu0 0
    %1225 = vmatprep.subr.bf16.mxu0 0
    %1226 = vmatpush1.bf16.msra.mxu0 0
    %1227 = vmatprep.subr.bf16.mxu0 0
    %1228 = vmatpush1.bf16.msra.mxu0 0
    %1229 = vmatprep.subr.bf16.mxu0 0
    %1230 = vmatpush1.bf16.msra.mxu0 0
    %1231 = vmatprep.mubr.bf16.mxu0 0
    %1232 = vmatmul.mubr.bf16.gmra.mrb[0].mxu0 %v1031
    %v1233 = vpop.f32.mrb[0].mxu0
    %v1234 = vadd.f32 0.0, %v1233
    %v1235 = vpop.f32.mrb[0].mxu0
    %v1236 = vadd.f32 0.0, %v1235
    %v1237 = vpop.f32.mrb[0].mxu0
    %v1238 = vpop.f32.mrb[0].mxu0
    %1239 = vdwg.mxu0
    %1240 = vmatprep.subr.bf16.mxu0 %v582
    %1241 = vmatpush1.bf16.msra.mxu0 %v581
    %1242 = vmatprep.subr.bf16.mxu0 %v586
    %1243 = vmatpush1.bf16.msra.mxu0 %v585
    %1244 = vmatprep.subr.bf16.mxu0 %v590
    %1245 = vmatpush1.bf16.msra.mxu0 %v589
    %1246 = vmatprep.subr.bf16.mxu0 %v594
    %1247 = vmatpush1.bf16.msra.mxu0 %v593
    %1248 = vmatprep.subr.bf16.mxu0 %v598
    %1249 = vmatpush1.bf16.msra.mxu0 %v597
    %1250 = vmatprep.subr.bf16.mxu0 %v602
    %1251 = vmatpush1.bf16.msra.mxu0 %v601
    %1252 = vmatprep.subr.bf16.mxu0 %v606
    %1253 = vmatpush1.bf16.msra.mxu0 %v605
    %1254 = vmatprep.subr.bf16.mxu0 %v610
    %1255 = vmatpush1.bf16.msra.mxu0 %v609
    %1256 = vmatprep.subr.bf16.mxu0 0
    %1257 = vmatpush1.bf16.msra.mxu0 0
    %1258 = vmatprep.subr.bf16.mxu0 0
    %1259 = vmatpush1.bf16.msra.mxu0 0
    %1260 = vmatprep.subr.bf16.mxu0 0
    %1261 = vmatpush1.bf16.msra.mxu0 0
    %1262 = vmatprep.subr.bf16.mxu0 0
    %1263 = vmatpush1.bf16.msra.mxu0 0
    %1264 = vmatprep.subr.bf16.mxu0 0
    %1265 = vmatpush1.bf16.msra.mxu0 0
    %1266 = vmatprep.subr.bf16.mxu0 0
    %1267 = vmatpush1.bf16.msra.mxu0 0
    %1268 = vmatprep.subr.bf16.mxu0 0
    %1269 = vmatpush1.bf16.msra.mxu0 0
    %1270 = vmatprep.subr.bf16.mxu0 0
    %1271 = vmatpush1.bf16.msra.mxu0 0
    %1272 = vmatprep.mubr.bf16.mxu0 0
    %1273 = vmatmul.mubr.bf16.gmra.mrb[0].mxu0 %v1031
    %v1274 = vpop.f32.mrb[0].mxu0
    %v1275 = vadd.f32 0.0, %v1274
    %v1276 = vpop.f32.mrb[0].mxu0
    %v1277 = vadd.f32 0.0, %v1276
    %v1278 = vpop.f32.mrb[0].mxu0
    %v1279 = vpop.f32.mrb[0].mxu0
    %1280 = vdwg.mxu0
    %v1281 = vadd.f32 %v1152, %v1234
    %v1282 = vadd.f32 %v1154, %v1236
    %v1283 = vadd.f32 %v1193, %v1275
    %v1284 = vadd.f32 %v1195, %v1277
    %v1285 = vrot.slane %v91, 2
    %v1286 = vrot.slane %v92, 2
    %v1287 = vrot.slane %v93, 2
    %v1288 = vrot.slane %v94, 2
    %v1293 = vadd.f32 %v1281, %v1285
    %v1294 = vadd.f32 %v1282, %v1286
    %v1295 = vadd.f32 %v1283, %v1287
    %v1296 = vadd.f32 %v1284, %v1288
    %v1297 = vtanh.pop %v1293
    %v1298 = vtanh.pop %v1294
    %v1299 = vtanh.pop %v1295
    %v1300 = vtanh.pop %v1296
    %v1301 = vadd.f32 %v1298, 1.0
    %v1302 = vmul.f32 %v1301, %v1026
    %v1303 = vadd.f32 %v1297, 1.0
    %v1304 = vmul.f32 %v1303, %v1299
    %v1305 = vadd.f32 %v1302, %v1304
    %v1306 = vmul.f32 %v1305, 0.5
    %v1307 = vmul.f32 %v1300, 0.5
    %v1308 = vadd.f32 %v1307, 0.5
    %v1309 = vtanh.pop %v1306
    %v1310 = vmul.f32 %v1308, %v1309
    %v1311 = vpack.c.bf16 %v1310, %v1310
    %v1312 = vunpack.c.l.bf16 %v1311
    %v1313 = vsub.f32 %v1310, %v1312
    %v1314 = vpack.c.bf16 %v1313, %v1313
    %1315 = vmatprep.subr.bf16.mxu0 %v224
    %1316 = vmatpush1.bf16.msra.mxu0 %v223
    %1317 = vmatprep.subr.bf16.mxu0 %v228
    %1318 = vmatpush1.bf16.msra.mxu0 %v227
    %1319 = vmatprep.subr.bf16.mxu0 %v232
    %1320 = vmatpush1.bf16.msra.mxu0 %v231
    %1321 = vmatprep.subr.bf16.mxu0 %v236
    %1322 = vmatpush1.bf16.msra.mxu0 %v235
    %1323 = vmatprep.subr.bf16.mxu0 %v240
    %1324 = vmatpush1.bf16.msra.mxu0 %v239
    %1325 = vmatprep.subr.bf16.mxu0 %v244
    %1326 = vmatpush1.bf16.msra.mxu0 %v243
    %1327 = vmatprep.subr.bf16.mxu0 %v248
    %1328 = vmatpush1.bf16.msra.mxu0 %v247
    %1329 = vmatprep.subr.bf16.mxu0 %v252
    %1330 = vmatpush1.bf16.msra.mxu0 %v251
    %1331 = vmatprep.subr.bf16.mxu0 0
    %1332 = vmatpush1.bf16.msra.mxu0 0
    %1333 = vmatprep.subr.bf16.mxu0 0
    %1334 = vmatpush1.bf16.msra.mxu0 0
    %1335 = vmatprep.subr.bf16.mxu0 0
    %1336 = vmatpush1.bf16.msra.mxu0 0
    %1337 = vmatprep.subr.bf16.mxu0 0
    %1338 = vmatpush1.bf16.msra.mxu0 0
    %1339 = vmatprep.subr.bf16.mxu0 0
    %1340 = vmatpush1.bf16.msra.mxu0 0
    %1341 = vmatprep.subr.bf16.mxu0 0
    %1342 = vmatpush1.bf16.msra.mxu0 0
    %1343 = vmatprep.subr.bf16.mxu0 0
    %1344 = vmatpush1.bf16.msra.mxu0 0
    %1345 = vmatprep.subr.bf16.mxu0 0
    %1346 = vmatpush1.bf16.msra.mxu0 0
    %1347 = vmatprep.mubr.bf16.mxu0 0
    %1348 = vmatmul.mubr.bf16.gmra.mrb[0].mxu0 %v1314
    %v1349 = vpop.f32.mrb[0].mxu0
    %v1350 = vadd.f32 0.0, %v1349
    %v1351 = vpop.f32.mrb[0].mxu0
    %v1352 = vadd.f32 0.0, %v1351
    %v1353 = vpop.f32.mrb[0].mxu0
    %v1354 = vpop.f32.mrb[0].mxu0
    %1355 = vdwg.mxu0
    %1356 = vmatprep.subr.bf16.mxu0 %v226
    %1357 = vmatpush1.bf16.msra.mxu0 %v225
    %1358 = vmatprep.subr.bf16.mxu0 %v230
    %1359 = vmatpush1.bf16.msra.mxu0 %v229
    %1360 = vmatprep.subr.bf16.mxu0 %v234
    %1361 = vmatpush1.bf16.msra.mxu0 %v233
    %1362 = vmatprep.subr.bf16.mxu0 %v238
    %1363 = vmatpush1.bf16.msra.mxu0 %v237
    %1364 = vmatprep.subr.bf16.mxu0 %v242
    %1365 = vmatpush1.bf16.msra.mxu0 %v241
    %1366 = vmatprep.subr.bf16.mxu0 %v246
    %1367 = vmatpush1.bf16.msra.mxu0 %v245
    %1368 = vmatprep.subr.bf16.mxu0 %v250
    %1369 = vmatpush1.bf16.msra.mxu0 %v249
    %1370 = vmatprep.subr.bf16.mxu0 %v254
    %1371 = vmatpush1.bf16.msra.mxu0 %v253
    %1372 = vmatprep.subr.bf16.mxu0 0
    %1373 = vmatpush1.bf16.msra.mxu0 0
    %1374 = vmatprep.subr.bf16.mxu0 0
    %1375 = vmatpush1.bf16.msra.mxu0 0
    %1376 = vmatprep.subr.bf16.mxu0 0
    %1377 = vmatpush1.bf16.msra.mxu0 0
    %1378 = vmatprep.subr.bf16.mxu0 0
    %1379 = vmatpush1.bf16.msra.mxu0 0
    %1380 = vmatprep.subr.bf16.mxu0 0
    %1381 = vmatpush1.bf16.msra.mxu0 0
    %1382 = vmatprep.subr.bf16.mxu0 0
    %1383 = vmatpush1.bf16.msra.mxu0 0
    %1384 = vmatprep.subr.bf16.mxu0 0
    %1385 = vmatpush1.bf16.msra.mxu0 0
    %1386 = vmatprep.subr.bf16.mxu0 0
    %1387 = vmatpush1.bf16.msra.mxu0 0
    %1388 = vmatprep.mubr.bf16.mxu0 0
    %1389 = vmatmul.mubr.bf16.gmra.mrb[0].mxu0 %v1314
    %v1390 = vpop.f32.mrb[0].mxu0
    %v1391 = vadd.f32 0.0, %v1390
    %v1392 = vpop.f32.mrb[0].mxu0
    %v1393 = vadd.f32 0.0, %v1392
    %v1394 = vpop.f32.mrb[0].mxu0
    %v1395 = vpop.f32.mrb[0].mxu0
    %1396 = vdwg.mxu0
    %1397 = vmatprep.subr.bf16.mxu0 %v224
    %1398 = vmatpush1.bf16.msra.mxu0 %v223
    %1399 = vmatprep.subr.bf16.mxu0 %v228
    %1400 = vmatpush1.bf16.msra.mxu0 %v227
    %1401 = vmatprep.subr.bf16.mxu0 %v232
    %1402 = vmatpush1.bf16.msra.mxu0 %v231
    %1403 = vmatprep.subr.bf16.mxu0 %v236
    %1404 = vmatpush1.bf16.msra.mxu0 %v235
    %1405 = vmatprep.subr.bf16.mxu0 %v240
    %1406 = vmatpush1.bf16.msra.mxu0 %v239
    %1407 = vmatprep.subr.bf16.mxu0 %v244
    %1408 = vmatpush1.bf16.msra.mxu0 %v243
    %1409 = vmatprep.subr.bf16.mxu0 %v248
    %1410 = vmatpush1.bf16.msra.mxu0 %v247
    %1411 = vmatprep.subr.bf16.mxu0 %v252
    %1412 = vmatpush1.bf16.msra.mxu0 %v251
    %1413 = vmatprep.subr.bf16.mxu0 0
    %1414 = vmatpush1.bf16.msra.mxu0 0
    %1415 = vmatprep.subr.bf16.mxu0 0
    %1416 = vmatpush1.bf16.msra.mxu0 0
    %1417 = vmatprep.subr.bf16.mxu0 0
    %1418 = vmatpush1.bf16.msra.mxu0 0
    %1419 = vmatprep.subr.bf16.mxu0 0
    %1420 = vmatpush1.bf16.msra.mxu0 0
    %1421 = vmatprep.subr.bf16.mxu0 0
    %1422 = vmatpush1.bf16.msra.mxu0 0
    %1423 = vmatprep.subr.bf16.mxu0 0
    %1424 = vmatpush1.bf16.msra.mxu0 0
    %1425 = vmatprep.subr.bf16.mxu0 0
    %1426 = vmatpush1.bf16.msra.mxu0 0
    %1427 = vmatprep.subr.bf16.mxu0 0
    %1428 = vmatpush1.bf16.msra.mxu0 0
    %1429 = vmatprep.mubr.bf16.mxu0 0
    %1430 = vmatmul.mubr.bf16.gmra.mrb[0].mxu0 %v1311
    %v1431 = vpop.f32.mrb[0].mxu0
    %v1432 = vadd.f32 %v1350, %v1431
    %v1433 = vpop.f32.mrb[0].mxu0
    %v1434 = vadd.f32 %v1352, %v1433
    %v1435 = vpop.f32.mrb[0].mxu0
    %v1436 = vpop.f32.mrb[0].mxu0
    %1437 = vdwg.mxu0
    %1438 = vmatprep.subr.bf16.mxu0 %v226
    %1439 = vmatpush1.bf16.msra.mxu0 %v225
    %1440 = vmatprep.subr.bf16.mxu0 %v230
    %1441 = vmatpush1.bf16.msra.mxu0 %v229
    %1442 = vmatprep.subr.bf16.mxu0 %v234
    %1443 = vmatpush1.bf16.msra.mxu0 %v233
    %1444 = vmatprep.subr.bf16.mxu0 %v238
    %1445 = vmatpush1.bf16.msra.mxu0 %v237
    %1446 = vmatprep.subr.bf16.mxu0 %v242
    %1447 = vmatpush1.bf16.msra.mxu0 %v241
    %1448 = vmatprep.subr.bf16.mxu0 %v246
    %1449 = vmatpush1.bf16.msra.mxu0 %v245
    %1450 = vmatprep.subr.bf16.mxu0 %v250
    %1451 = vmatpush1.bf16.msra.mxu0 %v249
    %1452 = vmatprep.subr.bf16.mxu0 %v254
    %1453 = vmatpush1.bf16.msra.mxu0 %v253
    %1454 = vmatprep.subr.bf16.mxu0 0
    %1455 = vmatpush1.bf16.msra.mxu0 0
    %1456 = vmatprep.subr.bf16.mxu0 0
    %1457 = vmatpush1.bf16.msra.mxu0 0
    %1458 = vmatprep.subr.bf16.mxu0 0
    %1459 = vmatpush1.bf16.msra.mxu0 0
    %1460 = vmatprep.subr.bf16.mxu0 0
    %1461 = vmatpush1.bf16.msra.mxu0 0
    %1462 = vmatprep.subr.bf16.mxu0 0
    %1463 = vmatpush1.bf16.msra.mxu0 0
    %1464 = vmatprep.subr.bf16.mxu0 0
    %1465 = vmatpush1.bf16.msra.mxu0 0
    %1466 = vmatprep.subr.bf16.mxu0 0
    %1467 = vmatpush1.bf16.msra.mxu0 0
    %1468 = vmatprep.subr.bf16.mxu0 0
    %1469 = vmatpush1.bf16.msra.mxu0 0
    %1470 = vmatprep.mubr.bf16.mxu0 0
    %1471 = vmatmul.mubr.bf16.gmra.mrb[0].mxu0 %v1311
    %v1472 = vpop.f32.mrb[0].mxu0
    %v1473 = vadd.f32 %v1391, %v1472
    %v1474 = vpop.f32.mrb[0].mxu0
    %v1475 = vadd.f32 %v1393, %v1474
    %v1476 = vpop.f32.mrb[0].mxu0
    %v1477 = vpop.f32.mrb[0].mxu0
    %1478 = vdwg.mxu0
    %1479 = vmatprep.subr.bf16.mxu0 %v580
    %1480 = vmatpush1.bf16.msra.mxu0 %v579
    %1481 = vmatprep.subr.bf16.mxu0 %v584
    %1482 = vmatpush1.bf16.msra.mxu0 %v583
    %1483 = vmatprep.subr.bf16.mxu0 %v588
    %1484 = vmatpush1.bf16.msra.mxu0 %v587
    %1485 = vmatprep.subr.bf16.mxu0 %v592
    %1486 = vmatpush1.bf16.msra.mxu0 %v591
    %1487 = vmatprep.subr.bf16.mxu0 %v596
    %1488 = vmatpush1.bf16.msra.mxu0 %v595
    %1489 = vmatprep.subr.bf16.mxu0 %v600
    %1490 = vmatpush1.bf16.msra.mxu0 %v599
    %1491 = vmatprep.subr.bf16.mxu0 %v604
    %1492 = vmatpush1.bf16.msra.mxu0 %v603
    %1493 = vmatprep.subr.bf16.mxu0 %v608
    %1494 = vmatpush1.bf16.msra.mxu0 %v607
    %1495 = vmatprep.subr.bf16.mxu0 0
    %1496 = vmatpush1.bf16.msra.mxu0 0
    %1497 = vmatprep.subr.bf16.mxu0 0
    %1498 = vmatpush1.bf16.msra.mxu0 0
    %1499 = vmatprep.subr.bf16.mxu0 0
    %1500 = vmatpush1.bf16.msra.mxu0 0
    %1501 = vmatprep.subr.bf16.mxu0 0
    %1502 = vmatpush1.bf16.msra.mxu0 0
    %1503 = vmatprep.subr.bf16.mxu0 0
    %1504 = vmatpush1.bf16.msra.mxu0 0
    %1505 = vmatprep.subr.bf16.mxu0 0
    %1506 = vmatpush1.bf16.msra.mxu0 0
    %1507 = vmatprep.subr.bf16.mxu0 0
    %1508 = vmatpush1.bf16.msra.mxu0 0
    %1509 = vmatprep.subr.bf16.mxu0 0
    %1510 = vmatpush1.bf16.msra.mxu0 0
    %1511 = vmatprep.mubr.bf16.mxu0 0
    %1512 = vmatmul.mubr.bf16.gmra.mrb[0].mxu0 %v1311
    %v1513 = vpop.f32.mrb[0].mxu0
    %v1514 = vadd.f32 0.0, %v1513
    %v1515 = vpop.f32.mrb[0].mxu0
    %v1516 = vadd.f32 0.0, %v1515
    %v1517 = vpop.f32.mrb[0].mxu0
    %v1518 = vpop.f32.mrb[0].mxu0
    %1519 = vdwg.mxu0
    %1520 = vmatprep.subr.bf16.mxu0 %v582
    %1521 = vmatpush1.bf16.msra.mxu0 %v581
    %1522 = vmatprep.subr.bf16.mxu0 %v586
    %1523 = vmatpush1.bf16.msra.mxu0 %v585
    %1524 = vmatprep.subr.bf16.mxu0 %v590
    %1525 = vmatpush1.bf16.msra.mxu0 %v589
    %1526 = vmatprep.subr.bf16.mxu0 %v594
    %1527 = vmatpush1.bf16.msra.mxu0 %v593
    %1528 = vmatprep.subr.bf16.mxu0 %v598
    %1529 = vmatpush1.bf16.msra.mxu0 %v597
    %1530 = vmatprep.subr.bf16.mxu0 %v602
    %1531 = vmatpush1.bf16.msra.mxu0 %v601
    %1532 = vmatprep.subr.bf16.mxu0 %v606
    %1533 = vmatpush1.bf16.msra.mxu0 %v605
    %1534 = vmatprep.subr.bf16.mxu0 %v610
    %1535 = vmatpush1.bf16.msra.mxu0 %v609
    %1536 = vmatprep.subr.bf16.mxu0 0
    %1537 = vmatpush1.bf16.msra.mxu0 0
    %1538 = vmatprep.subr.bf16.mxu0 0
    %1539 = vmatpush1.bf16.msra.mxu0 0
    %1540 = vmatprep.subr.bf16.mxu0 0
    %1541 = vmatpush1.bf16.msra.mxu0 0
    %1542 = vmatprep.subr.bf16.mxu0 0
    %1543 = vmatpush1.bf16.msra.mxu0 0
    %1544 = vmatprep.subr.bf16.mxu0 0
    %1545 = vmatpush1.bf16.msra.mxu0 0
    %1546 = vmatprep.subr.bf16.mxu0 0
    %1547 = vmatpush1.bf16.msra.mxu0 0
    %1548 = vmatprep.subr.bf16.mxu0 0
    %1549 = vmatpush1.bf16.msra.mxu0 0
    %1550 = vmatprep.subr.bf16.mxu0 0
    %1551 = vmatpush1.bf16.msra.mxu0 0
    %1552 = vmatprep.mubr.bf16.mxu0 0
    %1553 = vmatmul.mubr.bf16.gmra.mrb[0].mxu0 %v1311
    %v1554 = vpop.f32.mrb[0].mxu0
    %v1555 = vadd.f32 0.0, %v1554
    %v1556 = vpop.f32.mrb[0].mxu0
    %v1557 = vadd.f32 0.0, %v1556
    %v1558 = vpop.f32.mrb[0].mxu0
    %v1559 = vpop.f32.mrb[0].mxu0
    %1560 = vdwg.mxu0
    %v1561 = vadd.f32 %v1432, %v1514
    %v1562 = vadd.f32 %v1434, %v1516
    %v1563 = vadd.f32 %v1473, %v1555
    %v1564 = vadd.f32 %v1475, %v1557
    %v1565 = vrot.slane %v91, 3
    %v1566 = vrot.slane %v92, 3
    %v1567 = vrot.slane %v93, 3
    %v1568 = vrot.slane %v94, 3
    %v1573 = vadd.f32 %v1561, %v1565
    %v1574 = vadd.f32 %v1562, %v1566
    %v1575 = vadd.f32 %v1563, %v1567
    %v1576 = vadd.f32 %v1564, %v1568
    %v1577 = vtanh.pop %v1573
    %v1578 = vtanh.pop %v1574
    %v1579 = vtanh.pop %v1575
    %v1580 = vtanh.pop %v1576
    %v1581 = vadd.f32 %v1578, 1.0
    %v1582 = vmul.f32 %v1581, %v1306
    %v1583 = vadd.f32 %v1577, 1.0
    %v1584 = vmul.f32 %v1583, %v1579
    %v1585 = vadd.f32 %v1582, %v1584
    %v1586 = vmul.f32 %v1585, 0.5
    %v1587 = vmul.f32 %v1580, 0.5
    %v1588 = vadd.f32 %v1587, 0.5
    %v1589 = vtanh.pop %v1586
    %v1590 = vmul.f32 %v1588, %v1589
    %v1591 = vpack.c.bf16 %v1590, %v1590
    %v1592 = vunpack.c.l.bf16 %v1591
    %v1593 = vsub.f32 %v1590, %v1592
    %v1594 = vpack.c.bf16 %v1593, %v1593
    %1595 = vmatprep.subr.bf16.mxu0 %v224
    %1596 = vmatpush1.bf16.msra.mxu0 %v223
    %1597 = vmatprep.subr.bf16.mxu0 %v228
    %1598 = vmatpush1.bf16.msra.mxu0 %v227
    %1599 = vmatprep.subr.bf16.mxu0 %v232
    %1600 = vmatpush1.bf16.msra.mxu0 %v231
    %1601 = vmatprep.subr.bf16.mxu0 %v236
    %1602 = vmatpush1.bf16.msra.mxu0 %v235
    %1603 = vmatprep.subr.bf16.mxu0 %v240
    %1604 = vmatpush1.bf16.msra.mxu0 %v239
    %1605 = vmatprep.subr.bf16.mxu0 %v244
    %1606 = vmatpush1.bf16.msra.mxu0 %v243
    %1607 = vmatprep.subr.bf16.mxu0 %v248
    %1608 = vmatpush1.bf16.msra.mxu0 %v247
    %1609 = vmatprep.subr.bf16.mxu0 %v252
    %1610 = vmatpush1.bf16.msra.mxu0 %v251
    %1611 = vmatprep.subr.bf16.mxu0 0
    %1612 = vmatpush1.bf16.msra.mxu0 0
    %1613 = vmatprep.subr.bf16.mxu0 0
    %1614 = vmatpush1.bf16.msra.mxu0 0
    %1615 = vmatprep.subr.bf16.mxu0 0
    %1616 = vmatpush1.bf16.msra.mxu0 0
    %1617 = vmatprep.subr.bf16.mxu0 0
    %1618 = vmatpush1.bf16.msra.mxu0 0
    %1619 = vmatprep.subr.bf16.mxu0 0
    %1620 = vmatpush1.bf16.msra.mxu0 0
    %1621 = vmatprep.subr.bf16.mxu0 0
    %1622 = vmatpush1.bf16.msra.mxu0 0
    %1623 = vmatprep.subr.bf16.mxu0 0
    %1624 = vmatpush1.bf16.msra.mxu0 0
    %1625 = vmatprep.subr.bf16.mxu0 0
    %1626 = vmatpush1.bf16.msra.mxu0 0
    %1627 = vmatprep.mubr.bf16.mxu0 0
    %1628 = vmatmul.mubr.bf16.gmra.mrb[0].mxu0 %v1594
    %v1629 = vpop.f32.mrb[0].mxu0
    %v1630 = vadd.f32 0.0, %v1629
    %v1631 = vpop.f32.mrb[0].mxu0
    %v1632 = vadd.f32 0.0, %v1631
    %v1633 = vpop.f32.mrb[0].mxu0
    %v1634 = vpop.f32.mrb[0].mxu0
    %1635 = vdwg.mxu0
    %1636 = vmatprep.subr.bf16.mxu0 %v226
    %1637 = vmatpush1.bf16.msra.mxu0 %v225
    %1638 = vmatprep.subr.bf16.mxu0 %v230
    %1639 = vmatpush1.bf16.msra.mxu0 %v229
    %1640 = vmatprep.subr.bf16.mxu0 %v234
    %1641 = vmatpush1.bf16.msra.mxu0 %v233
    %1642 = vmatprep.subr.bf16.mxu0 %v238
    %1643 = vmatpush1.bf16.msra.mxu0 %v237
    %1644 = vmatprep.subr.bf16.mxu0 %v242
    %1645 = vmatpush1.bf16.msra.mxu0 %v241
    %1646 = vmatprep.subr.bf16.mxu0 %v246
    %1647 = vmatpush1.bf16.msra.mxu0 %v245
    %1648 = vmatprep.subr.bf16.mxu0 %v250
    %1649 = vmatpush1.bf16.msra.mxu0 %v249
    %1650 = vmatprep.subr.bf16.mxu0 %v254
    %1651 = vmatpush1.bf16.msra.mxu0 %v253
    %1652 = vmatprep.subr.bf16.mxu0 0
    %1653 = vmatpush1.bf16.msra.mxu0 0
    %1654 = vmatprep.subr.bf16.mxu0 0
    %1655 = vmatpush1.bf16.msra.mxu0 0
    %1656 = vmatprep.subr.bf16.mxu0 0
    %1657 = vmatpush1.bf16.msra.mxu0 0
    %1658 = vmatprep.subr.bf16.mxu0 0
    %1659 = vmatpush1.bf16.msra.mxu0 0
    %1660 = vmatprep.subr.bf16.mxu0 0
    %1661 = vmatpush1.bf16.msra.mxu0 0
    %1662 = vmatprep.subr.bf16.mxu0 0
    %1663 = vmatpush1.bf16.msra.mxu0 0
    %1664 = vmatprep.subr.bf16.mxu0 0
    %1665 = vmatpush1.bf16.msra.mxu0 0
    %1666 = vmatprep.subr.bf16.mxu0 0
    %1667 = vmatpush1.bf16.msra.mxu0 0
    %1668 = vmatprep.mubr.bf16.mxu0 0
    %1669 = vmatmul.mubr.bf16.gmra.mrb[0].mxu0 %v1594
    %v1670 = vpop.f32.mrb[0].mxu0
    %v1671 = vadd.f32 0.0, %v1670
    %v1672 = vpop.f32.mrb[0].mxu0
    %v1673 = vadd.f32 0.0, %v1672
    %v1674 = vpop.f32.mrb[0].mxu0
    %v1675 = vpop.f32.mrb[0].mxu0
    %1676 = vdwg.mxu0
    %1677 = vmatprep.subr.bf16.mxu0 %v224
    %1678 = vmatpush1.bf16.msra.mxu0 %v223
    %1679 = vmatprep.subr.bf16.mxu0 %v228
    %1680 = vmatpush1.bf16.msra.mxu0 %v227
    %1681 = vmatprep.subr.bf16.mxu0 %v232
    %1682 = vmatpush1.bf16.msra.mxu0 %v231
    %1683 = vmatprep.subr.bf16.mxu0 %v236
    %1684 = vmatpush1.bf16.msra.mxu0 %v235
    %1685 = vmatprep.subr.bf16.mxu0 %v240
    %1686 = vmatpush1.bf16.msra.mxu0 %v239
    %1687 = vmatprep.subr.bf16.mxu0 %v244
    %1688 = vmatpush1.bf16.msra.mxu0 %v243
    %1689 = vmatprep.subr.bf16.mxu0 %v248
    %1690 = vmatpush1.bf16.msra.mxu0 %v247
    %1691 = vmatprep.subr.bf16.mxu0 %v252
    %1692 = vmatpush1.bf16.msra.mxu0 %v251
    %1693 = vmatprep.subr.bf16.mxu0 0
    %1694 = vmatpush1.bf16.msra.mxu0 0
    %1695 = vmatprep.subr.bf16.mxu0 0
    %1696 = vmatpush1.bf16.msra.mxu0 0
    %1697 = vmatprep.subr.bf16.mxu0 0
    %1698 = vmatpush1.bf16.msra.mxu0 0
    %1699 = vmatprep.subr.bf16.mxu0 0
    %1700 = vmatpush1.bf16.msra.mxu0 0
    %1701 = vmatprep.subr.bf16.mxu0 0
    %1702 = vmatpush1.bf16.msra.mxu0 0
    %1703 = vmatprep.subr.bf16.mxu0 0
    %1704 = vmatpush1.bf16.msra.mxu0 0
    %1705 = vmatprep.subr.bf16.mxu0 0
    %1706 = vmatpush1.bf16.msra.mxu0 0
    %1707 = vmatprep.subr.bf16.mxu0 0
    %1708 = vmatpush1.bf16.msra.mxu0 0
    %1709 = vmatprep.mubr.bf16.mxu0 0
    %1710 = vmatmul.mubr.bf16.gmra.mrb[0].mxu0 %v1591
    %v1711 = vpop.f32.mrb[0].mxu0
    %v1712 = vadd.f32 %v1630, %v1711
    %v1713 = vpop.f32.mrb[0].mxu0
    %v1714 = vadd.f32 %v1632, %v1713
    %v1715 = vpop.f32.mrb[0].mxu0
    %v1716 = vpop.f32.mrb[0].mxu0
    %1717 = vdwg.mxu0
    %1718 = vmatprep.subr.bf16.mxu0 %v226
    %1719 = vmatpush1.bf16.msra.mxu0 %v225
    %1720 = vmatprep.subr.bf16.mxu0 %v230
    %1721 = vmatpush1.bf16.msra.mxu0 %v229
    %1722 = vmatprep.subr.bf16.mxu0 %v234
    %1723 = vmatpush1.bf16.msra.mxu0 %v233
    %1724 = vmatprep.subr.bf16.mxu0 %v238
    %1725 = vmatpush1.bf16.msra.mxu0 %v237
    %1726 = vmatprep.subr.bf16.mxu0 %v242
    %1727 = vmatpush1.bf16.msra.mxu0 %v241
    %1728 = vmatprep.subr.bf16.mxu0 %v246
    %1729 = vmatpush1.bf16.msra.mxu0 %v245
    %1730 = vmatprep.subr.bf16.mxu0 %v250
    %1731 = vmatpush1.bf16.msra.mxu0 %v249
    %1732 = vmatprep.subr.bf16.mxu0 %v254
    %1733 = vmatpush1.bf16.msra.mxu0 %v253
    %1734 = vmatprep.subr.bf16.mxu0 0
    %1735 = vmatpush1.bf16.msra.mxu0 0
    %1736 = vmatprep.subr.bf16.mxu0 0
    %1737 = vmatpush1.bf16.msra.mxu0 0
    %1738 = vmatprep.subr.bf16.mxu0 0
    %1739 = vmatpush1.bf16.msra.mxu0 0
    %1740 = vmatprep.subr.bf16.mxu0 0
    %1741 = vmatpush1.bf16.msra.mxu0 0
    %1742 = vmatprep.subr.bf16.mxu0 0
    %1743 = vmatpush1.bf16.msra.mxu0 0
    %1744 = vmatprep.subr.bf16.mxu0 0
    %1745 = vmatpush1.bf16.msra.mxu0 0
    %1746 = vmatprep.subr.bf16.mxu0 0
    %1747 = vmatpush1.bf16.msra.mxu0 0
    %1748 = vmatprep.subr.bf16.mxu0 0
    %1749 = vmatpush1.bf16.msra.mxu0 0
    %1750 = vmatprep.mubr.bf16.mxu0 0
    %1751 = vmatmul.mubr.bf16.gmra.mrb[0].mxu0 %v1591
    %v1752 = vpop.f32.mrb[0].mxu0
    %v1753 = vadd.f32 %v1671, %v1752
    %v1754 = vpop.f32.mrb[0].mxu0
    %v1755 = vadd.f32 %v1673, %v1754
    %v1756 = vpop.f32.mrb[0].mxu0
    %v1757 = vpop.f32.mrb[0].mxu0
    %1758 = vdwg.mxu0
    %1759 = vmatprep.subr.bf16.mxu0 %v580
    %1760 = vmatpush1.bf16.msra.mxu0 %v579
    %1761 = vmatprep.subr.bf16.mxu0 %v584
    %1762 = vmatpush1.bf16.msra.mxu0 %v583
    %1763 = vmatprep.subr.bf16.mxu0 %v588
    %1764 = vmatpush1.bf16.msra.mxu0 %v587
    %1765 = vmatprep.subr.bf16.mxu0 %v592
    %1766 = vmatpush1.bf16.msra.mxu0 %v591
    %1767 = vmatprep.subr.bf16.mxu0 %v596
    %1768 = vmatpush1.bf16.msra.mxu0 %v595
    %1769 = vmatprep.subr.bf16.mxu0 %v600
    %1770 = vmatpush1.bf16.msra.mxu0 %v599
    %1771 = vmatprep.subr.bf16.mxu0 %v604
    %1772 = vmatpush1.bf16.msra.mxu0 %v603
    %1773 = vmatprep.subr.bf16.mxu0 %v608
    %1774 = vmatpush1.bf16.msra.mxu0 %v607
    %1775 = vmatprep.subr.bf16.mxu0 0
    %1776 = vmatpush1.bf16.msra.mxu0 0
    %1777 = vmatprep.subr.bf16.mxu0 0
    %1778 = vmatpush1.bf16.msra.mxu0 0
    %1779 = vmatprep.subr.bf16.mxu0 0
    %1780 = vmatpush1.bf16.msra.mxu0 0
    %1781 = vmatprep.subr.bf16.mxu0 0
    %1782 = vmatpush1.bf16.msra.mxu0 0
    %1783 = vmatprep.subr.bf16.mxu0 0
    %1784 = vmatpush1.bf16.msra.mxu0 0
    %1785 = vmatprep.subr.bf16.mxu0 0
    %1786 = vmatpush1.bf16.msra.mxu0 0
    %1787 = vmatprep.subr.bf16.mxu0 0
    %1788 = vmatpush1.bf16.msra.mxu0 0
    %1789 = vmatprep.subr.bf16.mxu0 0
    %1790 = vmatpush1.bf16.msra.mxu0 0
    %1791 = vmatprep.mubr.bf16.mxu0 0
    %1792 = vmatmul.mubr.bf16.gmra.mrb[0].mxu0 %v1591
    %v1793 = vpop.f32.mrb[0].mxu0
    %v1794 = vadd.f32 0.0, %v1793
    %v1795 = vpop.f32.mrb[0].mxu0
    %v1796 = vadd.f32 0.0, %v1795
    %v1797 = vpop.f32.mrb[0].mxu0
    %v1798 = vpop.f32.mrb[0].mxu0
    %1799 = vdwg.mxu0
    %1800 = vmatprep.subr.bf16.mxu0 %v582
    %1801 = vmatpush1.bf16.msra.mxu0 %v581
    %1802 = vmatprep.subr.bf16.mxu0 %v586
    %1803 = vmatpush1.bf16.msra.mxu0 %v585
    %1804 = vmatprep.subr.bf16.mxu0 %v590
    %1805 = vmatpush1.bf16.msra.mxu0 %v589
    %1806 = vmatprep.subr.bf16.mxu0 %v594
    %1807 = vmatpush1.bf16.msra.mxu0 %v593
    %1808 = vmatprep.subr.bf16.mxu0 %v598
    %1809 = vmatpush1.bf16.msra.mxu0 %v597
    %1810 = vmatprep.subr.bf16.mxu0 %v602
    %1811 = vmatpush1.bf16.msra.mxu0 %v601
    %1812 = vmatprep.subr.bf16.mxu0 %v606
    %1813 = vmatpush1.bf16.msra.mxu0 %v605
    %1814 = vmatprep.subr.bf16.mxu0 %v610
    %1815 = vmatpush1.bf16.msra.mxu0 %v609
    %1816 = vmatprep.subr.bf16.mxu0 0
    %1817 = vmatpush1.bf16.msra.mxu0 0
    %1818 = vmatprep.subr.bf16.mxu0 0
    %1819 = vmatpush1.bf16.msra.mxu0 0
    %1820 = vmatprep.subr.bf16.mxu0 0
    %1821 = vmatpush1.bf16.msra.mxu0 0
    %1822 = vmatprep.subr.bf16.mxu0 0
    %1823 = vmatpush1.bf16.msra.mxu0 0
    %1824 = vmatprep.subr.bf16.mxu0 0
    %1825 = vmatpush1.bf16.msra.mxu0 0
    %1826 = vmatprep.subr.bf16.mxu0 0
    %1827 = vmatpush1.bf16.msra.mxu0 0
    %1828 = vmatprep.subr.bf16.mxu0 0
    %1829 = vmatpush1.bf16.msra.mxu0 0
    %1830 = vmatprep.subr.bf16.mxu0 0
    %1831 = vmatpush1.bf16.msra.mxu0 0
    %1832 = vmatprep.mubr.bf16.mxu0 0
    %1833 = vmatmul.mubr.bf16.gmra.mrb[0].mxu0 %v1591
    %v1834 = vpop.f32.mrb[0].mxu0
    %v1835 = vadd.f32 0.0, %v1834
    %v1836 = vpop.f32.mrb[0].mxu0
    %v1837 = vadd.f32 0.0, %v1836
    %v1838 = vpop.f32.mrb[0].mxu0
    %v1839 = vpop.f32.mrb[0].mxu0
    %1840 = vdwg.mxu0
    %v1841 = vadd.f32 %v1712, %v1794
    %v1842 = vadd.f32 %v1714, %v1796
    %v1843 = vadd.f32 %v1753, %v1835
    %v1844 = vadd.f32 %v1755, %v1837
    %v1845 = vrot.slane %v91, 4
    %v1846 = vrot.slane %v92, 4
    %v1847 = vrot.slane %v93, 4
    %v1848 = vrot.slane %v94, 4
    %v1853 = vadd.f32 %v1841, %v1845
    %v1854 = vadd.f32 %v1842, %v1846
    %v1855 = vadd.f32 %v1843, %v1847
    %v1856 = vadd.f32 %v1844, %v1848
    %v1857 = vtanh.pop %v1853
    %v1858 = vtanh.pop %v1854
    %v1859 = vtanh.pop %v1855
    %v1860 = vtanh.pop %v1856
    %v1861 = vadd.f32 %v1858, 1.0
    %v1862 = vmul.f32 %v1861, %v1586
    %v1863 = vadd.f32 %v1857, 1.0
    %v1864 = vmul.f32 %v1863, %v1859
    %v1865 = vadd.f32 %v1862, %v1864
    %v1866 = vmul.f32 %v1865, 0.5
    %v1867 = vmul.f32 %v1860, 0.5
    %v1868 = vadd.f32 %v1867, 0.5
    %v1869 = vtanh.pop %v1866
    %v1870 = vmul.f32 %v1868, %v1869
    %v1871 = vpack.c.bf16 %v1870, %v1870
    %v1872 = vunpack.c.l.bf16 %v1871
    %v1873 = vsub.f32 %v1870, %v1872
    %v1874 = vpack.c.bf16 %v1873, %v1873
    %1875 = vmatprep.subr.bf16.mxu0 %v224
    %1876 = vmatpush1.bf16.msra.mxu0 %v223
    %1877 = vmatprep.subr.bf16.mxu0 %v228
    %1878 = vmatpush1.bf16.msra.mxu0 %v227
    %1879 = vmatprep.subr.bf16.mxu0 %v232
    %1880 = vmatpush1.bf16.msra.mxu0 %v231
    %1881 = vmatprep.subr.bf16.mxu0 %v236
    %1882 = vmatpush1.bf16.msra.mxu0 %v235
    %1883 = vmatprep.subr.bf16.mxu0 %v240
    %1884 = vmatpush1.bf16.msra.mxu0 %v239
    %1885 = vmatprep.subr.bf16.mxu0 %v244
    %1886 = vmatpush1.bf16.msra.mxu0 %v243
    %1887 = vmatprep.subr.bf16.mxu0 %v248
    %1888 = vmatpush1.bf16.msra.mxu0 %v247
    %1889 = vmatprep.subr.bf16.mxu0 %v252
    %1890 = vmatpush1.bf16.msra.mxu0 %v251
    %1891 = vmatprep.subr.bf16.mxu0 0
    %1892 = vmatpush1.bf16.msra.mxu0 0
    %1893 = vmatprep.subr.bf16.mxu0 0
    %1894 = vmatpush1.bf16.msra.mxu0 0
    %1895 = vmatprep.subr.bf16.mxu0 0
    %1896 = vmatpush1.bf16.msra.mxu0 0
    %1897 = vmatprep.subr.bf16.mxu0 0
    %1898 = vmatpush1.bf16.msra.mxu0 0
    %1899 = vmatprep.subr.bf16.mxu0 0
    %1900 = vmatpush1.bf16.msra.mxu0 0
    %1901 = vmatprep.subr.bf16.mxu0 0
    %1902 = vmatpush1.bf16.msra.mxu0 0
    %1903 = vmatprep.subr.bf16.mxu0 0
    %1904 = vmatpush1.bf16.msra.mxu0 0
    %1905 = vmatprep.subr.bf16.mxu0 0
    %1906 = vmatpush1.bf16.msra.mxu0 0
    %1907 = vmatprep.mubr.bf16.mxu0 0
    %1908 = vmatmul.mubr.bf16.gmra.mrb[0].mxu0 %v1874
    %v1909 = vpop.f32.mrb[0].mxu0
    %v1910 = vadd.f32 0.0, %v1909
    %v1911 = vpop.f32.mrb[0].mxu0
    %v1912 = vadd.f32 0.0, %v1911
    %v1913 = vpop.f32.mrb[0].mxu0
    %v1914 = vpop.f32.mrb[0].mxu0
    %1915 = vdwg.mxu0
    %1916 = vmatprep.subr.bf16.mxu0 %v226
    %1917 = vmatpush1.bf16.msra.mxu0 %v225
    %1918 = vmatprep.subr.bf16.mxu0 %v230
    %1919 = vmatpush1.bf16.msra.mxu0 %v229
    %1920 = vmatprep.subr.bf16.mxu0 %v234
    %1921 = vmatpush1.bf16.msra.mxu0 %v233
    %1922 = vmatprep.subr.bf16.mxu0 %v238
    %1923 = vmatpush1.bf16.msra.mxu0 %v237
    %1924 = vmatprep.subr.bf16.mxu0 %v242
    %1925 = vmatpush1.bf16.msra.mxu0 %v241
    %1926 = vmatprep.subr.bf16.mxu0 %v246
    %1927 = vmatpush1.bf16.msra.mxu0 %v245
    %1928 = vmatprep.subr.bf16.mxu0 %v250
    %1929 = vmatpush1.bf16.msra.mxu0 %v249
    %1930 = vmatprep.subr.bf16.mxu0 %v254
    %1931 = vmatpush1.bf16.msra.mxu0 %v253
    %1932 = vmatprep.subr.bf16.mxu0 0
    %1933 = vmatpush1.bf16.msra.mxu0 0
    %1934 = vmatprep.subr.bf16.mxu0 0
    %1935 = vmatpush1.bf16.msra.mxu0 0
    %1936 = vmatprep.subr.bf16.mxu0 0
    %1937 = vmatpush1.bf16.msra.mxu0 0
    %1938 = vmatprep.subr.bf16.mxu0 0
    %1939 = vmatpush1.bf16.msra.mxu0 0
    %1940 = vmatprep.subr.bf16.mxu0 0
    %1941 = vmatpush1.bf16.msra.mxu0 0
    %1942 = vmatprep.subr.bf16.mxu0 0
    %1943 = vmatpush1.bf16.msra.mxu0 0
    %1944 = vmatprep.subr.bf16.mxu0 0
    %1945 = vmatpush1.bf16.msra.mxu0 0
    %1946 = vmatprep.subr.bf16.mxu0 0
    %1947 = vmatpush1.bf16.msra.mxu0 0
    %1948 = vmatprep.mubr.bf16.mxu0 0
    %1949 = vmatmul.mubr.bf16.gmra.mrb[0].mxu0 %v1874
    %v1950 = vpop.f32.mrb[0].mxu0
    %v1951 = vadd.f32 0.0, %v1950
    %v1952 = vpop.f32.mrb[0].mxu0
    %v1953 = vadd.f32 0.0, %v1952
    %v1954 = vpop.f32.mrb[0].mxu0
    %v1955 = vpop.f32.mrb[0].mxu0
    %1956 = vdwg.mxu0
    %1957 = vmatprep.subr.bf16.mxu0 %v224
    %1958 = vmatpush1.bf16.msra.mxu0 %v223
    %1959 = vmatprep.subr.bf16.mxu0 %v228
    %1960 = vmatpush1.bf16.msra.mxu0 %v227
    %1961 = vmatprep.subr.bf16.mxu0 %v232
    %1962 = vmatpush1.bf16.msra.mxu0 %v231
    %1963 = vmatprep.subr.bf16.mxu0 %v236
    %1964 = vmatpush1.bf16.msra.mxu0 %v235
    %1965 = vmatprep.subr.bf16.mxu0 %v240
    %1966 = vmatpush1.bf16.msra.mxu0 %v239
    %1967 = vmatprep.subr.bf16.mxu0 %v244
    %1968 = vmatpush1.bf16.msra.mxu0 %v243
    %1969 = vmatprep.subr.bf16.mxu0 %v248
    %1970 = vmatpush1.bf16.msra.mxu0 %v247
    %1971 = vmatprep.subr.bf16.mxu0 %v252
    %1972 = vmatpush1.bf16.msra.mxu0 %v251
    %1973 = vmatprep.subr.bf16.mxu0 0
    %1974 = vmatpush1.bf16.msra.mxu0 0
    %1975 = vmatprep.subr.bf16.mxu0 0
    %1976 = vmatpush1.bf16.msra.mxu0 0
    %1977 = vmatprep.subr.bf16.mxu0 0
    %1978 = vmatpush1.bf16.msra.mxu0 0
    %1979 = vmatprep.subr.bf16.mxu0 0
    %1980 = vmatpush1.bf16.msra.mxu0 0
    %1981 = vmatprep.subr.bf16.mxu0 0
    %1982 = vmatpush1.bf16.msra.mxu0 0
    %1983 = vmatprep.subr.bf16.mxu0 0
    %1984 = vmatpush1.bf16.msra.mxu0 0
    %1985 = vmatprep.subr.bf16.mxu0 0
    %1986 = vmatpush1.bf16.msra.mxu0 0
    %1987 = vmatprep.subr.bf16.mxu0 0
    %1988 = vmatpush1.bf16.msra.mxu0 0
    %1989 = vmatprep.mubr.bf16.mxu0 0
    %1990 = vmatmul.mubr.bf16.gmra.mrb[0].mxu0 %v1871
    %v1991 = vpop.f32.mrb[0].mxu0
    %v1992 = vadd.f32 %v1910, %v1991
    %v1993 = vpop.f32.mrb[0].mxu0
    %v1994 = vadd.f32 %v1912, %v1993
    %v1995 = vpop.f32.mrb[0].mxu0
    %v1996 = vpop.f32.mrb[0].mxu0
    %1997 = vdwg.mxu0
    %1998 = vmatprep.subr.bf16.mxu0 %v226
    %1999 = vmatpush1.bf16.msra.mxu0 %v225
    %2000 = vmatprep.subr.bf16.mxu0 %v230
    %2001 = vmatpush1.bf16.msra.mxu0 %v229
    %2002 = vmatprep.subr.bf16.mxu0 %v234
    %2003 = vmatpush1.bf16.msra.mxu0 %v233
    %2004 = vmatprep.subr.bf16.mxu0 %v238
    %2005 = vmatpush1.bf16.msra.mxu0 %v237
    %2006 = vmatprep.subr.bf16.mxu0 %v242
    %2007 = vmatpush1.bf16.msra.mxu0 %v241
    %2008 = vmatprep.subr.bf16.mxu0 %v246
    %2009 = vmatpush1.bf16.msra.mxu0 %v245
    %2010 = vmatprep.subr.bf16.mxu0 %v250
    %2011 = vmatpush1.bf16.msra.mxu0 %v249
    %2012 = vmatprep.subr.bf16.mxu0 %v254
    %2013 = vmatpush1.bf16.msra.mxu0 %v253
    %2014 = vmatprep.subr.bf16.mxu0 0
    %2015 = vmatpush1.bf16.msra.mxu0 0
    %2016 = vmatprep.subr.bf16.mxu0 0
    %2017 = vmatpush1.bf16.msra.mxu0 0
    %2018 = vmatprep.subr.bf16.mxu0 0
    %2019 = vmatpush1.bf16.msra.mxu0 0
    %2020 = vmatprep.subr.bf16.mxu0 0
    %2021 = vmatpush1.bf16.msra.mxu0 0
    %2022 = vmatprep.subr.bf16.mxu0 0
    %2023 = vmatpush1.bf16.msra.mxu0 0
    %2024 = vmatprep.subr.bf16.mxu0 0
    %2025 = vmatpush1.bf16.msra.mxu0 0
    %2026 = vmatprep.subr.bf16.mxu0 0
    %2027 = vmatpush1.bf16.msra.mxu0 0
    %2028 = vmatprep.subr.bf16.mxu0 0
    %2029 = vmatpush1.bf16.msra.mxu0 0
    %2030 = vmatprep.mubr.bf16.mxu0 0
    %2031 = vmatmul.mubr.bf16.gmra.mrb[0].mxu0 %v1871
    %v2032 = vpop.f32.mrb[0].mxu0
    %v2033 = vadd.f32 %v1951, %v2032
    %v2034 = vpop.f32.mrb[0].mxu0
    %v2035 = vadd.f32 %v1953, %v2034
    %v2036 = vpop.f32.mrb[0].mxu0
    %v2037 = vpop.f32.mrb[0].mxu0
    %2038 = vdwg.mxu0
    %2039 = vmatprep.subr.bf16.mxu0 %v580
    %2040 = vmatpush1.bf16.msra.mxu0 %v579
    %2041 = vmatprep.subr.bf16.mxu0 %v584
    %2042 = vmatpush1.bf16.msra.mxu0 %v583
    %2043 = vmatprep.subr.bf16.mxu0 %v588
    %2044 = vmatpush1.bf16.msra.mxu0 %v587
    %2045 = vmatprep.subr.bf16.mxu0 %v592
    %2046 = vmatpush1.bf16.msra.mxu0 %v591
    %2047 = vmatprep.subr.bf16.mxu0 %v596
    %2048 = vmatpush1.bf16.msra.mxu0 %v595
    %2049 = vmatprep.subr.bf16.mxu0 %v600
    %2050 = vmatpush1.bf16.msra.mxu0 %v599
    %2051 = vmatprep.subr.bf16.mxu0 %v604
    %2052 = vmatpush1.bf16.msra.mxu0 %v603
    %2053 = vmatprep.subr.bf16.mxu0 %v608
    %2054 = vmatpush1.bf16.msra.mxu0 %v607
    %2055 = vmatprep.subr.bf16.mxu0 0
    %2056 = vmatpush1.bf16.msra.mxu0 0
    %2057 = vmatprep.subr.bf16.mxu0 0
    %2058 = vmatpush1.bf16.msra.mxu0 0
    %2059 = vmatprep.subr.bf16.mxu0 0
    %2060 = vmatpush1.bf16.msra.mxu0 0
    %2061 = vmatprep.subr.bf16.mxu0 0
    %2062 = vmatpush1.bf16.msra.mxu0 0
    %2063 = vmatprep.subr.bf16.mxu0 0
    %2064 = vmatpush1.bf16.msra.mxu0 0
    %2065 = vmatprep.subr.bf16.mxu0 0
    %2066 = vmatpush1.bf16.msra.mxu0 0
    %2067 = vmatprep.subr.bf16.mxu0 0
    %2068 = vmatpush1.bf16.msra.mxu0 0
    %2069 = vmatprep.subr.bf16.mxu0 0
    %2070 = vmatpush1.bf16.msra.mxu0 0
    %2071 = vmatprep.mubr.bf16.mxu0 0
    %2072 = vmatmul.mubr.bf16.gmra.mrb[0].mxu0 %v1871
    %v2073 = vpop.f32.mrb[0].mxu0
    %v2074 = vadd.f32 0.0, %v2073
    %v2075 = vpop.f32.mrb[0].mxu0
    %v2076 = vadd.f32 0.0, %v2075
    %v2077 = vpop.f32.mrb[0].mxu0
    %v2078 = vpop.f32.mrb[0].mxu0
    %2079 = vdwg.mxu0
    %2080 = vmatprep.subr.bf16.mxu0 %v582
    %2081 = vmatpush1.bf16.msra.mxu0 %v581
    %2082 = vmatprep.subr.bf16.mxu0 %v586
    %2083 = vmatpush1.bf16.msra.mxu0 %v585
    %2084 = vmatprep.subr.bf16.mxu0 %v590
    %2085 = vmatpush1.bf16.msra.mxu0 %v589
    %2086 = vmatprep.subr.bf16.mxu0 %v594
    %2087 = vmatpush1.bf16.msra.mxu0 %v593
    %2088 = vmatprep.subr.bf16.mxu0 %v598
    %2089 = vmatpush1.bf16.msra.mxu0 %v597
    %2090 = vmatprep.subr.bf16.mxu0 %v602
    %2091 = vmatpush1.bf16.msra.mxu0 %v601
    %2092 = vmatprep.subr.bf16.mxu0 %v606
    %2093 = vmatpush1.bf16.msra.mxu0 %v605
    %2094 = vmatprep.subr.bf16.mxu0 %v610
    %2095 = vmatpush1.bf16.msra.mxu0 %v609
    %2096 = vmatprep.subr.bf16.mxu0 0
    %2097 = vmatpush1.bf16.msra.mxu0 0
    %2098 = vmatprep.subr.bf16.mxu0 0
    %2099 = vmatpush1.bf16.msra.mxu0 0
    %2100 = vmatprep.subr.bf16.mxu0 0
    %2101 = vmatpush1.bf16.msra.mxu0 0
    %2102 = vmatprep.subr.bf16.mxu0 0
    %2103 = vmatpush1.bf16.msra.mxu0 0
    %2104 = vmatprep.subr.bf16.mxu0 0
    %2105 = vmatpush1.bf16.msra.mxu0 0
    %2106 = vmatprep.subr.bf16.mxu0 0
    %2107 = vmatpush1.bf16.msra.mxu0 0
    %2108 = vmatprep.subr.bf16.mxu0 0
    %2109 = vmatpush1.bf16.msra.mxu0 0
    %2110 = vmatprep.subr.bf16.mxu0 0
    %2111 = vmatpush1.bf16.msra.mxu0 0
    %2112 = vmatprep.mubr.bf16.mxu0 0
    %2113 = vmatmul.mubr.bf16.gmra.mrb[0].mxu0 %v1871
    %v2114 = vpop.f32.mrb[0].mxu0
    %v2115 = vadd.f32 0.0, %v2114
    %v2116 = vpop.f32.mrb[0].mxu0
    %v2117 = vadd.f32 0.0, %v2116
    %v2118 = vpop.f32.mrb[0].mxu0
    %v2119 = vpop.f32.mrb[0].mxu0
    %2120 = vdwg.mxu0
    %v2121 = vadd.f32 %v1992, %v2074
    %v2122 = vadd.f32 %v1994, %v2076
    %v2123 = vadd.f32 %v2033, %v2115
    %v2124 = vadd.f32 %v2035, %v2117
    %v2125 = vrot.slane %v91, 5
    %v2126 = vrot.slane %v92, 5
    %v2127 = vrot.slane %v93, 5
    %v2128 = vrot.slane %v94, 5
    %v2133 = vadd.f32 %v2121, %v2125
    %v2134 = vadd.f32 %v2122, %v2126
    %v2135 = vadd.f32 %v2123, %v2127
    %v2136 = vadd.f32 %v2124, %v2128
    %v2137 = vtanh.pop %v2133
    %v2138 = vtanh.pop %v2134
    %v2139 = vtanh.pop %v2135
    %v2140 = vtanh.pop %v2136
    %v2141 = vadd.f32 %v2138, 1.0
    %v2142 = vmul.f32 %v2141, %v1866
    %v2143 = vadd.f32 %v2137, 1.0
    %v2144 = vmul.f32 %v2143, %v2139
    %v2145 = vadd.f32 %v2142, %v2144
    %v2146 = vmul.f32 %v2145, 0.5
    %v2147 = vmul.f32 %v2140, 0.5
    %v2148 = vadd.f32 %v2147, 0.5
    %v2149 = vtanh.pop %v2146
    %v2150 = vmul.f32 %v2148, %v2149
    %v2151 = vpack.c.bf16 %v2150, %v2150
    %v2152 = vunpack.c.l.bf16 %v2151
    %v2153 = vsub.f32 %v2150, %v2152
    %v2154 = vpack.c.bf16 %v2153, %v2153
    %2155 = vmatprep.subr.bf16.mxu0 %v224
    %2156 = vmatpush1.bf16.msra.mxu0 %v223
    %2157 = vmatprep.subr.bf16.mxu0 %v228
    %2158 = vmatpush1.bf16.msra.mxu0 %v227
    %2159 = vmatprep.subr.bf16.mxu0 %v232
    %2160 = vmatpush1.bf16.msra.mxu0 %v231
    %2161 = vmatprep.subr.bf16.mxu0 %v236
    %2162 = vmatpush1.bf16.msra.mxu0 %v235
    %2163 = vmatprep.subr.bf16.mxu0 %v240
    %2164 = vmatpush1.bf16.msra.mxu0 %v239
    %2165 = vmatprep.subr.bf16.mxu0 %v244
    %2166 = vmatpush1.bf16.msra.mxu0 %v243
    %2167 = vmatprep.subr.bf16.mxu0 %v248
    %2168 = vmatpush1.bf16.msra.mxu0 %v247
    %2169 = vmatprep.subr.bf16.mxu0 %v252
    %2170 = vmatpush1.bf16.msra.mxu0 %v251
    %2171 = vmatprep.subr.bf16.mxu0 0
    %2172 = vmatpush1.bf16.msra.mxu0 0
    %2173 = vmatprep.subr.bf16.mxu0 0
    %2174 = vmatpush1.bf16.msra.mxu0 0
    %2175 = vmatprep.subr.bf16.mxu0 0
    %2176 = vmatpush1.bf16.msra.mxu0 0
    %2177 = vmatprep.subr.bf16.mxu0 0
    %2178 = vmatpush1.bf16.msra.mxu0 0
    %2179 = vmatprep.subr.bf16.mxu0 0
    %2180 = vmatpush1.bf16.msra.mxu0 0
    %2181 = vmatprep.subr.bf16.mxu0 0
    %2182 = vmatpush1.bf16.msra.mxu0 0
    %2183 = vmatprep.subr.bf16.mxu0 0
    %2184 = vmatpush1.bf16.msra.mxu0 0
    %2185 = vmatprep.subr.bf16.mxu0 0
    %2186 = vmatpush1.bf16.msra.mxu0 0
    %2187 = vmatprep.mubr.bf16.mxu0 0
    %2188 = vmatmul.mubr.bf16.gmra.mrb[0].mxu0 %v2154
    %v2189 = vpop.f32.mrb[0].mxu0
    %v2190 = vadd.f32 0.0, %v2189
    %v2191 = vpop.f32.mrb[0].mxu0
    %v2192 = vadd.f32 0.0, %v2191
    %v2193 = vpop.f32.mrb[0].mxu0
    %v2194 = vpop.f32.mrb[0].mxu0
    %2195 = vdwg.mxu0
    %2196 = vmatprep.subr.bf16.mxu0 %v226
    %2197 = vmatpush1.bf16.msra.mxu0 %v225
    %2198 = vmatprep.subr.bf16.mxu0 %v230
    %2199 = vmatpush1.bf16.msra.mxu0 %v229
    %2200 = vmatprep.subr.bf16.mxu0 %v234
    %2201 = vmatpush1.bf16.msra.mxu0 %v233
    %2202 = vmatprep.subr.bf16.mxu0 %v238
    %2203 = vmatpush1.bf16.msra.mxu0 %v237
    %2204 = vmatprep.subr.bf16.mxu0 %v242
    %2205 = vmatpush1.bf16.msra.mxu0 %v241
    %2206 = vmatprep.subr.bf16.mxu0 %v246
    %2207 = vmatpush1.bf16.msra.mxu0 %v245
    %2208 = vmatprep.subr.bf16.mxu0 %v250
    %2209 = vmatpush1.bf16.msra.mxu0 %v249
    %2210 = vmatprep.subr.bf16.mxu0 %v254
    %2211 = vmatpush1.bf16.msra.mxu0 %v253
    %2212 = vmatprep.subr.bf16.mxu0 0
    %2213 = vmatpush1.bf16.msra.mxu0 0
    %2214 = vmatprep.subr.bf16.mxu0 0
    %2215 = vmatpush1.bf16.msra.mxu0 0
    %2216 = vmatprep.subr.bf16.mxu0 0
    %2217 = vmatpush1.bf16.msra.mxu0 0
    %2218 = vmatprep.subr.bf16.mxu0 0
    %2219 = vmatpush1.bf16.msra.mxu0 0
    %2220 = vmatprep.subr.bf16.mxu0 0
    %2221 = vmatpush1.bf16.msra.mxu0 0
    %2222 = vmatprep.subr.bf16.mxu0 0
    %2223 = vmatpush1.bf16.msra.mxu0 0
    %2224 = vmatprep.subr.bf16.mxu0 0
    %2225 = vmatpush1.bf16.msra.mxu0 0
    %2226 = vmatprep.subr.bf16.mxu0 0
    %2227 = vmatpush1.bf16.msra.mxu0 0
    %2228 = vmatprep.mubr.bf16.mxu0 0
    %2229 = vmatmul.mubr.bf16.gmra.mrb[0].mxu0 %v2154
    %v2230 = vpop.f32.mrb[0].mxu0
    %v2231 = vadd.f32 0.0, %v2230
    %v2232 = vpop.f32.mrb[0].mxu0
    %v2233 = vadd.f32 0.0, %v2232
    %v2234 = vpop.f32.mrb[0].mxu0
    %v2235 = vpop.f32.mrb[0].mxu0
    %2236 = vdwg.mxu0
    %2237 = vmatprep.subr.bf16.mxu0 %v224
    %2238 = vmatpush1.bf16.msra.mxu0 %v223
    %2239 = vmatprep.subr.bf16.mxu0 %v228
    %2240 = vmatpush1.bf16.msra.mxu0 %v227
    %2241 = vmatprep.subr.bf16.mxu0 %v232
    %2242 = vmatpush1.bf16.msra.mxu0 %v231
    %2243 = vmatprep.subr.bf16.mxu0 %v236
    %2244 = vmatpush1.bf16.msra.mxu0 %v235
    %2245 = vmatprep.subr.bf16.mxu0 %v240
    %2246 = vmatpush1.bf16.msra.mxu0 %v239
    %2247 = vmatprep.subr.bf16.mxu0 %v244
    %2248 = vmatpush1.bf16.msra.mxu0 %v243
    %2249 = vmatprep.subr.bf16.mxu0 %v248
    %2250 = vmatpush1.bf16.msra.mxu0 %v247
    %2251 = vmatprep.subr.bf16.mxu0 %v252
    %2252 = vmatpush1.bf16.msra.mxu0 %v251
    %2253 = vmatprep.subr.bf16.mxu0 0
    %2254 = vmatpush1.bf16.msra.mxu0 0
    %2255 = vmatprep.subr.bf16.mxu0 0
    %2256 = vmatpush1.bf16.msra.mxu0 0
    %2257 = vmatprep.subr.bf16.mxu0 0
    %2258 = vmatpush1.bf16.msra.mxu0 0
    %2259 = vmatprep.subr.bf16.mxu0 0
    %2260 = vmatpush1.bf16.msra.mxu0 0
    %2261 = vmatprep.subr.bf16.mxu0 0
    %2262 = vmatpush1.bf16.msra.mxu0 0
    %2263 = vmatprep.subr.bf16.mxu0 0
    %2264 = vmatpush1.bf16.msra.mxu0 0
    %2265 = vmatprep.subr.bf16.mxu0 0
    %2266 = vmatpush1.bf16.msra.mxu0 0
    %2267 = vmatprep.subr.bf16.mxu0 0
    %2268 = vmatpush1.bf16.msra.mxu0 0
    %2269 = vmatprep.mubr.bf16.mxu0 0
    %2270 = vmatmul.mubr.bf16.gmra.mrb[0].mxu0 %v2151
    %v2271 = vpop.f32.mrb[0].mxu0
    %v2272 = vadd.f32 %v2190, %v2271
    %v2273 = vpop.f32.mrb[0].mxu0
    %v2274 = vadd.f32 %v2192, %v2273
    %v2275 = vpop.f32.mrb[0].mxu0
    %v2276 = vpop.f32.mrb[0].mxu0
    %2277 = vdwg.mxu0
    %2278 = vmatprep.subr.bf16.mxu0 %v226
    %2279 = vmatpush1.bf16.msra.mxu0 %v225
    %2280 = vmatprep.subr.bf16.mxu0 %v230
    %2281 = vmatpush1.bf16.msra.mxu0 %v229
    %2282 = vmatprep.subr.bf16.mxu0 %v234
    %2283 = vmatpush1.bf16.msra.mxu0 %v233
    %2284 = vmatprep.subr.bf16.mxu0 %v238
    %2285 = vmatpush1.bf16.msra.mxu0 %v237
    %2286 = vmatprep.subr.bf16.mxu0 %v242
    %2287 = vmatpush1.bf16.msra.mxu0 %v241
    %2288 = vmatprep.subr.bf16.mxu0 %v246
    %2289 = vmatpush1.bf16.msra.mxu0 %v245
    %2290 = vmatprep.subr.bf16.mxu0 %v250
    %2291 = vmatpush1.bf16.msra.mxu0 %v249
    %2292 = vmatprep.subr.bf16.mxu0 %v254
    %2293 = vmatpush1.bf16.msra.mxu0 %v253
    %2294 = vmatprep.subr.bf16.mxu0 0
    %2295 = vmatpush1.bf16.msra.mxu0 0
    %2296 = vmatprep.subr.bf16.mxu0 0
    %2297 = vmatpush1.bf16.msra.mxu0 0
    %2298 = vmatprep.subr.bf16.mxu0 0
    %2299 = vmatpush1.bf16.msra.mxu0 0
    %2300 = vmatprep.subr.bf16.mxu0 0
    %2301 = vmatpush1.bf16.msra.mxu0 0
    %2302 = vmatprep.subr.bf16.mxu0 0
    %2303 = vmatpush1.bf16.msra.mxu0 0
    %2304 = vmatprep.subr.bf16.mxu0 0
    %2305 = vmatpush1.bf16.msra.mxu0 0
    %2306 = vmatprep.subr.bf16.mxu0 0
    %2307 = vmatpush1.bf16.msra.mxu0 0
    %2308 = vmatprep.subr.bf16.mxu0 0
    %2309 = vmatpush1.bf16.msra.mxu0 0
    %2310 = vmatprep.mubr.bf16.mxu0 0
    %2311 = vmatmul.mubr.bf16.gmra.mrb[0].mxu0 %v2151
    %v2312 = vpop.f32.mrb[0].mxu0
    %v2313 = vadd.f32 %v2231, %v2312
    %v2314 = vpop.f32.mrb[0].mxu0
    %v2315 = vadd.f32 %v2233, %v2314
    %v2316 = vpop.f32.mrb[0].mxu0
    %v2317 = vpop.f32.mrb[0].mxu0
    %2318 = vdwg.mxu0
    %2319 = vmatprep.subr.bf16.mxu0 %v580
    %2320 = vmatpush1.bf16.msra.mxu0 %v579
    %2321 = vmatprep.subr.bf16.mxu0 %v584
    %2322 = vmatpush1.bf16.msra.mxu0 %v583
    %2323 = vmatprep.subr.bf16.mxu0 %v588
    %2324 = vmatpush1.bf16.msra.mxu0 %v587
    %2325 = vmatprep.subr.bf16.mxu0 %v592
    %2326 = vmatpush1.bf16.msra.mxu0 %v591
    %2327 = vmatprep.subr.bf16.mxu0 %v596
    %2328 = vmatpush1.bf16.msra.mxu0 %v595
    %2329 = vmatprep.subr.bf16.mxu0 %v600
    %2330 = vmatpush1.bf16.msra.mxu0 %v599
    %2331 = vmatprep.subr.bf16.mxu0 %v604
    %2332 = vmatpush1.bf16.msra.mxu0 %v603
    %2333 = vmatprep.subr.bf16.mxu0 %v608
    %2334 = vmatpush1.bf16.msra.mxu0 %v607
    %2335 = vmatprep.subr.bf16.mxu0 0
    %2336 = vmatpush1.bf16.msra.mxu0 0
    %2337 = vmatprep.subr.bf16.mxu0 0
    %2338 = vmatpush1.bf16.msra.mxu0 0
    %2339 = vmatprep.subr.bf16.mxu0 0
    %2340 = vmatpush1.bf16.msra.mxu0 0
    %2341 = vmatprep.subr.bf16.mxu0 0
    %2342 = vmatpush1.bf16.msra.mxu0 0
    %2343 = vmatprep.subr.bf16.mxu0 0
    %2344 = vmatpush1.bf16.msra.mxu0 0
    %2345 = vmatprep.subr.bf16.mxu0 0
    %2346 = vmatpush1.bf16.msra.mxu0 0
    %2347 = vmatprep.subr.bf16.mxu0 0
    %2348 = vmatpush1.bf16.msra.mxu0 0
    %2349 = vmatprep.subr.bf16.mxu0 0
    %2350 = vmatpush1.bf16.msra.mxu0 0
    %2351 = vmatprep.mubr.bf16.mxu0 0
    %2352 = vmatmul.mubr.bf16.gmra.mrb[0].mxu0 %v2151
    %v2353 = vpop.f32.mrb[0].mxu0
    %v2354 = vadd.f32 0.0, %v2353
    %v2355 = vpop.f32.mrb[0].mxu0
    %v2356 = vadd.f32 0.0, %v2355
    %v2357 = vpop.f32.mrb[0].mxu0
    %v2358 = vpop.f32.mrb[0].mxu0
    %2359 = vdwg.mxu0
    %2360 = vmatprep.subr.bf16.mxu0 %v582
    %2361 = vmatpush1.bf16.msra.mxu0 %v581
    %2362 = vmatprep.subr.bf16.mxu0 %v586
    %2363 = vmatpush1.bf16.msra.mxu0 %v585
    %2364 = vmatprep.subr.bf16.mxu0 %v590
    %2365 = vmatpush1.bf16.msra.mxu0 %v589
    %2366 = vmatprep.subr.bf16.mxu0 %v594
    %2367 = vmatpush1.bf16.msra.mxu0 %v593
    %2368 = vmatprep.subr.bf16.mxu0 %v598
    %2369 = vmatpush1.bf16.msra.mxu0 %v597
    %2370 = vmatprep.subr.bf16.mxu0 %v602
    %2371 = vmatpush1.bf16.msra.mxu0 %v601
    %2372 = vmatprep.subr.bf16.mxu0 %v606
    %2373 = vmatpush1.bf16.msra.mxu0 %v605
    %2374 = vmatprep.subr.bf16.mxu0 %v610
    %2375 = vmatpush1.bf16.msra.mxu0 %v609
    %2376 = vmatprep.subr.bf16.mxu0 0
    %2377 = vmatpush1.bf16.msra.mxu0 0
    %2378 = vmatprep.subr.bf16.mxu0 0
    %2379 = vmatpush1.bf16.msra.mxu0 0
    %2380 = vmatprep.subr.bf16.mxu0 0
    %2381 = vmatpush1.bf16.msra.mxu0 0
    %2382 = vmatprep.subr.bf16.mxu0 0
    %2383 = vmatpush1.bf16.msra.mxu0 0
    %2384 = vmatprep.subr.bf16.mxu0 0
    %2385 = vmatpush1.bf16.msra.mxu0 0
    %2386 = vmatprep.subr.bf16.mxu0 0
    %2387 = vmatpush1.bf16.msra.mxu0 0
    %2388 = vmatprep.subr.bf16.mxu0 0
    %2389 = vmatpush1.bf16.msra.mxu0 0
    %2390 = vmatprep.subr.bf16.mxu0 0
    %2391 = vmatpush1.bf16.msra.mxu0 0
    %2392 = vmatprep.mubr.bf16.mxu0 0
    %2393 = vmatmul.mubr.bf16.gmra.mrb[0].mxu0 %v2151
    %v2394 = vpop.f32.mrb[0].mxu0
    %v2395 = vadd.f32 0.0, %v2394
    %v2396 = vpop.f32.mrb[0].mxu0
    %v2397 = vadd.f32 0.0, %v2396
    %v2398 = vpop.f32.mrb[0].mxu0
    %v2399 = vpop.f32.mrb[0].mxu0
    %2400 = vdwg.mxu0
    %v2401 = vadd.f32 %v2272, %v2354
    %v2402 = vadd.f32 %v2274, %v2356
    %v2403 = vadd.f32 %v2313, %v2395
    %v2404 = vadd.f32 %v2315, %v2397
    %v2405 = vrot.slane %v91, 6
    %v2406 = vrot.slane %v92, 6
    %v2407 = vrot.slane %v93, 6
    %v2408 = vrot.slane %v94, 6
    %v2413 = vadd.f32 %v2401, %v2405
    %v2414 = vadd.f32 %v2402, %v2406
    %v2415 = vadd.f32 %v2403, %v2407
    %v2416 = vadd.f32 %v2404, %v2408
    %v2417 = vtanh.pop %v2413
    %v2418 = vtanh.pop %v2414
    %v2419 = vtanh.pop %v2415
    %v2420 = vtanh.pop %v2416
    %v2421 = vadd.f32 %v2418, 1.0
    %v2422 = vmul.f32 %v2421, %v2146
    %v2423 = vadd.f32 %v2417, 1.0
    %v2424 = vmul.f32 %v2423, %v2419
    %v2425 = vadd.f32 %v2422, %v2424
    %v2426 = vmul.f32 %v2425, 0.5
    %v2427 = vmul.f32 %v2420, 0.5
    %v2428 = vadd.f32 %v2427, 0.5
    %v2429 = vtanh.pop %v2426
    %v2430 = vmul.f32 %v2428, %v2429
    %v2431 = vpack.c.bf16 %v2430, %v2430
    %v2432 = vunpack.c.l.bf16 %v2431
    %v2433 = vsub.f32 %v2430, %v2432
    %v2434 = vpack.c.bf16 %v2433, %v2433
    %2435 = vmatprep.subr.bf16.mxu0 %v224
    %2436 = vmatpush1.bf16.msra.mxu0 %v223
    %2437 = vmatprep.subr.bf16.mxu0 %v228
    %2438 = vmatpush1.bf16.msra.mxu0 %v227
    %2439 = vmatprep.subr.bf16.mxu0 %v232
    %2440 = vmatpush1.bf16.msra.mxu0 %v231
    %2441 = vmatprep.subr.bf16.mxu0 %v236
    %2442 = vmatpush1.bf16.msra.mxu0 %v235
    %2443 = vmatprep.subr.bf16.mxu0 %v240
    %2444 = vmatpush1.bf16.msra.mxu0 %v239
    %2445 = vmatprep.subr.bf16.mxu0 %v244
    %2446 = vmatpush1.bf16.msra.mxu0 %v243
    %2447 = vmatprep.subr.bf16.mxu0 %v248
    %2448 = vmatpush1.bf16.msra.mxu0 %v247
    %2449 = vmatprep.subr.bf16.mxu0 %v252
    %2450 = vmatpush1.bf16.msra.mxu0 %v251
    %2451 = vmatprep.subr.bf16.mxu0 0
    %2452 = vmatpush1.bf16.msra.mxu0 0
    %2453 = vmatprep.subr.bf16.mxu0 0
    %2454 = vmatpush1.bf16.msra.mxu0 0
    %2455 = vmatprep.subr.bf16.mxu0 0
    %2456 = vmatpush1.bf16.msra.mxu0 0
    %2457 = vmatprep.subr.bf16.mxu0 0
    %2458 = vmatpush1.bf16.msra.mxu0 0
    %2459 = vmatprep.subr.bf16.mxu0 0
    %2460 = vmatpush1.bf16.msra.mxu0 0
    %2461 = vmatprep.subr.bf16.mxu0 0
    %2462 = vmatpush1.bf16.msra.mxu0 0
    %2463 = vmatprep.subr.bf16.mxu0 0
    %2464 = vmatpush1.bf16.msra.mxu0 0
    %2465 = vmatprep.subr.bf16.mxu0 0
    %2466 = vmatpush1.bf16.msra.mxu0 0
    %2467 = vmatprep.mubr.bf16.mxu0 0
    %2468 = vmatmul.mubr.bf16.gmra.mrb[0].mxu0 %v2434
    %v2469 = vpop.f32.mrb[0].mxu0
    %v2470 = vadd.f32 0.0, %v2469
    %v2471 = vpop.f32.mrb[0].mxu0
    %v2472 = vadd.f32 0.0, %v2471
    %v2473 = vpop.f32.mrb[0].mxu0
    %v2474 = vpop.f32.mrb[0].mxu0
    %2475 = vdwg.mxu0
    %2476 = vmatprep.subr.bf16.mxu0 %v226
    %2477 = vmatpush1.bf16.msra.mxu0 %v225
    %2478 = vmatprep.subr.bf16.mxu0 %v230
    %2479 = vmatpush1.bf16.msra.mxu0 %v229
    %2480 = vmatprep.subr.bf16.mxu0 %v234
    %2481 = vmatpush1.bf16.msra.mxu0 %v233
    %2482 = vmatprep.subr.bf16.mxu0 %v238
    %2483 = vmatpush1.bf16.msra.mxu0 %v237
    %2484 = vmatprep.subr.bf16.mxu0 %v242
    %2485 = vmatpush1.bf16.msra.mxu0 %v241
    %2486 = vmatprep.subr.bf16.mxu0 %v246
    %2487 = vmatpush1.bf16.msra.mxu0 %v245
    %2488 = vmatprep.subr.bf16.mxu0 %v250
    %2489 = vmatpush1.bf16.msra.mxu0 %v249
    %2490 = vmatprep.subr.bf16.mxu0 %v254
    %2491 = vmatpush1.bf16.msra.mxu0 %v253
    %2492 = vmatprep.subr.bf16.mxu0 0
    %2493 = vmatpush1.bf16.msra.mxu0 0
    %2494 = vmatprep.subr.bf16.mxu0 0
    %2495 = vmatpush1.bf16.msra.mxu0 0
    %2496 = vmatprep.subr.bf16.mxu0 0
    %2497 = vmatpush1.bf16.msra.mxu0 0
    %2498 = vmatprep.subr.bf16.mxu0 0
    %2499 = vmatpush1.bf16.msra.mxu0 0
    %2500 = vmatprep.subr.bf16.mxu0 0
    %2501 = vmatpush1.bf16.msra.mxu0 0
    %2502 = vmatprep.subr.bf16.mxu0 0
    %2503 = vmatpush1.bf16.msra.mxu0 0
    %2504 = vmatprep.subr.bf16.mxu0 0
    %2505 = vmatpush1.bf16.msra.mxu0 0
    %2506 = vmatprep.subr.bf16.mxu0 0
    %2507 = vmatpush1.bf16.msra.mxu0 0
    %2508 = vmatprep.mubr.bf16.mxu0 0
    %2509 = vmatmul.mubr.bf16.gmra.mrb[0].mxu0 %v2434
    %v2510 = vpop.f32.mrb[0].mxu0
    %v2511 = vadd.f32 0.0, %v2510
    %v2512 = vpop.f32.mrb[0].mxu0
    %v2513 = vadd.f32 0.0, %v2512
    %v2514 = vpop.f32.mrb[0].mxu0
    %v2515 = vpop.f32.mrb[0].mxu0
    %2516 = vdwg.mxu0
    %2517 = vmatprep.subr.bf16.mxu0 %v224
    %2518 = vmatpush1.bf16.msra.mxu0 %v223
    %2519 = vmatprep.subr.bf16.mxu0 %v228
    %2520 = vmatpush1.bf16.msra.mxu0 %v227
    %2521 = vmatprep.subr.bf16.mxu0 %v232
    %2522 = vmatpush1.bf16.msra.mxu0 %v231
    %2523 = vmatprep.subr.bf16.mxu0 %v236
    %2524 = vmatpush1.bf16.msra.mxu0 %v235
    %2525 = vmatprep.subr.bf16.mxu0 %v240
    %2526 = vmatpush1.bf16.msra.mxu0 %v239
    %2527 = vmatprep.subr.bf16.mxu0 %v244
    %2528 = vmatpush1.bf16.msra.mxu0 %v243
    %2529 = vmatprep.subr.bf16.mxu0 %v248
    %2530 = vmatpush1.bf16.msra.mxu0 %v247
    %2531 = vmatprep.subr.bf16.mxu0 %v252
    %2532 = vmatpush1.bf16.msra.mxu0 %v251
    %2533 = vmatprep.subr.bf16.mxu0 0
    %2534 = vmatpush1.bf16.msra.mxu0 0
    %2535 = vmatprep.subr.bf16.mxu0 0
    %2536 = vmatpush1.bf16.msra.mxu0 0
    %2537 = vmatprep.subr.bf16.mxu0 0
    %2538 = vmatpush1.bf16.msra.mxu0 0
    %2539 = vmatprep.subr.bf16.mxu0 0
    %2540 = vmatpush1.bf16.msra.mxu0 0
    %2541 = vmatprep.subr.bf16.mxu0 0
    %2542 = vmatpush1.bf16.msra.mxu0 0
    %2543 = vmatprep.subr.bf16.mxu0 0
    %2544 = vmatpush1.bf16.msra.mxu0 0
    %2545 = vmatprep.subr.bf16.mxu0 0
    %2546 = vmatpush1.bf16.msra.mxu0 0
    %2547 = vmatprep.subr.bf16.mxu0 0
    %2548 = vmatpush1.bf16.msra.mxu0 0
    %2549 = vmatprep.mubr.bf16.mxu0 0
    %2550 = vmatmul.mubr.bf16.gmra.mrb[0].mxu0 %v2431
    %v2551 = vpop.f32.mrb[0].mxu0
    %v2552 = vadd.f32 %v2470, %v2551
    %v2553 = vpop.f32.mrb[0].mxu0
    %v2554 = vadd.f32 %v2472, %v2553
    %v2555 = vpop.f32.mrb[0].mxu0
    %v2556 = vpop.f32.mrb[0].mxu0
    %2557 = vdwg.mxu0
    %2558 = vmatprep.subr.bf16.mxu0 %v226
    %2559 = vmatpush1.bf16.msra.mxu0 %v225
    %2560 = vmatprep.subr.bf16.mxu0 %v230
    %2561 = vmatpush1.bf16.msra.mxu0 %v229
    %2562 = vmatprep.subr.bf16.mxu0 %v234
    %2563 = vmatpush1.bf16.msra.mxu0 %v233
    %2564 = vmatprep.subr.bf16.mxu0 %v238
    %2565 = vmatpush1.bf16.msra.mxu0 %v237
    %2566 = vmatprep.subr.bf16.mxu0 %v242
    %2567 = vmatpush1.bf16.msra.mxu0 %v241
    %2568 = vmatprep.subr.bf16.mxu0 %v246
    %2569 = vmatpush1.bf16.msra.mxu0 %v245
    %2570 = vmatprep.subr.bf16.mxu0 %v250
    %2571 = vmatpush1.bf16.msra.mxu0 %v249
    %2572 = vmatprep.subr.bf16.mxu0 %v254
    %2573 = vmatpush1.bf16.msra.mxu0 %v253
    %2574 = vmatprep.subr.bf16.mxu0 0
    %2575 = vmatpush1.bf16.msra.mxu0 0
    %2576 = vmatprep.subr.bf16.mxu0 0
    %2577 = vmatpush1.bf16.msra.mxu0 0
    %2578 = vmatprep.subr.bf16.mxu0 0
    %2579 = vmatpush1.bf16.msra.mxu0 0
    %2580 = vmatprep.subr.bf16.mxu0 0
    %2581 = vmatpush1.bf16.msra.mxu0 0
    %2582 = vmatprep.subr.bf16.mxu0 0
    %2583 = vmatpush1.bf16.msra.mxu0 0
    %2584 = vmatprep.subr.bf16.mxu0 0
    %2585 = vmatpush1.bf16.msra.mxu0 0
    %2586 = vmatprep.subr.bf16.mxu0 0
    %2587 = vmatpush1.bf16.msra.mxu0 0
    %2588 = vmatprep.subr.bf16.mxu0 0
    %2589 = vmatpush1.bf16.msra.mxu0 0
    %2590 = vmatprep.mubr.bf16.mxu0 0
    %2591 = vmatmul.mubr.bf16.gmra.mrb[0].mxu0 %v2431
    %v2592 = vpop.f32.mrb[0].mxu0
    %v2593 = vadd.f32 %v2511, %v2592
    %v2594 = vpop.f32.mrb[0].mxu0
    %v2595 = vadd.f32 %v2513, %v2594
    %v2596 = vpop.f32.mrb[0].mxu0
    %v2597 = vpop.f32.mrb[0].mxu0
    %2598 = vdwg.mxu0
    %2599 = vmatprep.subr.bf16.mxu0 %v580
    %2600 = vmatpush1.bf16.msra.mxu0 %v579
    %2601 = vmatprep.subr.bf16.mxu0 %v584
    %2602 = vmatpush1.bf16.msra.mxu0 %v583
    %2603 = vmatprep.subr.bf16.mxu0 %v588
    %2604 = vmatpush1.bf16.msra.mxu0 %v587
    %2605 = vmatprep.subr.bf16.mxu0 %v592
    %2606 = vmatpush1.bf16.msra.mxu0 %v591
    %2607 = vmatprep.subr.bf16.mxu0 %v596
    %2608 = vmatpush1.bf16.msra.mxu0 %v595
    %2609 = vmatprep.subr.bf16.mxu0 %v600
    %2610 = vmatpush1.bf16.msra.mxu0 %v599
    %2611 = vmatprep.subr.bf16.mxu0 %v604
    %2612 = vmatpush1.bf16.msra.mxu0 %v603
    %2613 = vmatprep.subr.bf16.mxu0 %v608
    %2614 = vmatpush1.bf16.msra.mxu0 %v607
    %2615 = vmatprep.subr.bf16.mxu0 0
    %2616 = vmatpush1.bf16.msra.mxu0 0
    %2617 = vmatprep.subr.bf16.mxu0 0
    %2618 = vmatpush1.bf16.msra.mxu0 0
    %2619 = vmatprep.subr.bf16.mxu0 0
    %2620 = vmatpush1.bf16.msra.mxu0 0
    %2621 = vmatprep.subr.bf16.mxu0 0
    %2622 = vmatpush1.bf16.msra.mxu0 0
    %2623 = vmatprep.subr.bf16.mxu0 0
    %2624 = vmatpush1.bf16.msra.mxu0 0
    %2625 = vmatprep.subr.bf16.mxu0 0
    %2626 = vmatpush1.bf16.msra.mxu0 0
    %2627 = vmatprep.subr.bf16.mxu0 0
    %2628 = vmatpush1.bf16.msra.mxu0 0
    %2629 = vmatprep.subr.bf16.mxu0 0
    %2630 = vmatpush1.bf16.msra.mxu0 0
    %2631 = vmatprep.mubr.bf16.mxu0 0
    %2632 = vmatmul.mubr.bf16.gmra.mrb[0].mxu0 %v2431
    %v2633 = vpop.f32.mrb[0].mxu0
    %v2634 = vadd.f32 0.0, %v2633
    %v2635 = vpop.f32.mrb[0].mxu0
    %v2636 = vadd.f32 0.0, %v2635
    %v2637 = vpop.f32.mrb[0].mxu0
    %v2638 = vpop.f32.mrb[0].mxu0
    %2639 = vdwg.mxu0
    %2640 = vmatprep.subr.bf16.mxu0 %v582
    %2641 = vmatpush1.bf16.msra.mxu0 %v581
    %2642 = vmatprep.subr.bf16.mxu0 %v586
    %2643 = vmatpush1.bf16.msra.mxu0 %v585
    %2644 = vmatprep.subr.bf16.mxu0 %v590
    %2645 = vmatpush1.bf16.msra.mxu0 %v589
    %2646 = vmatprep.subr.bf16.mxu0 %v594
    %2647 = vmatpush1.bf16.msra.mxu0 %v593
    %2648 = vmatprep.subr.bf16.mxu0 %v598
    %2649 = vmatpush1.bf16.msra.mxu0 %v597
    %2650 = vmatprep.subr.bf16.mxu0 %v602
    %2651 = vmatpush1.bf16.msra.mxu0 %v601
    %2652 = vmatprep.subr.bf16.mxu0 %v606
    %2653 = vmatpush1.bf16.msra.mxu0 %v605
    %2654 = vmatprep.subr.bf16.mxu0 %v610
    %2655 = vmatpush1.bf16.msra.mxu0 %v609
    %2656 = vmatprep.subr.bf16.mxu0 0
    %2657 = vmatpush1.bf16.msra.mxu0 0
    %2658 = vmatprep.subr.bf16.mxu0 0
    %2659 = vmatpush1.bf16.msra.mxu0 0
    %2660 = vmatprep.subr.bf16.mxu0 0
    %2661 = vmatpush1.bf16.msra.mxu0 0
    %2662 = vmatprep.subr.bf16.mxu0 0
    %2663 = vmatpush1.bf16.msra.mxu0 0
    %2664 = vmatprep.subr.bf16.mxu0 0
    %2665 = vmatpush1.bf16.msra.mxu0 0
    %2666 = vmatprep.subr.bf16.mxu0 0
    %2667 = vmatpush1.bf16.msra.mxu0 0
    %2668 = vmatprep.subr.bf16.mxu0 0
    %2669 = vmatpush1.bf16.msra.mxu0 0
    %2670 = vmatprep.subr.bf16.mxu0 0
    %2671 = vmatpush1.bf16.msra.mxu0 0
    %2672 = vmatprep.mubr.bf16.mxu0 0
    %2673 = vmatmul.mubr.bf16.gmra.mrb[0].mxu0 %v2431
    %v2674 = vpop.f32.mrb[0].mxu0
    %v2675 = vadd.f32 0.0, %v2674
    %v2676 = vpop.f32.mrb[0].mxu0
    %v2677 = vadd.f32 0.0, %v2676
    %v2678 = vpop.f32.mrb[0].mxu0
    %v2679 = vpop.f32.mrb[0].mxu0
    %2680 = vdwg.mxu0
    %v2681 = vadd.f32 %v2552, %v2634
    %v2682 = vadd.f32 %v2554, %v2636
    %v2683 = vadd.f32 %v2593, %v2675
    %v2684 = vadd.f32 %v2595, %v2677
    %v2685 = vrot.slane %v91, 7
    %v2686 = vrot.slane %v92, 7
    %v2687 = vrot.slane %v93, 7
    %v2688 = vrot.slane %v94, 7
    %v2693 = vadd.f32 %v2681, %v2685
    %v2694 = vadd.f32 %v2682, %v2686
    %v2695 = vadd.f32 %v2683, %v2687
    %v2696 = vadd.f32 %v2684, %v2688
    %v2697 = vtanh.pop %v2693
    %v2698 = vtanh.pop %v2694
    %v2699 = vtanh.pop %v2695
    %v2700 = vtanh.pop %v2696
    %v2701 = vadd.f32 %v2698, 1.0
    %v2702 = vmul.f32 %v2701, %v2426
    %v2703 = vadd.f32 %v2697, 1.0
    %v2704 = vmul.f32 %v2703, %v2699
    %v2705 = vadd.f32 %v2702, %v2704
    %v2706 = vmul.f32 %v2705, 0.5
    %v2707 = vmul.f32 %v2700, 0.5
    %v2708 = vadd.f32 %v2707, 0.5
    %v2709 = vtanh.pop %v2706
    %v2710 = vmul.f32 %v2708, %v2709
    %v2711 = vld [vmem:[%s8] sm:$0x1]
    %v2712 = vmul.f32 %v2710, %v2711
    %vm2713 = vcmask 1040384
    %v2714 = vsel %vm2713, %v2712, 0.0
    %2715 = vadd.xlane.f32.xlu0 %v2714
    %v2716 = vpop.xlane.xlu0 %2715
    %s2717 = sld [smem:[#allocation2]]
    %s2718 = sld [smem:[#allocation3]]
    %s2719 = smul.f32 %s2717, %s2718
    %v2720 = vstv %s2719
    %v2721 = vadd.f32 %v2716, %v2720
    %s2722 = sld [smem:[#allocation4]]
    %v2723 = vstv %s2722
    %v2724 = vadd.f32 %v2721, %v2723
    %vm2725 = vcmask 0
    %2726 = vst.msk [vmem:[#allocation5] sm:$0x1] %vm2725, %v2724
    // Predicated region
    $region38: #{forward_pallas.1} parent=1 // pred_check
      _
    $region39: #{forward_pallas.1} parent=1 // pred_check_branch
      %2728 = sbr.rel (0) target = $region41
    $region40: #{forward_pallas.1} parent=1 // pred_region
      %s2730 = ssub.s32 16, 16
      %2731 = vsyncadd [#allocation6], %s2730
      %s2733 = sshll.u32 [#allocation5], 4
      %s2734 = int_to_ptr.vmem [resolvable:$true] %s2733
      %2736 = dma.vmem_to_hbm [thread:$0]  %s2734, 16, %s9, [#allocation6]
    $region41: #{forward_pallas.1} parent=1 // pred_fallthru
      _
    // Predicated region
    $region42: #{forward_pallas.1} parent=1 // pred_check
      _
    $region43: #{forward_pallas.1} parent=1 // pred_check_branch
      %2738 = sbr.rel (0) target = $region45
    $region44: #{forward_pallas.1} parent=1 // pred_region
      %2739 = dma.done [#allocation6], 16
    $region45: #{forward_pallas.1} parent=1 // pred_fallthru
      _
    %2740 = vsyncpa [#allocation6], 1

</llo_original>
